<compile_context>
chip_gen: v7x
topology: tpu7x:2x2x1
jax: 0.10.0
libtpu: 0.0.40
codegen_flags: <defaults>
</compile_context>

<pallas_src>
import functools
import math

import jax
import jax.numpy as jnp
import numpy as np
from jax.experimental import pallas as pl
from jax.experimental.pallas import tpu as pltpu


_INV_SQRT2 = 0.7071067811865476


def _erf_approx(x):
    """Abramowitz & Stegun 7.1.26 erf (|err| < 1.5e-7).  Kernel-only helper:
    the divide is an EUP approximate reciprocal instead of a VPU Newton chain."""
    a1, a2, a3, a4, a5 = (0.254829592, -0.284496736, 1.421413741,
                          -1.453152027, 1.061405429)
    p = 0.3275911
    sign = jnp.where(x >= 0.0, 1.0, -1.0)
    ax = jnp.abs(x)
    t = pl.reciprocal(1.0 + p * ax, approx=True)      # EUP slot, not VPU divide
    poly = ((((a5 * t + a4) * t + a3) * t + a2) * t + a1) * t
    return sign * (1.0 - poly * jnp.exp(-ax * ax))


# ----------------------------------------------------------------------------
# Pass 1 (tiny, one-shot): BatchNorm training-mode statistics from the INPUT
# via conv linearity (augmented Gram matrix).  Outputs the folded per-channel
# scale/shift so the main pass is a single fused sweep.
# ----------------------------------------------------------------------------
def _stats_kernel(x_ref, w_ref, gamma_ref, beta_ref, scale_ref, shift_ref, *,
                  inv_count):
    n_batch, c_in, hwp = x_ref.shape
    w = w_ref[...]                                          # (Cout, Cin)

    # Augmented Gram: append a ones-row so one lane-contraction yields both
    # G = sum x x^T and sx = sum_p x (padded lanes are zero => harmless).
    ones_row = jnp.ones((1, hwp), jnp.float32)
    gaug = jnp.zeros((c_in + 1, c_in + 1), jnp.float32)
    for n in range(n_batch):                                # static, N tiny
        xa = jnp.concatenate([x_ref[n], ones_row], axis=0)  # (Cin+1, HWp)
        gaug = gaug + jax.lax.dot_general(
            xa, xa, dimension_numbers=(((1,), (1,)), ((), ())),
            preferred_element_type=jnp.float32)

    g = gaug[0:c_in, 0:c_in]                     # (Cin, Cin)  sum x x^T
    sx = gaug[c_in:c_in + 1, 0:c_in]             # (1, Cin)    sum_p x

    sum_y = jnp.sum(w * sx, axis=1, keepdims=True)                   # (Cout,1)
    wg = jnp.dot(w, g, preferred_element_type=jnp.float32)           # (Cout,Cin)
    sum_y2 = jnp.sum(wg * w, axis=1, keepdims=True)                  # (Cout,1)

    mean = sum_y * inv_count
    # Single-pass variance E[y^2] - mean^2; fine here (|mean| << std), guarded
    # against tiny negative values from f32 cancellation.
    var = jnp.maximum(sum_y2 * inv_count - mean * mean, 0.0)
    scale = gamma_ref[...] * jax.lax.rsqrt(var + 1e-5)
    shift = beta_ref[...] - mean * scale
    scale_ref[...] = scale
    shift_ref[...] = shift


# ----------------------------------------------------------------------------
# Pass 2 (gridded over HW lane chunks, "parallel"): per chunk
#   conv1x1 matmul -> BN (scale,shift) -> GELU -> LRN band matmul -> +noise.
# Layout: x (N, Cin, HWp), w (Cout, Cin), scale/shift (Cout, 1),
#         noise (1, Cout, HWp), out (N, Cout, HWp).  HW is the lane axis.
# ----------------------------------------------------------------------------
def _dp_block_kernel(x_ref, w_ref, scale_ref, shift_ref, noise_ref, o_ref):
    n_batch = x_ref.shape[0]
    c_out = w_ref.shape[0]

    w = w_ref[...]                      # (Cout, Cin)
    scale = scale_ref[...]              # (Cout, 1)
    shift = shift_ref[...]              # (Cout, 1)
    noise = noise_ref[0]                # (Cout, chunk), broadcast over batch

    # LRN size-5 channel window as a banded matmul (the MXU is otherwise idle:
    # the conv matmul has K = Cin = 4).
    ci = jax.lax.broadcasted_iota(jnp.int32, (c_out, c_out), 0)
    cj = jax.lax.broadcasted_iota(jnp.int32, (c_out, c_out), 1)
    band = (jnp.abs(ci - cj) <= 2).astype(jnp.float32)

    for n in range(n_batch):            # static unroll, N is tiny
        # 1) 1x1 conv == channels-major matmul on this lane chunk.
        y = jnp.dot(w, x_ref[n], preferred_element_type=jnp.float32)
        # 2) BatchNorm2d (training-mode batch stats folded into scale/shift).
        y = y * scale + shift
        # 3) GELU (exact / erf form, matching nn.GELU() default).
        y = 0.5 * y * (1.0 + _erf_approx(y * _INV_SQRT2))
        # 4) LocalResponseNorm(size=5, alpha=5, beta=0.5, k=2):
        #    out = y * rsqrt(2 + sum_{|d|<=2} y_{c+d}^2)   (alpha/size = 1)
        s = jnp.dot(band, y * y, preferred_element_type=jnp.float32)
        y = y * jax.lax.rsqrt(2.0 + s)
        # 5) + DP Gaussian noise, broadcast over the batch.
        o_ref[n] = (y + noise).astype(o_ref.dtype)


# ----------------------------------------------------------------------------
# Wrapper (layout plumbing only: reshapes + lane padding, no transposes)
# ----------------------------------------------------------------------------
@jax.jit
def dp_block_forward(x_nchw, conv_w, bn_gamma, bn_beta, noise_chw):
    N, Cin, H, W = x_nchw.shape
    Cout = conv_w.shape[0]
    HW = H * W

    # Channels-major, lane-dense layout: NCHW -> (N, C, H*W) is a free reshape.
    x3 = x_nchw.reshape(N, Cin, HW).astype(jnp.float32)
    w = conv_w.reshape(Cout, Cin).astype(jnp.float32)
    gamma = bn_gamma.reshape(Cout, 1).astype(jnp.float32)
    beta = bn_beta.reshape(Cout, 1).astype(jnp.float32)
    noise = noise_chw.reshape(1, Cout, HW).astype(jnp.float32)

    # Lane-axis chunking: pad HW so every block is full (unmasked lane-dense
    # stores) and the per-chunk live set stays a few vregs (no spills).
    lane = 128
    target = 640                                   # 5 * 128 lanes per chunk
    hw_lanes = lane * pl.cdiv(HW, lane)
    chunk = hw_lanes if hw_lanes <= target else target
    hwp = chunk * pl.cdiv(HW, chunk)
    if hwp != HW:
        pad = hwp - HW
        x3 = jnp.pad(x3, ((0, 0), (0, 0), (0, pad)))
        noise = jnp.pad(noise, ((0, 0), (0, 0), (0, pad)))

    vmem = pl.BlockSpec(memory_space=pltpu.MemorySpace.VMEM)

    # Pass 1: BN statistics from the input (no activation materialized).
    scale, shift = pl.pallas_call(
        functools.partial(_stats_kernel, inv_count=1.0 / float(N * HW)),
        out_shape=(jax.ShapeDtypeStruct((Cout, 1), jnp.float32),
                   jax.ShapeDtypeStruct((Cout, 1), jnp.float32)),
        in_specs=[vmem, vmem, vmem, vmem],
        out_specs=(vmem, vmem),
    )(x3, w, gamma, beta)

    # Pass 2: fused conv/BN/GELU/LRN/noise, gridded over HW chunks.  The grid
    # axis is fully parallel (stats dependency already removed), so v7x can
    # shard it across both TensorCores and BlockSpec double-buffers the DMAs.
    out3 = pl.pallas_call(
        _dp_block_kernel,
        out_shape=jax.ShapeDtypeStruct((N, Cout, hwp), jnp.float32),
        grid=(hwp // chunk,),
        in_specs=[
            pl.BlockSpec((N, Cin, chunk), lambda i: (0, 0, i)),
            pl.BlockSpec((Cout, Cin), lambda i: (0, 0)),
            pl.BlockSpec((Cout, 1), lambda i: (0, 0)),
            pl.BlockSpec((Cout, 1), lambda i: (0, 0)),
            pl.BlockSpec((1, Cout, chunk), lambda i: (0, 0, i)),
        ],
        out_specs=pl.BlockSpec((N, Cout, chunk), lambda i: (0, 0, i)),
        compiler_params=pltpu.CompilerParams(
            dimension_semantics=("parallel",)),
    )(x3, w, scale, shift, noise)

    # Drop lane padding; (N, Cout, H*W) -> NCHW is a free reshape.
    return out3[:, :, :HW].reshape(N, Cout, H, W)


# ----------------------------------------------------------------------------
# Pure-JAX reference (independent layout, exact lax.erf, two-pass BN stats).
# ----------------------------------------------------------------------------
def dp_block_reference(x_nchw, conv_w, bn_gamma, bn_beta, noise_chw):
    N, Cin, H, W = x_nchw.shape
    Cout = conv_w.shape[0]
    x_pc = jnp.transpose(x_nchw, (0, 2, 3, 1)).reshape(N * H * W, Cin)
    y = x_pc @ jnp.transpose(conv_w.reshape(Cout, Cin))
    mean = jnp.mean(y, axis=0, keepdims=True)
    var = jnp.mean((y - mean) ** 2, axis=0, keepdims=True)
    y = (y - mean) / jnp.sqrt(var + 1e-5) * bn_gamma[None, :] + bn_beta[None, :]
    y = 0.5 * y * (1.0 + jax.lax.erf(y / jnp.sqrt(2.0)))
    idx = jnp.arange(Cout)
    band = (jnp.abs(idx[:, None] - idx[None, :]) <= 2).astype(jnp.float32)
    s = (y * y) @ band
    y = y / jnp.sqrt(2.0 + s)
    noise_pc = jnp.tile(noise_chw.reshape(Cout, H * W).T, (N, 1))
    y = y + noise_pc
    return jnp.transpose(y.reshape(N, H, W, Cout), (0, 3, 1, 2))


if __name__ == "__main__":
    # Spatial size must be 56x56 because the module hard-codes the noise
    # tensor as (out_c, 56, 56).
    N, in_c, out_c, H, W = 2, 4, 8, 56, 56

    key = jax.random.PRNGKey(0)
    kx, kw, kg, kb, kn = jax.random.split(key, 5)

    x = jax.random.normal(kx, (N, in_c, H, W), dtype=jnp.float32)

    # Conv2d weight (out_c, in_c, 1, 1), deterministic kaiming-uniform-like init
    bound = 1.0 / math.sqrt(in_c)
    conv_w = jax.random.uniform(kw, (out_c, in_c, 1, 1), jnp.float32,
                                minval=-bound, maxval=bound)

    # BatchNorm affine params (non-trivial but deterministic)
    bn_gamma = 1.0 + 0.1 * jax.random.normal(kg, (out_c,), jnp.float32)
    bn_beta = 0.1 * jax.random.normal(kb, (out_c,), jnp.float32)

    # DP Gaussian noise, std from the module's formula.
    # TODO(synk): the module re-samples this noise every forward; it is sampled
    # here with jax.random and passed in (in-kernel pltpu.prng_* would also do).
    variance = 2 * math.log(1.25 / 0.0001) * (1 / math.sqrt(2)) ** 2 / 3 ** 2
    std = math.sqrt(variance)
    noise = std * jax.random.normal(kn, (out_c, H, W), jnp.float32)

    out = jax.block_until_ready(
        dp_block_forward(x, conv_w, bn_gamma, bn_beta, noise))

    ref = dp_block_reference(x, conv_w, bn_gamma, bn_beta, noise)
    np.testing.assert_allclose(np.asarray(out), np.asarray(ref),
                               rtol=2e-3, atol=2e-3)
    assert out.shape == (N, out_c, H, W)

    print("KERNEL_OK")
</pallas_src>

<mosaic_0001>
module attributes {stable_mosaic.version = 11 : i64} {
  func.func @_stats_kernel(%arg0: memref<2x4x3200xf32, #tpu.memory_space<vmem>>, %arg1: memref<8x4xf32, #tpu.memory_space<vmem>>, %arg2: memref<8x1xf32, #tpu.memory_space<vmem>>, %arg3: memref<8x1xf32, #tpu.memory_space<vmem>>, %arg4: memref<8x1xf32, #tpu.memory_space<vmem>>, %arg5: memref<8x1xf32, #tpu.memory_space<vmem>>) attributes {dimension_semantics = [], scalar_prefetch = 0 : i64, scratch_operands = 0 : i64, tpu.core_type = #tpu.core_type<tc>} {
    %c0 = arith.constant 0 : index
    %c0_0 = arith.constant 0 : index
    %0 = vector.load %arg1[%c0, %c0_0] : memref<8x4xf32, #tpu.memory_space<vmem>>, vector<8x4xf32>
    %cst = arith.constant 1.000000e+00 : f32
    %1 = vector.broadcast %cst : f32 to vector<1x3200xf32>
    %cst_1 = arith.constant 0.000000e+00 : f32
    %2 = vector.broadcast %cst_1 : f32 to vector<5x5xf32>
    %c0_2 = arith.constant 0 : index
    %c0_3 = arith.constant 0 : index
    %c0_4 = arith.constant 0 : index
    %3 = vector.load %arg0[%c0_2, %c0_3, %c0_4] : memref<2x4x3200xf32, #tpu.memory_space<vmem>>, vector<1x4x3200xf32>
    %4 = vector.shape_cast %3 : vector<1x4x3200xf32> to vector<4x3200xf32>
    %5 = tpu.concatenate %4, %1 in 0 : vector<4x3200xf32>, vector<1x3200xf32> -> vector<5x3200xf32>
    %cst_5 = arith.constant dense<0.000000e+00> : vector<5x5xf32>
    %6 = tpu.matmul %5, %5, %cst_5 {dimension_numbers = #tpu.dot_dimension_numbers<[1], [1], [0], [0], [0, 0, 1, 0], [], []>} : vector<5x3200xf32>, vector<5x3200xf32>, vector<5x5xf32> -> vector<5x5xf32>
    %7 = arith.addf %2, %6 : vector<5x5xf32>
    %c1 = arith.constant 1 : index
    %c0_6 = arith.constant 0 : index
    %c0_7 = arith.constant 0 : index
    %8 = vector.load %arg0[%c1, %c0_6, %c0_7] : memref<2x4x3200xf32, #tpu.memory_space<vmem>>, vector<1x4x3200xf32>
    %9 = vector.shape_cast %8 : vector<1x4x3200xf32> to vector<4x3200xf32>
    %10 = tpu.concatenate %9, %1 in 0 : vector<4x3200xf32>, vector<1x3200xf32> -> vector<5x3200xf32>
    %cst_8 = arith.constant dense<0.000000e+00> : vector<5x5xf32>
    %11 = tpu.matmul %10, %10, %cst_8 {dimension_numbers = #tpu.dot_dimension_numbers<[1], [1], [0], [0], [0, 0, 1, 0], [], []>} : vector<5x3200xf32>, vector<5x3200xf32>, vector<5x5xf32> -> vector<5x5xf32>
    %12 = arith.addf %7, %11 : vector<5x5xf32>
    %13 = vector.extract_strided_slice %12 {offsets = [0, 0], sizes = [4, 4], strides = [1, 1]} : vector<5x5xf32> to vector<4x4xf32>
    %14 = vector.extract_strided_slice %12 {offsets = [4, 0], sizes = [1, 4], strides = [1, 1]} : vector<5x5xf32> to vector<1x4xf32>
    %15 = vector.broadcast %14 : vector<1x4xf32> to vector<8x4xf32>
    %16 = arith.mulf %0, %15 : vector<8x4xf32>
    %cst_9 = arith.constant dense<0.000000e+00> : vector<8xf32>
    %17 = vector.multi_reduction <add>, %16, %cst_9 [1] : vector<8x4xf32> to vector<8xf32>
    %18 = vector.shape_cast %17 : vector<8xf32> to vector<8x1xf32>
    %cst_10 = arith.constant dense<0.000000e+00> : vector<8x4xf32>
    %19 = tpu.matmul %0, %13, %cst_10 {dimension_numbers = #tpu.dot_dimension_numbers<[1], [0], [0], [1], [0, 0, 1, 1], [], []>} : vector<8x4xf32>, vector<4x4xf32>, vector<8x4xf32> -> vector<8x4xf32>
    %20 = arith.mulf %19, %0 : vector<8x4xf32>
    %cst_11 = arith.constant dense<0.000000e+00> : vector<8xf32>
    %21 = vector.multi_reduction <add>, %20, %cst_11 [1] : vector<8x4xf32> to vector<8xf32>
    %22 = vector.shape_cast %21 : vector<8xf32> to vector<8x1xf32>
    %cst_12 = arith.constant 1.59438772E-4 : f32
    %23 = vector.broadcast %cst_12 : f32 to vector<8x1xf32>
    %24 = arith.mulf %18, %23 : vector<8x1xf32>
    %cst_13 = arith.constant 1.59438772E-4 : f32
    %25 = vector.broadcast %cst_13 : f32 to vector<8x1xf32>
    %26 = arith.mulf %22, %25 : vector<8x1xf32>
    %27 = arith.mulf %24, %24 : vector<8x1xf32>
    %28 = arith.subf %26, %27 : vector<8x1xf32>
    %cst_14 = arith.constant 0.000000e+00 : f32
    %29 = vector.broadcast %cst_14 : f32 to vector<8x1xf32>
    %30 = arith.maximumf %28, %29 : vector<8x1xf32>
    %c0_15 = arith.constant 0 : index
    %c0_16 = arith.constant 0 : index
    %31 = vector.load %arg2[%c0_15, %c0_16] : memref<8x1xf32, #tpu.memory_space<vmem>>, vector<8x1xf32>
    %cst_17 = arith.constant 9.99999974E-6 : f32
    %32 = vector.broadcast %cst_17 : f32 to vector<8x1xf32>
    %33 = arith.addf %30, %32 : vector<8x1xf32>
    %34 = math.rsqrt %33 : vector<8x1xf32>
    %35 = arith.mulf %31, %34 : vector<8x1xf32>
    %c0_18 = arith.constant 0 : index
    %c0_19 = arith.constant 0 : index
    %36 = vector.load %arg3[%c0_18, %c0_19] : memref<8x1xf32, #tpu.memory_space<vmem>>, vector<8x1xf32>
    %37 = arith.mulf %24, %35 : vector<8x1xf32>
    %38 = arith.subf %36, %37 : vector<8x1xf32>
    %c0_20 = arith.constant 0 : index
    %c0_21 = arith.constant 0 : index
    %39 = vector.load %arg4[%c0_20, %c0_21] : memref<8x1xf32, #tpu.memory_space<vmem>>, vector<8x1xf32>
    tpu.vector_store %arg4[%c0_20, %c0_21], %35 {strides = array<i32>} : memref<8x1xf32, #tpu.memory_space<vmem>>, vector<8x1xf32>,
    %c0_22 = arith.constant 0 : index
    %c0_23 = arith.constant 0 : index
    %40 = vector.load %arg5[%c0_22, %c0_23] : memref<8x1xf32, #tpu.memory_space<vmem>>, vector<8x1xf32>
    tpu.vector_store %arg5[%c0_22, %c0_23], %38 {strides = array<i32>} : memref<8x1xf32, #tpu.memory_space<vmem>>, vector<8x1xf32>,
    return
  }
}

module attributes {stable_mosaic.version = 11 : i64} {
  func.func @_dp_block_kernel(%arg0: i32, %arg1: memref<2x4x640xf32, #tpu.memory_space<vmem>>, %arg2: memref<8x4xf32, #tpu.memory_space<vmem>>, %arg3: memref<8x1xf32, #tpu.memory_space<vmem>>, %arg4: memref<8x1xf32, #tpu.memory_space<vmem>>, %arg5: memref<1x8x640xf32, #tpu.memory_space<vmem>>, %arg6: memref<2x8x640xf32, #tpu.memory_space<vmem>>) attributes {dimension_semantics = [#tpu.dimension_semantics<parallel>], iteration_bounds = array<i64: 5>, scalar_prefetch = 0 : i64, scratch_operands = 0 : i64, tpu.core_type = #tpu.core_type<tc>, window_params = [{transform_indices = @transform_0, window_bounds = array<i64: 2, 4, 640>}, {pipeline_mode = #tpu.pipeline_mode<synchronous>, transform_indices = @transform_1, window_bounds = array<i64: 8, 4>}, {pipeline_mode = #tpu.pipeline_mode<synchronous>, transform_indices = @transform_2, window_bounds = array<i64: 8, 1>}, {pipeline_mode = #tpu.pipeline_mode<synchronous>, transform_indices = @transform_3, window_bounds = array<i64: 8, 1>}, {transform_indices = @transform_4, window_bounds = array<i64: 1, 8, 640>}, {transform_indices = @transform_5, window_bounds = array<i64: 2, 8, 640>}]} {
    %c0 = arith.constant 0 : index
    %c0_0 = arith.constant 0 : index
    %0 = vector.load %arg2[%c0, %c0_0] : memref<8x4xf32, #tpu.memory_space<vmem>>, vector<8x4xf32>
    %c0_1 = arith.constant 0 : index
    %c0_2 = arith.constant 0 : index
    %1 = vector.load %arg3[%c0_1, %c0_2] : memref<8x1xf32, #tpu.memory_space<vmem>>, vector<8x1xf32>
    %c0_3 = arith.constant 0 : index
    %c0_4 = arith.constant 0 : index
    %2 = vector.load %arg4[%c0_3, %c0_4] : memref<8x1xf32, #tpu.memory_space<vmem>>, vector<8x1xf32>
    %c0_5 = arith.constant 0 : index
    %c0_6 = arith.constant 0 : index
    %c0_7 = arith.constant 0 : index
    %3 = vector.load %arg5[%c0_5, %c0_6, %c0_7] : memref<1x8x640xf32, #tpu.memory_space<vmem>>, vector<1x8x640xf32>
    %4 = vector.shape_cast %3 : vector<1x8x640xf32> to vector<8x640xf32>
    %5 = tpu.iota {dimensions = array<i32: 0>} : vector<8x8xi32>
    %6 = tpu.iota {dimensions = array<i32: 1>} : vector<8x8xi32>
    %7 = arith.subi %5, %6 : vector<8x8xi32>
    %8 = math.absi %7 : vector<8x8xi32>
    %c2_i32 = arith.constant 2 : i32
    %9 = vector.broadcast %c2_i32 : i32 to vector<8x8xi32>
    %10 = arith.cmpi sle, %8, %9 : vector<8x8xi32>
    %11 = arith.extui %10 : vector<8x8xi1> to vector<8x8xi32>
    %12 = arith.sitofp %11 : vector<8x8xi32> to vector<8x8xf32>
    %c0_8 = arith.constant 0 : index
    %c0_9 = arith.constant 0 : index
    %c0_10 = arith.constant 0 : index
    %13 = vector.load %arg1[%c0_8, %c0_9, %c0_10] : memref<2x4x640xf32, #tpu.memory_space<vmem>>, vector<1x4x640xf32>
    %14 = vector.shape_cast %13 : vector<1x4x640xf32> to vector<4x640xf32>
    %cst = arith.constant dense<0.000000e+00> : vector<8x640xf32>
    %15 = tpu.matmul %0, %14, %cst {dimension_numbers = #tpu.dot_dimension_numbers<[1], [0], [0], [1], [0, 0, 1, 1], [], []>} : vector<8x4xf32>, vector<4x640xf32>, vector<8x640xf32> -> vector<8x640xf32>
    %16 = vector.broadcast %1 : vector<8x1xf32> to vector<8x640xf32>
    %17 = arith.mulf %15, %16 : vector<8x640xf32>
    %18 = vector.broadcast %2 : vector<8x1xf32> to vector<8x640xf32>
    %19 = arith.addf %17, %18 : vector<8x640xf32>
    %cst_11 = arith.constant 5.000000e-01 : f32
    %20 = vector.broadcast %cst_11 : f32 to vector<8x640xf32>
    %21 = arith.mulf %20, %19 : vector<8x640xf32>
    %cst_12 = arith.constant 0.707106769 : f32
    %22 = vector.broadcast %cst_12 : f32 to vector<8x640xf32>
    %23 = arith.mulf %19, %22 : vector<8x640xf32>
    %cst_13 = arith.constant 0.000000e+00 : f32
    %24 = vector.broadcast %cst_13 : f32 to vector<8x640xf32>
    %25 = arith.cmpf oge, %23, %24 : vector<8x640xf32>
    %cst_14 = arith.constant 1.000000e+00 : f32
    %cst_15 = arith.constant -1.000000e+00 : f32
    %26 = vector.broadcast %cst_14 : f32 to vector<8x640xf32>
    %27 = vector.broadcast %cst_15 : f32 to vector<8x640xf32>
    %28 = arith.select %25, %26, %27 : vector<8x640xi1>, vector<8x640xf32>
    %29 = math.absf %23 : vector<8x640xf32>
    %cst_16 = arith.constant 0.327591091 : f32
    %30 = vector.broadcast %cst_16 : f32 to vector<8x640xf32>
    %31 = arith.mulf %30, %29 : vector<8x640xf32>
    %cst_17 = arith.constant 1.000000e+00 : f32
    %32 = vector.broadcast %cst_17 : f32 to vector<8x640xf32>
    %33 = arith.addf %32, %31 : vector<8x640xf32>
    %34 = tpu.reciprocal %33 {approx = true} : vector<8x640xf32> -> vector<8x640xf32>
    %cst_18 = arith.constant 1.06140542 : f32
    %35 = vector.broadcast %cst_18 : f32 to vector<8x640xf32>
    %36 = arith.mulf %35, %34 : vector<8x640xf32>
    %cst_19 = arith.constant -1.45315206 : f32
    %37 = vector.broadcast %cst_19 : f32 to vector<8x640xf32>
    %38 = arith.addf %36, %37 : vector<8x640xf32>
    %39 = arith.mulf %38, %34 : vector<8x640xf32>
    %cst_20 = arith.constant 1.42141378 : f32
    %40 = vector.broadcast %cst_20 : f32 to vector<8x640xf32>
    %41 = arith.addf %39, %40 : vector<8x640xf32>
    %42 = arith.mulf %41, %34 : vector<8x640xf32>
    %cst_21 = arith.constant -0.284496725 : f32
    %43 = vector.broadcast %cst_21 : f32 to vector<8x640xf32>
    %44 = arith.addf %42, %43 : vector<8x640xf32>
    %45 = arith.mulf %44, %34 : vector<8x640xf32>
    %cst_22 = arith.constant 0.254829586 : f32
    %46 = vector.broadcast %cst_22 : f32 to vector<8x640xf32>
    %47 = arith.addf %45, %46 : vector<8x640xf32>
    %48 = arith.mulf %47, %34 : vector<8x640xf32>
    %cst_23 = arith.constant 0.000000e+00 : f32
    %49 = vector.broadcast %cst_23 : f32 to vector<8x640xf32>
    %50 = arith.subf %49, %29 : vector<8x640xf32>
    %51 = arith.mulf %50, %29 : vector<8x640xf32>
    %52 = math.exp %51 : vector<8x640xf32>
    %53 = arith.mulf %48, %52 : vector<8x640xf32>
    %cst_24 = arith.constant 1.000000e+00 : f32
    %54 = vector.broadcast %cst_24 : f32 to vector<8x640xf32>
    %55 = arith.subf %54, %53 : vector<8x640xf32>
    %56 = arith.mulf %28, %55 : vector<8x640xf32>
    %cst_25 = arith.constant 1.000000e+00 : f32
    %57 = vector.broadcast %cst_25 : f32 to vector<8x640xf32>
    %58 = arith.addf %57, %56 : vector<8x640xf32>
    %59 = arith.mulf %21, %58 : vector<8x640xf32>
    %60 = arith.mulf %59, %59 : vector<8x640xf32>
    %cst_26 = arith.constant dense<0.000000e+00> : vector<8x640xf32>
    %61 = tpu.matmul %12, %60, %cst_26 {dimension_numbers = #tpu.dot_dimension_numbers<[1], [0], [0], [1], [0, 0, 1, 1], [], []>} : vector<8x8xf32>, vector<8x640xf32>, vector<8x640xf32> -> vector<8x640xf32>
    %cst_27 = arith.constant 2.000000e+00 : f32
    %62 = vector.broadcast %cst_27 : f32 to vector<8x640xf32>
    %63 = arith.addf %62, %61 : vector<8x640xf32>
    %64 = math.rsqrt %63 : vector<8x640xf32>
    %65 = arith.mulf %59, %64 : vector<8x640xf32>
    %66 = arith.addf %65, %4 : vector<8x640xf32>
    %c0_28 = arith.constant 0 : index
    %c0_29 = arith.constant 0 : index
    %c0_30 = arith.constant 0 : index
    %67 = vector.load %arg6[%c0_28, %c0_29, %c0_30] : memref<2x8x640xf32, #tpu.memory_space<vmem>>, vector<1x8x640xf32>
    %68 = vector.shape_cast %67 : vector<1x8x640xf32> to vector<8x640xf32>
    %69 = vector.shape_cast %66 : vector<8x640xf32> to vector<1x8x640xf32>
    tpu.vector_store %arg6[%c0_28, %c0_29, %c0_30], %69 {strides = array<i32>} : memref<2x8x640xf32, #tpu.memory_space<vmem>>, vector<1x8x640xf32>,
    %c1 = arith.constant 1 : index
    %c0_31 = arith.constant 0 : index
    %c0_32 = arith.constant 0 : index
    %70 = vector.load %arg1[%c1, %c0_31, %c0_32] : memref<2x4x640xf32, #tpu.memory_space<vmem>>, vector<1x4x640xf32>
    %71 = vector.shape_cast %70 : vector<1x4x640xf32> to vector<4x640xf32>
    %cst_33 = arith.constant dense<0.000000e+00> : vector<8x640xf32>
    %72 = tpu.matmul %0, %71, %cst_33 {dimension_numbers = #tpu.dot_dimension_numbers<[1], [0], [0], [1], [0, 0, 1, 1], [], []>} : vector<8x4xf32>, vector<4x640xf32>, vector<8x640xf32> -> vector<8x640xf32>
    %73 = vector.broadcast %1 : vector<8x1xf32> to vector<8x640xf32>
    %74 = arith.mulf %72, %73 : vector<8x640xf32>
    %75 = vector.broadcast %2 : vector<8x1xf32> to vector<8x640xf32>
    %76 = arith.addf %74, %75 : vector<8x640xf32>
    %cst_34 = arith.constant 5.000000e-01 : f32
    %77 = vector.broadcast %cst_34 : f32 to vector<8x640xf32>
    %78 = arith.mulf %77, %76 : vector<8x640xf32>
    %cst_35 = arith.constant 0.707106769 : f32
    %79 = vector.broadcast %cst_35 : f32 to vector<8x640xf32>
    %80 = arith.mulf %76, %79 : vector<8x640xf32>
    %cst_36 = arith.constant 0.000000e+00 : f32
    %81 = vector.broadcast %cst_36 : f32 to vector<8x640xf32>
    %82 = arith.cmpf oge, %80, %81 : vector<8x640xf32>
    %cst_37 = arith.constant 1.000000e+00 : f32
    %cst_38 = arith.constant -1.000000e+00 : f32
    %83 = vector.broadcast %cst_37 : f32 to vector<8x640xf32>
    %84 = vector.broadcast %cst_38 : f32 to vector<8x640xf32>
    %85 = arith.select %82, %83, %84 : vector<8x640xi1>, vector<8x640xf32>
    %86 = math.absf %80 : vector<8x640xf32>
    %cst_39 = arith.constant 0.327591091 : f32
    %87 = vector.broadcast %cst_39 : f32 to vector<8x640xf32>
    %88 = arith.mulf %87, %86 : vector<8x640xf32>
    %cst_40 = arith.constant 1.000000e+00 : f32
    %89 = vector.broadcast %cst_40 : f32 to vector<8x640xf32>
    %90 = arith.addf %89, %88 : vector<8x640xf32>
    %91 = tpu.reciprocal %90 {approx = true} : vector<8x640xf32> -> vector<8x640xf32>
    %cst_41 = arith.constant 1.06140542 : f32
    %92 = vector.broadcast %cst_41 : f32 to vector<8x640xf32>
    %93 = arith.mulf %92, %91 : vector<8x640xf32>
    %cst_42 = arith.constant -1.45315206 : f32
    %94 = vector.broadcast %cst_42 : f32 to vector<8x640xf32>
    %95 = arith.addf %93, %94 : vector<8x640xf32>
    %96 = arith.mulf %95, %91 : vector<8x640xf32>
    %cst_43 = arith.constant 1.42141378 : f32
    %97 = vector.broadcast %cst_43 : f32 to vector<8x640xf32>
    %98 = arith.addf %96, %97 : vector<8x640xf32>
    %99 = arith.mulf %98, %91 : vector<8x640xf32>
    %cst_44 = arith.constant -0.284496725 : f32
    %100 = vector.broadcast %cst_44 : f32 to vector<8x640xf32>
    %101 = arith.addf %99, %100 : vector<8x640xf32>
    %102 = arith.mulf %101, %91 : vector<8x640xf32>
    %cst_45 = arith.constant 0.254829586 : f32
    %103 = vector.broadcast %cst_45 : f32 to vector<8x640xf32>
    %104 = arith.addf %102, %103 : vector<8x640xf32>
    %105 = arith.mulf %104, %91 : vector<8x640xf32>
    %cst_46 = arith.constant 0.000000e+00 : f32
    %106 = vector.broadcast %cst_46 : f32 to vector<8x640xf32>
    %107 = arith.subf %106, %86 : vector<8x640xf32>
    %108 = arith.mulf %107, %86 : vector<8x640xf32>
    %109 = math.exp %108 : vector<8x640xf32>
    %110 = arith.mulf %105, %109 : vector<8x640xf32>
    %cst_47 = arith.constant 1.000000e+00 : f32
    %111 = vector.broadcast %cst_47 : f32 to vector<8x640xf32>
    %112 = arith.subf %111, %110 : vector<8x640xf32>
    %113 = arith.mulf %85, %112 : vector<8x640xf32>
    %cst_48 = arith.constant 1.000000e+00 : f32
    %114 = vector.broadcast %cst_48 : f32 to vector<8x640xf32>
    %115 = arith.addf %114, %113 : vector<8x640xf32>
    %116 = arith.mulf %78, %115 : vector<8x640xf32>
    %117 = arith.mulf %116, %116 : vector<8x640xf32>
    %cst_49 = arith.constant dense<0.000000e+00> : vector<8x640xf32>
    %118 = tpu.matmul %12, %117, %cst_49 {dimension_numbers = #tpu.dot_dimension_numbers<[1], [0], [0], [1], [0, 0, 1, 1], [], []>} : vector<8x8xf32>, vector<8x640xf32>, vector<8x640xf32> -> vector<8x640xf32>
    %cst_50 = arith.constant 2.000000e+00 : f32
    %119 = vector.broadcast %cst_50 : f32 to vector<8x640xf32>
    %120 = arith.addf %119, %118 : vector<8x640xf32>
    %121 = math.rsqrt %120 : vector<8x640xf32>
    %122 = arith.mulf %116, %121 : vector<8x640xf32>
    %123 = arith.addf %122, %4 : vector<8x640xf32>
    %c1_51 = arith.constant 1 : index
    %c0_52 = arith.constant 0 : index
    %c0_53 = arith.constant 0 : index
    %124 = vector.load %arg6[%c1_51, %c0_52, %c0_53] : memref<2x8x640xf32, #tpu.memory_space<vmem>>, vector<1x8x640xf32>
    %125 = vector.shape_cast %124 : vector<1x8x640xf32> to vector<8x640xf32>
    %126 = vector.shape_cast %123 : vector<8x640xf32> to vector<1x8x640xf32>
    tpu.vector_store %arg6[%c1_51, %c0_52, %c0_53], %126 {strides = array<i32>} : memref<2x8x640xf32, #tpu.memory_space<vmem>>, vector<1x8x640xf32>,
    return
  }
  func.func @transform_0(%arg0: i32) -> (i32, i32, i32) {
    %c0_i32 = arith.constant 0 : i32
    %c0_i32_0 = arith.constant 0 : i32
    %c0_i32_1 = arith.constant 0 : i32
    return %c0_i32, %c0_i32_0, %arg0 : i32, i32, i32
  }
  func.func @transform_1(%arg0: i32) -> (i32, i32) {
    %c0_i32 = arith.constant 0 : i32
    %c0_i32_0 = arith.constant 0 : i32
    %c0_i32_1 = arith.constant 0 : i32
    return %c0_i32, %c0_i32_0 : i32, i32
  }
  func.func @transform_2(%arg0: i32) -> (i32, i32) {
    %c0_i32 = arith.constant 0 : i32
    %c0_i32_0 = arith.constant 0 : i32
    %c0_i32_1 = arith.constant 0 : i32
    return %c0_i32, %c0_i32_0 : i32, i32
  }
  func.func @transform_3(%arg0: i32) -> (i32, i32) {
    %c0_i32 = arith.constant 0 : i32
    %c0_i32_0 = arith.constant 0 : i32
    %c0_i32_1 = arith.constant 0 : i32
    return %c0_i32, %c0_i32_0 : i32, i32
  }
  func.func @transform_4(%arg0: i32) -> (i32, i32, i32) {
    %c0_i32 = arith.constant 0 : i32
    %c0_i32_0 = arith.constant 0 : i32
    %c0_i32_1 = arith.constant 0 : i32
    return %c0_i32, %c0_i32_0, %arg0 : i32, i32, i32
  }
  func.func @transform_5(%arg0: i32) -> (i32, i32, i32) {
    %c0_i32 = arith.constant 0 : i32
    %c0_i32_0 = arith.constant 0 : i32
    %c0_i32_1 = arith.constant 0 : i32
    return %c0_i32, %c0_i32_0, %arg0 : i32, i32, i32
  }
}

</mosaic_0001>

<llo_original>
// kernel: dp_block_forward.3
$region0: #{dp_block_forward.3}
  #allocation0 [shape = 'u32[]', space=smem, size = 0x4, offset = 0x4, fixed_abs, tag = 'smem constant byte address 0x4 - core index']
  #allocation1 [shape = 'u32[144,128]{1,0:T(1,128)}', space=vmem, size = 0x12000, scoped, tag = 'internal scratch']
  %s0 = inlined_call_operand.vmem [shape: f32[2,4,3200], index: 0, kind: input, shape index: {}]
  %s1 = inlined_call_operand.vmem [shape: f32[8,4], index: 1, kind: input, shape index: {}]
  %s2 = inlined_call_operand.vmem [shape: f32[8,1], index: 2, kind: input, shape index: {}]
  %s3 = inlined_call_operand.vmem [shape: f32[8,1], index: 3, kind: input, shape index: {}]
  %s4 = inlined_call_operand.vmem [shape: f32[1,8,3200], index: 4, kind: input, shape index: {}]
  %s5 = inlined_call_operand.vmem [shape: f32[2,8,3200], index: 5, kind: output, shape index: {}]
  %s6 = sld [smem:[#allocation0]]
  $region98: #{dp_block_forward.3} parent=0
    _
  %s8 = ssub.s32 1, %s6
  %s9 = scalar_select 0, %s8, %s6
  $region1: #{dp_block_forward.3} parent=0
    #allocation2 [shape = 'u8[40960]{0}', space=vmem, size = 0xa000, scoped, tag = 'input window, operand 0']
    #allocation3 [shape = 'u8[81920]{0}', space=vmem, size = 0x14000, scoped, tag = 'output window, operand 0']
    loop: start=0, step=1, limit=7
    $region2: #{dp_block_forward.3} parent=1 // loop_pre_header
      _
    $region3: #{dp_block_forward.3} parent=1 // loop_header
      %s11 = sphi 0, %s15
      %p12 = scmp.ge.s32.totalorder %s11, 7
      %s21 = sphi 0, %s23
      %s24 = sphi 0, %s21
      %s25 = sphi 0, %s24
      %s41 = sphi 0, %s25
      %s45 = sphi 0, %s45
      %s47 = sphi 0, %s45
      %s48 = sphi 0, %s47
      %s62 = sphi 0, %s48
      %s66 = sphi 0, %s66
      %s68 = sphi 0, %s66
      %s69 = sphi 0, %s68
      %s83 = sphi 0, %s69
      %s87 = sphi 0, %s87
      %s89 = sphi 0, %s87
      %s90 = sphi 0, %s89
      %s104 = sphi 0, %s90
      %s110 = sphi 0, %s112
      %s113 = sphi 0, %s110
      %s114 = sphi 0, %s113
      %s130 = sphi 0, %s114
      %s136 = sphi 0, %s138
      %s139 = sphi 0, %s136
      %s140 = sphi 0, %s139
      %s156 = sphi 0, %s140
    $region4: #{dp_block_forward.3} parent=1 // loop_header_branch
      %14 = sbr.rel (%p12) target = $region8
    $region5: #{dp_block_forward.3} parent=1 // loop_body
      %s16 = ssub.s32 %s11, 1
      %s17 = ssub.s32 %s11, 2
      %s18 = sadd.s32 %s11, 1
      %s19 = ssub.s32 %s11, %s18
      %p20 = scmp.eq.s32.totalorder %s19, 0
      %s22 = sadd.s32 %s21, 1
      %s23 = scalar_select %p20, %s21, %s22
      %p26 = pneg %p20
      %p27 = scmp.eq.s32.totalorder %s11, 4
      %p28 = por %p26, %p27
      %p29 = scmp.ne.s32.totalorder %s21, %s24
      %p30 = scmp.eq.s32.totalorder %s11, 0
      %p31 = por %p29, %p30
      %p32 = scmp.ne.s32.totalorder %s21, %s24
      %p33 = scmp.eq.s32.totalorder %s16, 4
      %p34 = por %p32, %p33
      %p35 = scmp.ne.s32.totalorder %s24, %s25
      %p36 = scmp.eq.s32.totalorder %s16, 0
      %p37 = por %p35, %p36
      %p38 = scmp.ne.s32.totalorder %s24, %s25
      %p39 = scmp.eq.s32.totalorder %s17, 4
      %p40 = por %p38, %p39
      %p42 = scmp.ne.s32.totalorder %s25, %s41
      %p43 = scmp.eq.s32.totalorder %s17, 0
      %p44 = por %p42, %p43
      %s46 = sadd.s32 %s45, 1
      %p49 = scmp.eq.s32.totalorder %s11, 4
      %p50 = scmp.ne.s32.totalorder %s45, %s47
      %p51 = scmp.eq.s32.totalorder %s11, 0
      %p52 = por %p50, %p51
      %p53 = scmp.ne.s32.totalorder %s45, %s47
      %p54 = scmp.eq.s32.totalorder %s16, 4
      %p55 = por %p53, %p54
      %p56 = scmp.ne.s32.totalorder %s47, %s48
      %p57 = scmp.eq.s32.totalorder %s16, 0
      %p58 = por %p56, %p57
      %p59 = scmp.ne.s32.totalorder %s47, %s48
      %p60 = scmp.eq.s32.totalorder %s17, 4
      %p61 = por %p59, %p60
      %p63 = scmp.ne.s32.totalorder %s48, %s62
      %p64 = scmp.eq.s32.totalorder %s17, 0
      %p65 = por %p63, %p64
      %s67 = sadd.s32 %s66, 1
      %p70 = scmp.eq.s32.totalorder %s11, 4
      %p71 = scmp.ne.s32.totalorder %s66, %s68
      %p72 = scmp.eq.s32.totalorder %s11, 0
      %p73 = por %p71, %p72
      %p74 = scmp.ne.s32.totalorder %s66, %s68
      %p75 = scmp.eq.s32.totalorder %s16, 4
      %p76 = por %p74, %p75
      %p77 = scmp.ne.s32.totalorder %s68, %s69
      %p78 = scmp.eq.s32.totalorder %s16, 0
      %p79 = por %p77, %p78
      %p80 = scmp.ne.s32.totalorder %s68, %s69
      %p81 = scmp.eq.s32.totalorder %s17, 4
      %p82 = por %p80, %p81
      %p84 = scmp.ne.s32.totalorder %s69, %s83
      %p85 = scmp.eq.s32.totalorder %s17, 0
      %p86 = por %p84, %p85
      %s88 = sadd.s32 %s87, 1
      %p91 = scmp.eq.s32.totalorder %s11, 4
      %p92 = scmp.ne.s32.totalorder %s87, %s89
      %p93 = scmp.eq.s32.totalorder %s11, 0
      %p94 = por %p92, %p93
      %p95 = scmp.ne.s32.totalorder %s87, %s89
      %p96 = scmp.eq.s32.totalorder %s16, 4
      %p97 = por %p95, %p96
      %p98 = scmp.ne.s32.totalorder %s89, %s90
      %p99 = scmp.eq.s32.totalorder %s16, 0
      %p100 = por %p98, %p99
      %p101 = scmp.ne.s32.totalorder %s89, %s90
      %p102 = scmp.eq.s32.totalorder %s17, 4
      %p103 = por %p101, %p102
      %p105 = scmp.ne.s32.totalorder %s90, %s104
      %p106 = scmp.eq.s32.totalorder %s17, 0
      %p107 = por %p105, %p106
      %s108 = ssub.s32 %s11, %s18
      %p109 = scmp.eq.s32.totalorder %s108, 0
      %s111 = sadd.s32 %s110, 1
      %s112 = scalar_select %p109, %s110, %s111
      %p115 = pneg %p109
      %p116 = scmp.eq.s32.totalorder %s11, 4
      %p117 = por %p115, %p116
      %p118 = scmp.ne.s32.totalorder %s110, %s113
      %p119 = scmp.eq.s32.totalorder %s11, 0
      %p120 = por %p118, %p119
      %p121 = scmp.ne.s32.totalorder %s110, %s113
      %p122 = scmp.eq.s32.totalorder %s16, 4
      %p123 = por %p121, %p122
      %p124 = scmp.ne.s32.totalorder %s113, %s114
      %p125 = scmp.eq.s32.totalorder %s16, 0
      %p126 = por %p124, %p125
      %p127 = scmp.ne.s32.totalorder %s113, %s114
      %p128 = scmp.eq.s32.totalorder %s17, 4
      %p129 = por %p127, %p128
      %p131 = scmp.ne.s32.totalorder %s114, %s130
      %p132 = scmp.eq.s32.totalorder %s17, 0
      %p133 = por %p131, %p132
      %s134 = ssub.s32 %s11, %s18
      %p135 = scmp.eq.s32.totalorder %s134, 0
      %s137 = sadd.s32 %s136, 1
      %s138 = scalar_select %p135, %s136, %s137
      %p141 = pneg %p135
      %p142 = scmp.eq.s32.totalorder %s11, 4
      %p143 = por %p141, %p142
      %p144 = scmp.ne.s32.totalorder %s136, %s139
      %p145 = scmp.eq.s32.totalorder %s11, 0
      %p146 = por %p144, %p145
      %p147 = scmp.ne.s32.totalorder %s136, %s139
      %p148 = scmp.eq.s32.totalorder %s16, 4
      %p149 = por %p147, %p148
      %p150 = scmp.ne.s32.totalorder %s139, %s140
      %p151 = scmp.eq.s32.totalorder %s16, 0
      %p152 = por %p150, %p151
      %p153 = scmp.ne.s32.totalorder %s139, %s140
      %p154 = scmp.eq.s32.totalorder %s17, 4
      %p155 = por %p153, %p154
      %p157 = scmp.ne.s32.totalorder %s140, %s156
      %p158 = scmp.eq.s32.totalorder %s17, 0
      %p159 = por %p157, %p158
      %p160 = scmp.le.s32.totalorder 1, %s11
      %p161 = scmp.lt.s32.totalorder %s11, 6
      %p162 = pnand %p160, %p161
      %p163 = pneg %p162
      // Predicated region
      $region9: #{dp_block_forward.3} parent=5 // pred_check
        _
      $region10: #{dp_block_forward.3} parent=5 // pred_check_branch
        %165 = sbr.rel (%p162) target = $region12
      $region11: #{dp_block_forward.3} parent=5 // pred_region
        %s166 = ssub.s32 %s11, 1
        // Predicated region
        $region13: #{dp_block_forward.3} parent=11 // pred_check
          %p167 = pneg %p58
        $region14: #{dp_block_forward.3} parent=11 // pred_check_branch
          %169 = sbr.rel (%p167) target = $region16
        $region15: #{dp_block_forward.3} parent=11 // pred_region
          _
        $region16: #{dp_block_forward.3} parent=11 // pred_fallthru
          _
        // Predicated region
        $region17: #{dp_block_forward.3} parent=11 // pred_check
          %p170 = pneg %p79
        $region18: #{dp_block_forward.3} parent=11 // pred_check_branch
          %172 = sbr.rel (%p170) target = $region20
        $region19: #{dp_block_forward.3} parent=11 // pred_region
          _
        $region20: #{dp_block_forward.3} parent=11 // pred_fallthru
          _
        // Predicated region
        $region21: #{dp_block_forward.3} parent=11 // pred_check
          %p173 = pneg %p100
        $region22: #{dp_block_forward.3} parent=11 // pred_check_branch
          %175 = sbr.rel (%p173) target = $region24
        $region23: #{dp_block_forward.3} parent=11 // pred_region
          _
        $region24: #{dp_block_forward.3} parent=11 // pred_fallthru
          _
      $region12: #{dp_block_forward.3} parent=5 // pred_fallthru
        _
      %p176 = scmp.lt.s32.totalorder %s11, 5
      // Predicated region
      $region25: #{dp_block_forward.3} parent=5 // pred_check
        %p177 = pneg %p176
      $region26: #{dp_block_forward.3} parent=5 // pred_check_branch
        %179 = sbr.rel (%p177) target = $region28
      $region27: #{dp_block_forward.3} parent=5 // pred_region
        // Predicated region
        $region29: #{dp_block_forward.3} parent=27 // pred_check
          %p180 = pneg %p31
        $region30: #{dp_block_forward.3} parent=27 // pred_check_branch
          %182 = sbr.rel (%p180) target = $region32
        $region31: #{dp_block_forward.3} parent=27 // pred_region
          %s183 = sand.u32 %s21, 1
          %s184 = sand.u32 %s21, 1
          %s185 = smul.addr %s184, 40
          %s186 = scalar_lea.vmem [#allocation2], %s185
          %s187 = smul.u32 5, %s11
          %s188 = smul.addr %s187, 4
          %s189 = scalar_lea.vmem %s0, %s188
          // Predicated region
          $region33: #{dp_block_forward.3} parent=31 // pred_check
            _
          $region34: #{dp_block_forward.3} parent=31 // pred_check_branch
            %191 = sbr.rel (0) target = $region36
          $region35: #{dp_block_forward.3} parent=31 // pred_region
            // Predicated region
            $region37: #{dp_block_forward.3} parent=35 // pred_check
              _
            $region38: #{dp_block_forward.3} parent=35 // pred_check_branch
              %193 = sbr.rel (0) target = $region40
            $region39: #{dp_block_forward.3} parent=35 // pred_region
              %s194 = scalar_lea.vmem %s189, 16
              %s195 = scalar_lea.vmem %s186, 16 [#allocation2]
              loop: start=0, step=1, limit=1
              $region41: #{dp_block_forward.3} parent=39 // loop_pre_header
                _
              $region42: #{dp_block_forward.3} parent=39 // loop_header
                %s197 = sphi 0, %s201
                %p198 = scmp.ge.s32.totalorder %s197, 1
                %s202 = sphi %s189, %s189
                %s203 = sphi %s186, %s186
              $region43: #{dp_block_forward.3} parent=39 // loop_header_branch
                %200 = sbr.rel (%p198) target = $region47
              $region44: #{dp_block_forward.3} parent=39 // loop_body
                %v204 = vld [vmem:[%s202] sm:$0xff]
                %205 = vst [vmem:[%s203] sm:$0xff] %v204
                %v206 = vld [vmem:[%s202 + $0x8] sm:$0xff]
                %207 = vst [vmem:[%s203 + $0x8] sm:$0xff] %v206
                %v208 = vld [vmem:[%s202 + $0x64] sm:$0xff]
                %209 = vst [vmem:[%s203 + $0x14] sm:$0xff] %v208
                %v210 = vld [vmem:[%s202 + $0x6c] sm:$0xff]
                %211 = vst [vmem:[%s203 + $0x1c] sm:$0xff] %v210
              $region45: #{dp_block_forward.3} parent=39 // loop_footer
                %s201 = sadd.s32 1, %s197
              $region46: #{dp_block_forward.3} parent=39 // loop_footer_branch
                %196 = sbr.rel target = $region42
              $region47: #{dp_block_forward.3} parent=39 // loop_exit
                _
              loop: start=0, step=1, limit=1
              $region48: #{dp_block_forward.3} parent=39 // loop_pre_header
                _
              $region49: #{dp_block_forward.3} parent=39 // loop_header
                %s214 = sphi 0, %s218
                %p215 = scmp.ge.s32.totalorder %s214, 1
                %s219 = sphi %s194, %s194
                %s220 = sphi %s195, %s195
              $region50: #{dp_block_forward.3} parent=39 // loop_header_branch
                %217 = sbr.rel (%p215) target = $region54
              $region51: #{dp_block_forward.3} parent=39 // loop_body
                %v221 = vld [vmem:[%s219] sm:$0xf]
                %222 = vst [vmem:[%s220] sm:$0xf] %v221
                %v223 = vld [vmem:[%s219 + $0x64] sm:$0xf]
                %224 = vst [vmem:[%s220 + $0x14] sm:$0xf] %v223
              $region52: #{dp_block_forward.3} parent=39 // loop_footer
                %s218 = sadd.s32 1, %s214
              $region53: #{dp_block_forward.3} parent=39 // loop_footer_branch
                %213 = sbr.rel target = $region49
              $region54: #{dp_block_forward.3} parent=39 // loop_exit
                _
            $region40: #{dp_block_forward.3} parent=35 // pred_fallthru
              _
          $region36: #{dp_block_forward.3} parent=31 // pred_fallthru
            _
          %225 = vnop
        $region32: #{dp_block_forward.3} parent=27 // pred_fallthru
          _
        // Predicated region
        $region55: #{dp_block_forward.3} parent=27 // pred_check
          %p226 = pneg %p120
        $region56: #{dp_block_forward.3} parent=27 // pred_check_branch
          %228 = sbr.rel (%p226) target = $region58
        $region57: #{dp_block_forward.3} parent=27 // pred_region
          %s229 = smul.u32 5, %s11
          %p230 = scmp.lt.s32.totalorder %s229, 24
          %s231 = scalar_select %p230, %s229, 24
          %s232 = smul.addr %s231, 8
          %s233 = scalar_lea.vmem %s4, %s232
          %s234 = smul.u32 5, %s11
        $region58: #{dp_block_forward.3} parent=27 // pred_fallthru
          _
      $region28: #{dp_block_forward.3} parent=5 // pred_fallthru
        _
      %p235 = scmp.le.s32.totalorder 1, %s11
      %p236 = scmp.lt.s32.totalorder %s11, 6
      %p237 = pnand %p235, %p236
      %p238 = pneg %p237
      // Predicated region
      $region59: #{dp_block_forward.3} parent=5 // pred_check
        _
      $region60: #{dp_block_forward.3} parent=5 // pred_check_branch
        %240 = sbr.rel (%p237) target = $region62
      $region61: #{dp_block_forward.3} parent=5 // pred_region
        %s241 = ssub.s32 %s11, 1
        %s242 = sand.u32 %s24, 1
        %s243 = sand.u32 %s24, 1
        %s244 = smul.addr %s243, 40
        %s245 = scalar_lea.vmem [#allocation2], %s244
        // Predicated region
        $region63: #{dp_block_forward.3} parent=61 // pred_check
          %p246 = pneg %p37
        $region64: #{dp_block_forward.3} parent=61 // pred_check_branch
          %248 = sbr.rel (%p246) target = $region66
        $region65: #{dp_block_forward.3} parent=61 // pred_region
          _
        $region66: #{dp_block_forward.3} parent=61 // pred_fallthru
          _
        %s249 = sand.u32 %s24, 1
        %s250 = sand.u32 %s24, 1
        %s251 = smul.addr %s250, 40
        %s252 = scalar_lea.vmem [#allocation2], %s251
        %p253 = pneg %p37
        %p254 = pneg %p34
        %p255 = pneg %p58
        %p256 = pneg %p55
        %p257 = pneg %p79
        %p258 = pneg %p76
        %p259 = pneg %p100
        %p260 = pneg %p97
        %s261 = smul.u32 5, %s16
        %p262 = scmp.lt.s32.totalorder %s261, 24
        %s263 = scalar_select %p262, %s261, 24
        %s264 = smul.addr %s263, 8
        %s265 = scalar_lea.vmem %s4, %s264
        %p266 = pneg %p126
        %p267 = pneg %p123
        %p268 = pneg %p152
        %p269 = pneg %p149
        %s270 = sand.u32 %s139, 1
        %s271 = sand.u32 %s139, 1
        %s272 = smul.addr %s271, 80
        %s273 = scalar_lea.vmem [#allocation3], %s272
        %s274 = smul.u32 5, %s16
        %s275 = smul.u32 5, %s16
        %p276 = scmp.lt.s32.totalorder %s275, 24
        %s277 = scalar_select %p276, %s275, 24
        %s278 = smul.addr %s277, 8
        %s279 = scalar_lea.vmem %s4, %s278
        %s280 = smul.u32 5, %s16
        %s281 = smul.u32 5, %s16
        %v282 = vld [vmem:[%s1] sm:$0xff]
        %v283 = vld [vmem:[%s2] sm:$0xff]
        %v284 = vld [vmem:[%s3] sm:$0xff]
        %v285 = vld [vmem:[%s279] sm:$0xff]
        %v286 = vld [vmem:[%s279 + $0x8] sm:$0xff]
        %v287 = vld [vmem:[%s279 + $0x10] sm:$0xff]
        %v288 = vld [vmem:[%s279 + $0x18] sm:$0xff]
        %v289 = vld [vmem:[%s279 + $0x20] sm:$0xff]
        %v290 = vlaneseq
        %v291 = vshrl.u32 %v290, 7
        %v292 = vlaneseq
        %v293 = vand.u32 %v292, 127
        %v294 = vsub.s32 %v291, %v293
        %vm295 = vcmp.lt.s32.totalorder %v294, 0
        %v296 = vsub.s32 0, %v294
        %v297 = vsel %vm295, %v296, %v294
        %vm298 = vcmp.le.s32.totalorder %v297, 2
        %v299 = vsel %vm298, 1, 0
        %v300 = vcvt.s32.f32 %v299
        %v301 = vld [vmem:[%s245] sm:$0xff]
        %v302 = vld [vmem:[%s245 + $0x8] sm:$0xff]
        %v303 = vld [vmem:[%s245 + $0x10] sm:$0xf]
        %v307 = vcombine.high %v301, %v301
        %v308 = vcombine.high %v302, %v302
        %vm309 = vcmask 31744
        %v311 = vsel %vm309, %v282, 0
        %vm313 = vcmask 1043456
        %v314 = vsel %vm313, %v301, 0
        %v316 = vsel %vm313, %v307, 0
        %v318 = vsel %vm313, %v302, 0
        %v320 = vsel %vm313, %v308, 0
        %v322 = vsel %vm313, %v303, 0
        %324 = vmatprep.subr.mxu0 %v316
        %325 = vmatpush1.msra.mxu0 %v314
        %326 = vmatprep.subr.mxu0 0.0
        %327 = vmatpush1.msra.mxu0 0.0
        %328 = vmatprep.subr.mxu0 0.0
        %329 = vmatpush1.msra.mxu0 0.0
        %330 = vmatprep.subr.mxu0 0.0
        %331 = vmatpush1.msra.mxu0 0.0
        %332 = vmatprep.subr.mxu0 0.0
        %333 = vmatpush1.msra.mxu0 0.0
        %334 = vmatprep.subr.mxu0 0.0
        %335 = vmatpush1.msra.mxu0 0.0
        %336 = vmatprep.subr.mxu0 0.0
        %337 = vmatpush1.msra.mxu0 0.0
        %338 = vmatprep.subr.mxu0 0.0
        %339 = vmatpush1.msra.mxu0 0.0
        %340 = vmatprep.subr.mxu0 0.0
        %341 = vmatpush1.msra.mxu0 0.0
        %342 = vmatprep.subr.mxu0 0.0
        %343 = vmatpush1.msra.mxu0 0.0
        %344 = vmatprep.subr.mxu0 0.0
        %345 = vmatpush1.msra.mxu0 0.0
        %346 = vmatprep.subr.mxu0 0.0
        %347 = vmatpush1.msra.mxu0 0.0
        %348 = vmatprep.subr.mxu0 0.0
        %349 = vmatpush1.msra.mxu0 0.0
        %350 = vmatprep.subr.mxu0 0.0
        %351 = vmatpush1.msra.mxu0 0.0
        %352 = vmatprep.subr.mxu0 0.0
        %353 = vmatpush1.msra.mxu0 0.0
        %354 = vmatprep.subr.mxu0 0.0
        %355 = vmatpush1.msra.mxu0 0.0
        %356 = vmatprep.subr.mxu0 0.0
        %357 = vmatpush1.msra.mxu0 0.0
        %358 = vmatprep.subr.mxu0 0.0
        %359 = vmatpush1.msra.mxu0 0.0
        %360 = vmatprep.subr.mxu0 0.0
        %361 = vmatpush1.msra.mxu0 0.0
        %362 = vmatprep.subr.mxu0 0.0
        %363 = vmatpush1.msra.mxu0 0.0
        %364 = vmatprep.subr.mxu0 0.0
        %365 = vmatpush1.msra.mxu0 0.0
        %366 = vmatprep.subr.mxu0 0.0
        %367 = vmatpush1.msra.mxu0 0.0
        %368 = vmatprep.subr.mxu0 0.0
        %369 = vmatpush1.msra.mxu0 0.0
        %370 = vmatprep.subr.mxu0 0.0
        %371 = vmatpush1.msra.mxu0 0.0
        %372 = vmatprep.subr.mxu0 0.0
        %373 = vmatpush1.msra.mxu0 0.0
        %374 = vmatprep.subr.mxu0 0.0
        %375 = vmatpush1.msra.mxu0 0.0
        %376 = vmatprep.subr.mxu0 0.0
        %377 = vmatpush1.msra.mxu0 0.0
        %378 = vmatprep.subr.mxu0 0.0
        %379 = vmatpush1.msra.mxu0 0.0
        %380 = vmatprep.subr.mxu0 0.0
        %381 = vmatpush1.msra.mxu0 0.0
        %382 = vmatprep.subr.mxu0 0.0
        %383 = vmatpush1.msra.mxu0 0.0
        %384 = vmatprep.subr.mxu0 0.0
        %385 = vmatpush1.msra.mxu0 0.0
        %386 = vmatprep.subr.mxu0 0.0
        %387 = vmatpush1.msra.mxu0 0.0
        %388 = vmatprep.mubr.f32.mxu0 0.0
        %389 = vmatmul.mubr.f32.gmra.mrb[0].mxu0 %v311
        %v390 = vpop.f32.mrb[0].mxu0
        %v391 = vadd.f32 0.0, %v390
        %v392 = vpop.f32.mrb[0].mxu0
        %v393 = vadd.f32 0.0, %v392
        %394 = vdwg.mxu0
        %395 = vmatprep.subr.mxu0 %v320
        %396 = vmatpush1.msra.mxu0 %v318
        %397 = vmatprep.subr.mxu0 0.0
        %398 = vmatpush1.msra.mxu0 0.0
        %399 = vmatprep.subr.mxu0 0.0
        %400 = vmatpush1.msra.mxu0 0.0
        %401 = vmatprep.subr.mxu0 0.0
        %402 = vmatpush1.msra.mxu0 0.0
        %403 = vmatprep.subr.mxu0 0.0
        %404 = vmatpush1.msra.mxu0 0.0
        %405 = vmatprep.subr.mxu0 0.0
        %406 = vmatpush1.msra.mxu0 0.0
        %407 = vmatprep.subr.mxu0 0.0
        %408 = vmatpush1.msra.mxu0 0.0
        %409 = vmatprep.subr.mxu0 0.0
        %410 = vmatpush1.msra.mxu0 0.0
        %411 = vmatprep.subr.mxu0 0.0
        %412 = vmatpush1.msra.mxu0 0.0
        %413 = vmatprep.subr.mxu0 0.0
        %414 = vmatpush1.msra.mxu0 0.0
        %415 = vmatprep.subr.mxu0 0.0
        %416 = vmatpush1.msra.mxu0 0.0
        %417 = vmatprep.subr.mxu0 0.0
        %418 = vmatpush1.msra.mxu0 0.0
        %419 = vmatprep.subr.mxu0 0.0
        %420 = vmatpush1.msra.mxu0 0.0
        %421 = vmatprep.subr.mxu0 0.0
        %422 = vmatpush1.msra.mxu0 0.0
        %423 = vmatprep.subr.mxu0 0.0
        %424 = vmatpush1.msra.mxu0 0.0
        %425 = vmatprep.subr.mxu0 0.0
        %426 = vmatpush1.msra.mxu0 0.0
        %427 = vmatprep.subr.mxu0 0.0
        %428 = vmatpush1.msra.mxu0 0.0
        %429 = vmatprep.subr.mxu0 0.0
        %430 = vmatpush1.msra.mxu0 0.0
        %431 = vmatprep.subr.mxu0 0.0
        %432 = vmatpush1.msra.mxu0 0.0
        %433 = vmatprep.subr.mxu0 0.0
        %434 = vmatpush1.msra.mxu0 0.0
        %435 = vmatprep.subr.mxu0 0.0
        %436 = vmatpush1.msra.mxu0 0.0
        %437 = vmatprep.subr.mxu0 0.0
        %438 = vmatpush1.msra.mxu0 0.0
        %439 = vmatprep.subr.mxu0 0.0
        %440 = vmatpush1.msra.mxu0 0.0
        %441 = vmatprep.subr.mxu0 0.0
        %442 = vmatpush1.msra.mxu0 0.0
        %443 = vmatprep.subr.mxu0 0.0
        %444 = vmatpush1.msra.mxu0 0.0
        %445 = vmatprep.subr.mxu0 0.0
        %446 = vmatpush1.msra.mxu0 0.0
        %447 = vmatprep.subr.mxu0 0.0
        %448 = vmatpush1.msra.mxu0 0.0
        %449 = vmatprep.subr.mxu0 0.0
        %450 = vmatpush1.msra.mxu0 0.0
        %451 = vmatprep.subr.mxu0 0.0
        %452 = vmatpush1.msra.mxu0 0.0
        %453 = vmatprep.subr.mxu0 0.0
        %454 = vmatpush1.msra.mxu0 0.0
        %455 = vmatprep.subr.mxu0 0.0
        %456 = vmatpush1.msra.mxu0 0.0
        %457 = vmatprep.subr.mxu0 0.0
        %458 = vmatpush1.msra.mxu0 0.0
        %459 = vmatprep.mubr.f32.mxu0 0.0
        %460 = vmatmul.mubr.f32.gmra.mrb[0].mxu0 %v311
        %v461 = vpop.f32.mrb[0].mxu0
        %v462 = vadd.f32 0.0, %v461
        %v463 = vpop.f32.mrb[0].mxu0
        %v464 = vadd.f32 0.0, %v463
        %465 = vdwg.mxu0
        %466 = vmatprep.subr.mxu0 0.0
        %467 = vmatpush1.msra.mxu0 %v322
        %468 = vmatprep.subr.mxu0 0.0
        %469 = vmatpush1.msra.mxu0 0.0
        %470 = vmatprep.subr.mxu0 0.0
        %471 = vmatpush1.msra.mxu0 0.0
        %472 = vmatprep.subr.mxu0 0.0
        %473 = vmatpush1.msra.mxu0 0.0
        %474 = vmatprep.subr.mxu0 0.0
        %475 = vmatpush1.msra.mxu0 0.0
        %476 = vmatprep.subr.mxu0 0.0
        %477 = vmatpush1.msra.mxu0 0.0
        %478 = vmatprep.subr.mxu0 0.0
        %479 = vmatpush1.msra.mxu0 0.0
        %480 = vmatprep.subr.mxu0 0.0
        %481 = vmatpush1.msra.mxu0 0.0
        %482 = vmatprep.subr.mxu0 0.0
        %483 = vmatpush1.msra.mxu0 0.0
        %484 = vmatprep.subr.mxu0 0.0
        %485 = vmatpush1.msra.mxu0 0.0
        %486 = vmatprep.subr.mxu0 0.0
        %487 = vmatpush1.msra.mxu0 0.0
        %488 = vmatprep.subr.mxu0 0.0
        %489 = vmatpush1.msra.mxu0 0.0
        %490 = vmatprep.subr.mxu0 0.0
        %491 = vmatpush1.msra.mxu0 0.0
        %492 = vmatprep.subr.mxu0 0.0
        %493 = vmatpush1.msra.mxu0 0.0
        %494 = vmatprep.subr.mxu0 0.0
        %495 = vmatpush1.msra.mxu0 0.0
        %496 = vmatprep.subr.mxu0 0.0
        %497 = vmatpush1.msra.mxu0 0.0
        %498 = vmatprep.subr.mxu0 0.0
        %499 = vmatpush1.msra.mxu0 0.0
        %500 = vmatprep.subr.mxu0 0.0
        %501 = vmatpush1.msra.mxu0 0.0
        %502 = vmatprep.subr.mxu0 0.0
        %503 = vmatpush1.msra.mxu0 0.0
        %504 = vmatprep.subr.mxu0 0.0
        %505 = vmatpush1.msra.mxu0 0.0
        %506 = vmatprep.subr.mxu0 0.0
        %507 = vmatpush1.msra.mxu0 0.0
        %508 = vmatprep.subr.mxu0 0.0
        %509 = vmatpush1.msra.mxu0 0.0
        %510 = vmatprep.subr.mxu0 0.0
        %511 = vmatpush1.msra.mxu0 0.0
        %512 = vmatprep.subr.mxu0 0.0
        %513 = vmatpush1.msra.mxu0 0.0
        %514 = vmatprep.subr.mxu0 0.0
        %515 = vmatpush1.msra.mxu0 0.0
        %516 = vmatprep.subr.mxu0 0.0
        %517 = vmatpush1.msra.mxu0 0.0
        %518 = vmatprep.subr.mxu0 0.0
        %519 = vmatpush1.msra.mxu0 0.0
        %520 = vmatprep.subr.mxu0 0.0
        %521 = vmatpush1.msra.mxu0 0.0
        %522 = vmatprep.subr.mxu0 0.0
        %523 = vmatpush1.msra.mxu0 0.0
        %524 = vmatprep.subr.mxu0 0.0
        %525 = vmatpush1.msra.mxu0 0.0
        %526 = vmatprep.subr.mxu0 0.0
        %527 = vmatpush1.msra.mxu0 0.0
        %528 = vmatprep.subr.mxu0 0.0
        %529 = vmatpush1.msra.mxu0 0.0
        %530 = vmatprep.mubr.f32.mxu0 0.0
        %531 = vmatmul.mubr.f32.gmra.mrb[0].mxu0 %v311
        %v532 = vpop.f32.mrb[0].mxu0
        %v533 = vadd.f32 0.0, %v532
        %v534 = vpop.f32.mrb[0].mxu0
        %535 = vdwg.mxu0
        %537 = vset.pattern.permute.xlu0 0
        %538 = vperm.xlu0 %537, %v283
        %v539 = vpop.permute.xlu0 %538
        %v541 = vmul.f32 %v391, %v539
        %v542 = vmul.f32 %v393, %v539
        %v543 = vmul.f32 %v462, %v539
        %v544 = vmul.f32 %v464, %v539
        %v545 = vmul.f32 %v533, %v539
        %547 = vset.pattern.permute.xlu0 0
        %548 = vperm.xlu0 %547, %v284
        %v549 = vpop.permute.xlu0 %548
        %v551 = vadd.f32 %v541, %v549
        %v552 = vadd.f32 %v542, %v549
        %v553 = vadd.f32 %v543, %v549
        %v554 = vadd.f32 %v544, %v549
        %v555 = vadd.f32 %v545, %v549
        %v556 = vmul.f32 %v551, 0.5
        %v557 = vmul.f32 %v552, 0.5
        %v558 = vmul.f32 %v553, 0.5
        %v559 = vmul.f32 %v554, 0.5
        %v560 = vmul.f32 %v555, 0.5
        %v561 = vmul.f32 %v551, 0.70710677
        %v562 = vmul.f32 %v552, 0.70710677
        %v563 = vmul.f32 %v553, 0.70710677
        %v564 = vmul.f32 %v554, 0.70710677
        %v565 = vmul.f32 %v555, 0.70710677
        %vm566 = vcmp.ge.f32.partialorder %v561, 0.0
        %vm567 = vcmp.ge.f32.partialorder %v562, 0.0
        %vm568 = vcmp.ge.f32.partialorder %v563, 0.0
        %vm569 = vcmp.ge.f32.partialorder %v564, 0.0
        %vm570 = vcmp.ge.f32.partialorder %v565, 0.0
        %v571 = vsel %vm566, 1.0, -1.0
        %v572 = vsel %vm567, 1.0, -1.0
        %v573 = vsel %vm568, 1.0, -1.0
        %v574 = vsel %vm569, 1.0, -1.0
        %v575 = vsel %vm570, 1.0, -1.0
        %v576 = vand.u32 2147483647, %v561
        %v577 = vand.u32 2147483647, %v562
        %v578 = vand.u32 2147483647, %v563
        %v579 = vand.u32 2147483647, %v564
        %v580 = vand.u32 2147483647, %v565
        %v581 = vmul.f32 %v576, 0.3275911
        %v582 = vmul.f32 %v577, 0.3275911
        %v583 = vmul.f32 %v578, 0.3275911
        %v584 = vmul.f32 %v579, 0.3275911
        %v585 = vmul.f32 %v580, 0.3275911
        %v586 = vadd.f32 %v581, 1.0
        %v587 = vadd.f32 %v582, 1.0
        %v588 = vadd.f32 %v583, 1.0
        %v589 = vadd.f32 %v584, 1.0
        %v590 = vadd.f32 %v585, 1.0
        %v591 = vrcp.pop %v586
        %v592 = vrcp.pop %v587
        %v593 = vrcp.pop %v588
        %v594 = vrcp.pop %v589
        %v595 = vrcp.pop %v590
        %v596 = vmul.f32 %v591, 1.0614054
        %v597 = vmul.f32 %v592, 1.0614054
        %v598 = vmul.f32 %v593, 1.0614054
        %v599 = vmul.f32 %v594, 1.0614054
        %v600 = vmul.f32 %v595, 1.0614054
        %v601 = vadd.f32 %v596, -1.4531521
        %v602 = vadd.f32 %v597, -1.4531521
        %v603 = vadd.f32 %v598, -1.4531521
        %v604 = vadd.f32 %v599, -1.4531521
        %v605 = vadd.f32 %v600, -1.4531521
        %v606 = vmul.f32 %v601, %v591
        %v607 = vmul.f32 %v602, %v592
        %v608 = vmul.f32 %v603, %v593
        %v609 = vmul.f32 %v604, %v594
        %v610 = vmul.f32 %v605, %v595
        %v611 = vadd.f32 %v606, 1.4214138
        %v612 = vadd.f32 %v607, 1.4214138
        %v613 = vadd.f32 %v608, 1.4214138
        %v614 = vadd.f32 %v609, 1.4214138
        %v615 = vadd.f32 %v610, 1.4214138
        %v616 = vmul.f32 %v611, %v591
        %v617 = vmul.f32 %v612, %v592
        %v618 = vmul.f32 %v613, %v593
        %v619 = vmul.f32 %v614, %v594
        %v620 = vmul.f32 %v615, %v595
        %v621 = vadd.f32 %v616, -0.28449672
        %v622 = vadd.f32 %v617, -0.28449672
        %v623 = vadd.f32 %v618, -0.28449672
        %v624 = vadd.f32 %v619, -0.28449672
        %v625 = vadd.f32 %v620, -0.28449672
        %v626 = vmul.f32 %v621, %v591
        %v627 = vmul.f32 %v622, %v592
        %v628 = vmul.f32 %v623, %v593
        %v629 = vmul.f32 %v624, %v594
        %v630 = vmul.f32 %v625, %v595
        %v631 = vadd.f32 %v626, 0.2548296
        %v632 = vadd.f32 %v627, 0.2548296
        %v633 = vadd.f32 %v628, 0.2548296
        %v634 = vadd.f32 %v629, 0.2548296
        %v635 = vadd.f32 %v630, 0.2548296
        %v636 = vmul.f32 %v631, %v591
        %v637 = vmul.f32 %v632, %v592
        %v638 = vmul.f32 %v633, %v593
        %v639 = vmul.f32 %v634, %v594
        %v640 = vmul.f32 %v635, %v595
        %v641 = vsub.f32 0.0, %v576
        %v642 = vsub.f32 0.0, %v577
        %v643 = vsub.f32 0.0, %v578
        %v644 = vsub.f32 0.0, %v579
        %v645 = vsub.f32 0.0, %v580
        %v646 = vmul.f32 %v641, %v576
        %v647 = vmul.f32 %v642, %v577
        %v648 = vmul.f32 %v643, %v578
        %v649 = vmul.f32 %v644, %v579
        %v650 = vmul.f32 %v645, %v580
        %v651 = vmul.f32 %v646, 1.442695
        %v652 = vpow.pop %v651
        %v653 = vmul.f32 %v647, 1.442695
        %v654 = vpow.pop %v653
        %v655 = vmul.f32 %v648, 1.442695
        %v656 = vpow.pop %v655
        %v657 = vmul.f32 %v649, 1.442695
        %v658 = vpow.pop %v657
        %v659 = vmul.f32 %v650, 1.442695
        %v660 = vpow.pop %v659
        %v661 = vmul.f32 %v636, %v652
        %v662 = vmul.f32 %v637, %v654
        %v663 = vmul.f32 %v638, %v656
        %v664 = vmul.f32 %v639, %v658
        %v665 = vmul.f32 %v640, %v660
        %v666 = vsub.f32 1.0, %v661
        %v667 = vsub.f32 1.0, %v662
        %v668 = vsub.f32 1.0, %v663
        %v669 = vsub.f32 1.0, %v664
        %v670 = vsub.f32 1.0, %v665
        %v671 = vmul.f32 %v571, %v666
        %v672 = vmul.f32 %v572, %v667
        %v673 = vmul.f32 %v573, %v668
        %v674 = vmul.f32 %v574, %v669
        %v675 = vmul.f32 %v575, %v670
        %v676 = vadd.f32 %v671, 1.0
        %v677 = vadd.f32 %v672, 1.0
        %v678 = vadd.f32 %v673, 1.0
        %v679 = vadd.f32 %v674, 1.0
        %v680 = vadd.f32 %v675, 1.0
        %v681 = vmul.f32 %v556, %v676
        %v682 = vmul.f32 %v557, %v677
        %v683 = vmul.f32 %v558, %v678
        %v684 = vmul.f32 %v559, %v679
        %v685 = vmul.f32 %v560, %v680
        %v686 = vmul.f32 %v681, %v681
        %v687 = vmul.f32 %v682, %v682
        %v688 = vmul.f32 %v683, %v683
        %v689 = vmul.f32 %v684, %v684
        %v690 = vmul.f32 %v685, %v685
        %vm691 = vcmask 64512
        %v693 = vsel %vm691, %v300, 0
        %695 = vmatprep.subr.mxu0 %v687
        %696 = vmatpush1.msra.mxu0 %v686
        %697 = vmatprep.subr.mxu0 0.0
        %698 = vmatpush1.msra.mxu0 0.0
        %699 = vmatprep.subr.mxu0 0.0
        %700 = vmatpush1.msra.mxu0 0.0
        %701 = vmatprep.subr.mxu0 0.0
        %702 = vmatpush1.msra.mxu0 0.0
        %703 = vmatprep.subr.mxu0 0.0
        %704 = vmatpush1.msra.mxu0 0.0
        %705 = vmatprep.subr.mxu0 0.0
        %706 = vmatpush1.msra.mxu0 0.0
        %707 = vmatprep.subr.mxu0 0.0
        %708 = vmatpush1.msra.mxu0 0.0
        %709 = vmatprep.subr.mxu0 0.0
        %710 = vmatpush1.msra.mxu0 0.0
        %711 = vmatprep.subr.mxu0 0.0
        %712 = vmatpush1.msra.mxu0 0.0
        %713 = vmatprep.subr.mxu0 0.0
        %714 = vmatpush1.msra.mxu0 0.0
        %715 = vmatprep.subr.mxu0 0.0
        %716 = vmatpush1.msra.mxu0 0.0
        %717 = vmatprep.subr.mxu0 0.0
        %718 = vmatpush1.msra.mxu0 0.0
        %719 = vmatprep.subr.mxu0 0.0
        %720 = vmatpush1.msra.mxu0 0.0
        %721 = vmatprep.subr.mxu0 0.0
        %722 = vmatpush1.msra.mxu0 0.0
        %723 = vmatprep.subr.mxu0 0.0
        %724 = vmatpush1.msra.mxu0 0.0
        %725 = vmatprep.subr.mxu0 0.0
        %726 = vmatpush1.msra.mxu0 0.0
        %727 = vmatprep.subr.mxu0 0.0
        %728 = vmatpush1.msra.mxu0 0.0
        %729 = vmatprep.subr.mxu0 0.0
        %730 = vmatpush1.msra.mxu0 0.0
        %731 = vmatprep.subr.mxu0 0.0
        %732 = vmatpush1.msra.mxu0 0.0
        %733 = vmatprep.subr.mxu0 0.0
        %734 = vmatpush1.msra.mxu0 0.0
        %735 = vmatprep.subr.mxu0 0.0
        %736 = vmatpush1.msra.mxu0 0.0
        %737 = vmatprep.subr.mxu0 0.0
        %738 = vmatpush1.msra.mxu0 0.0
        %739 = vmatprep.subr.mxu0 0.0
        %740 = vmatpush1.msra.mxu0 0.0
        %741 = vmatprep.subr.mxu0 0.0
        %742 = vmatpush1.msra.mxu0 0.0
        %743 = vmatprep.subr.mxu0 0.0
        %744 = vmatpush1.msra.mxu0 0.0
        %745 = vmatprep.subr.mxu0 0.0
        %746 = vmatpush1.msra.mxu0 0.0
        %747 = vmatprep.subr.mxu0 0.0
        %748 = vmatpush1.msra.mxu0 0.0
        %749 = vmatprep.subr.mxu0 0.0
        %750 = vmatpush1.msra.mxu0 0.0
        %751 = vmatprep.subr.mxu0 0.0
        %752 = vmatpush1.msra.mxu0 0.0
        %753 = vmatprep.subr.mxu0 0.0
        %754 = vmatpush1.msra.mxu0 0.0
        %755 = vmatprep.subr.mxu0 0.0
        %756 = vmatpush1.msra.mxu0 0.0
        %757 = vmatprep.subr.mxu0 0.0
        %758 = vmatpush1.msra.mxu0 0.0
        %759 = vmatprep.mubr.f32.mxu0 0.0
        %760 = vmatmul.mubr.f32.gmra.mrb[0].mxu0 %v693
        %v761 = vpop.f32.mrb[0].mxu0
        %v762 = vadd.f32 2.0, %v761
        %v763 = vpop.f32.mrb[0].mxu0
        %v764 = vadd.f32 2.0, %v763
        %765 = vdwg.mxu0
        %766 = vmatprep.subr.mxu0 %v689
        %767 = vmatpush1.msra.mxu0 %v688
        %768 = vmatprep.subr.mxu0 0.0
        %769 = vmatpush1.msra.mxu0 0.0
        %770 = vmatprep.subr.mxu0 0.0
        %771 = vmatpush1.msra.mxu0 0.0
        %772 = vmatprep.subr.mxu0 0.0
        %773 = vmatpush1.msra.mxu0 0.0
        %774 = vmatprep.subr.mxu0 0.0
        %775 = vmatpush1.msra.mxu0 0.0
        %776 = vmatprep.subr.mxu0 0.0
        %777 = vmatpush1.msra.mxu0 0.0
        %778 = vmatprep.subr.mxu0 0.0
        %779 = vmatpush1.msra.mxu0 0.0
        %780 = vmatprep.subr.mxu0 0.0
        %781 = vmatpush1.msra.mxu0 0.0
        %782 = vmatprep.subr.mxu0 0.0
        %783 = vmatpush1.msra.mxu0 0.0
        %784 = vmatprep.subr.mxu0 0.0
        %785 = vmatpush1.msra.mxu0 0.0
        %786 = vmatprep.subr.mxu0 0.0
        %787 = vmatpush1.msra.mxu0 0.0
        %788 = vmatprep.subr.mxu0 0.0
        %789 = vmatpush1.msra.mxu0 0.0
        %790 = vmatprep.subr.mxu0 0.0
        %791 = vmatpush1.msra.mxu0 0.0
        %792 = vmatprep.subr.mxu0 0.0
        %793 = vmatpush1.msra.mxu0 0.0
        %794 = vmatprep.subr.mxu0 0.0
        %795 = vmatpush1.msra.mxu0 0.0
        %796 = vmatprep.subr.mxu0 0.0
        %797 = vmatpush1.msra.mxu0 0.0
        %798 = vmatprep.subr.mxu0 0.0
        %799 = vmatpush1.msra.mxu0 0.0
        %800 = vmatprep.subr.mxu0 0.0
        %801 = vmatpush1.msra.mxu0 0.0
        %802 = vmatprep.subr.mxu0 0.0
        %803 = vmatpush1.msra.mxu0 0.0
        %804 = vmatprep.subr.mxu0 0.0
        %805 = vmatpush1.msra.mxu0 0.0
        %806 = vmatprep.subr.mxu0 0.0
        %807 = vmatpush1.msra.mxu0 0.0
        %808 = vmatprep.subr.mxu0 0.0
        %809 = vmatpush1.msra.mxu0 0.0
        %810 = vmatprep.subr.mxu0 0.0
        %811 = vmatpush1.msra.mxu0 0.0
        %812 = vmatprep.subr.mxu0 0.0
        %813 = vmatpush1.msra.mxu0 0.0
        %814 = vmatprep.subr.mxu0 0.0
        %815 = vmatpush1.msra.mxu0 0.0
        %816 = vmatprep.subr.mxu0 0.0
        %817 = vmatpush1.msra.mxu0 0.0
        %818 = vmatprep.subr.mxu0 0.0
        %819 = vmatpush1.msra.mxu0 0.0
        %820 = vmatprep.subr.mxu0 0.0
        %821 = vmatpush1.msra.mxu0 0.0
        %822 = vmatprep.subr.mxu0 0.0
        %823 = vmatpush1.msra.mxu0 0.0
        %824 = vmatprep.subr.mxu0 0.0
        %825 = vmatpush1.msra.mxu0 0.0
        %826 = vmatprep.subr.mxu0 0.0
        %827 = vmatpush1.msra.mxu0 0.0
        %828 = vmatprep.subr.mxu0 0.0
        %829 = vmatpush1.msra.mxu0 0.0
        %830 = vmatprep.mubr.f32.mxu0 0.0
        %831 = vmatmul.mubr.f32.gmra.mrb[0].mxu0 %v693
        %v832 = vpop.f32.mrb[0].mxu0
        %v833 = vadd.f32 2.0, %v832
        %v834 = vpop.f32.mrb[0].mxu0
        %v835 = vadd.f32 2.0, %v834
        %836 = vdwg.mxu0
        %837 = vmatprep.subr.mxu0 0.0
        %838 = vmatpush1.msra.mxu0 %v690
        %839 = vmatprep.subr.mxu0 0.0
        %840 = vmatpush1.msra.mxu0 0.0
        %841 = vmatprep.subr.mxu0 0.0
        %842 = vmatpush1.msra.mxu0 0.0
        %843 = vmatprep.subr.mxu0 0.0
        %844 = vmatpush1.msra.mxu0 0.0
        %845 = vmatprep.subr.mxu0 0.0
        %846 = vmatpush1.msra.mxu0 0.0
        %847 = vmatprep.subr.mxu0 0.0
        %848 = vmatpush1.msra.mxu0 0.0
        %849 = vmatprep.subr.mxu0 0.0
        %850 = vmatpush1.msra.mxu0 0.0
        %851 = vmatprep.subr.mxu0 0.0
        %852 = vmatpush1.msra.mxu0 0.0
        %853 = vmatprep.subr.mxu0 0.0
        %854 = vmatpush1.msra.mxu0 0.0
        %855 = vmatprep.subr.mxu0 0.0
        %856 = vmatpush1.msra.mxu0 0.0
        %857 = vmatprep.subr.mxu0 0.0
        %858 = vmatpush1.msra.mxu0 0.0
        %859 = vmatprep.subr.mxu0 0.0
        %860 = vmatpush1.msra.mxu0 0.0
        %861 = vmatprep.subr.mxu0 0.0
        %862 = vmatpush1.msra.mxu0 0.0
        %863 = vmatprep.subr.mxu0 0.0
        %864 = vmatpush1.msra.mxu0 0.0
        %865 = vmatprep.subr.mxu0 0.0
        %866 = vmatpush1.msra.mxu0 0.0
        %867 = vmatprep.subr.mxu0 0.0
        %868 = vmatpush1.msra.mxu0 0.0
        %869 = vmatprep.subr.mxu0 0.0
        %870 = vmatpush1.msra.mxu0 0.0
        %871 = vmatprep.subr.mxu0 0.0
        %872 = vmatpush1.msra.mxu0 0.0
        %873 = vmatprep.subr.mxu0 0.0
        %874 = vmatpush1.msra.mxu0 0.0
        %875 = vmatprep.subr.mxu0 0.0
        %876 = vmatpush1.msra.mxu0 0.0
        %877 = vmatprep.subr.mxu0 0.0
        %878 = vmatpush1.msra.mxu0 0.0
        %879 = vmatprep.subr.mxu0 0.0
        %880 = vmatpush1.msra.mxu0 0.0
        %881 = vmatprep.subr.mxu0 0.0
        %882 = vmatpush1.msra.mxu0 0.0
        %883 = vmatprep.subr.mxu0 0.0
        %884 = vmatpush1.msra.mxu0 0.0
        %885 = vmatprep.subr.mxu0 0.0
        %886 = vmatpush1.msra.mxu0 0.0
        %887 = vmatprep.subr.mxu0 0.0
        %888 = vmatpush1.msra.mxu0 0.0
        %889 = vmatprep.subr.mxu0 0.0
        %890 = vmatpush1.msra.mxu0 0.0
        %891 = vmatprep.subr.mxu0 0.0
        %892 = vmatpush1.msra.mxu0 0.0
        %893 = vmatprep.subr.mxu0 0.0
        %894 = vmatpush1.msra.mxu0 0.0
        %895 = vmatprep.subr.mxu0 0.0
        %896 = vmatpush1.msra.mxu0 0.0
        %897 = vmatprep.subr.mxu0 0.0
        %898 = vmatpush1.msra.mxu0 0.0
        %899 = vmatprep.subr.mxu0 0.0
        %900 = vmatpush1.msra.mxu0 0.0
        %901 = vmatprep.mubr.f32.mxu0 0.0
        %902 = vmatmul.mubr.f32.gmra.mrb[0].mxu0 %v693
        %v903 = vpop.f32.mrb[0].mxu0
        %v904 = vadd.f32 2.0, %v903
        %v905 = vpop.f32.mrb[0].mxu0
        %906 = vdwg.mxu0
        %v907 = vrsqrt.pop %v762
        %v908 = vrsqrt.pop %v764
        %v909 = vrsqrt.pop %v833
        %v910 = vrsqrt.pop %v835
        %v911 = vrsqrt.pop %v904
        %v912 = vmul.f32 %v681, %v907
        %v913 = vmul.f32 %v682, %v908
        %v914 = vmul.f32 %v683, %v909
        %v915 = vmul.f32 %v684, %v910
        %v916 = vmul.f32 %v685, %v911
        %v917 = vadd.f32 %v912, %v285
        %v918 = vadd.f32 %v913, %v286
        %v919 = vadd.f32 %v914, %v287
        %v920 = vadd.f32 %v915, %v288
        %v921 = vadd.f32 %v916, %v289
        %922 = vst [vmem:[%s273] sm:$0xff] %v917
        %923 = vst [vmem:[%s273 + $0x8] sm:$0xff] %v918
        %924 = vst [vmem:[%s273 + $0x10] sm:$0xff] %v919
        %925 = vst [vmem:[%s273 + $0x18] sm:$0xff] %v920
        %926 = vst [vmem:[%s273 + $0x20] sm:$0xff] %v921
        %s927 = scalar_lea.vmem %s245, 20 [#allocation2]
        %v928 = vld [vmem:[%s927] sm:$0xff]
        %v929 = vld [vmem:[%s927 + $0x8] sm:$0xff]
        %v930 = vld [vmem:[%s927 + $0x10] sm:$0xf]
        %v934 = vcombine.high %v928, %v928
        %v935 = vcombine.high %v929, %v929
        %v936 = vsel %vm313, %v928, 0
        %v938 = vsel %vm313, %v934, 0
        %v940 = vsel %vm313, %v929, 0
        %v942 = vsel %vm313, %v935, 0
        %v944 = vsel %vm313, %v930, 0
        %946 = vmatprep.subr.mxu0 %v938
        %947 = vmatpush1.msra.mxu0 %v936
        %948 = vmatprep.subr.mxu0 0.0
        %949 = vmatpush1.msra.mxu0 0.0
        %950 = vmatprep.subr.mxu0 0.0
        %951 = vmatpush1.msra.mxu0 0.0
        %952 = vmatprep.subr.mxu0 0.0
        %953 = vmatpush1.msra.mxu0 0.0
        %954 = vmatprep.subr.mxu0 0.0
        %955 = vmatpush1.msra.mxu0 0.0
        %956 = vmatprep.subr.mxu0 0.0
        %957 = vmatpush1.msra.mxu0 0.0
        %958 = vmatprep.subr.mxu0 0.0
        %959 = vmatpush1.msra.mxu0 0.0
        %960 = vmatprep.subr.mxu0 0.0
        %961 = vmatpush1.msra.mxu0 0.0
        %962 = vmatprep.subr.mxu0 0.0
        %963 = vmatpush1.msra.mxu0 0.0
        %964 = vmatprep.subr.mxu0 0.0
        %965 = vmatpush1.msra.mxu0 0.0
        %966 = vmatprep.subr.mxu0 0.0
        %967 = vmatpush1.msra.mxu0 0.0
        %968 = vmatprep.subr.mxu0 0.0
        %969 = vmatpush1.msra.mxu0 0.0
        %970 = vmatprep.subr.mxu0 0.0
        %971 = vmatpush1.msra.mxu0 0.0
        %972 = vmatprep.subr.mxu0 0.0
        %973 = vmatpush1.msra.mxu0 0.0
        %974 = vmatprep.subr.mxu0 0.0
        %975 = vmatpush1.msra.mxu0 0.0
        %976 = vmatprep.subr.mxu0 0.0
        %977 = vmatpush1.msra.mxu0 0.0
        %978 = vmatprep.subr.mxu0 0.0
        %979 = vmatpush1.msra.mxu0 0.0
        %980 = vmatprep.subr.mxu0 0.0
        %981 = vmatpush1.msra.mxu0 0.0
        %982 = vmatprep.subr.mxu0 0.0
        %983 = vmatpush1.msra.mxu0 0.0
        %984 = vmatprep.subr.mxu0 0.0
        %985 = vmatpush1.msra.mxu0 0.0
        %986 = vmatprep.subr.mxu0 0.0
        %987 = vmatpush1.msra.mxu0 0.0
        %988 = vmatprep.subr.mxu0 0.0
        %989 = vmatpush1.msra.mxu0 0.0
        %990 = vmatprep.subr.mxu0 0.0
        %991 = vmatpush1.msra.mxu0 0.0
        %992 = vmatprep.subr.mxu0 0.0
        %993 = vmatpush1.msra.mxu0 0.0
        %994 = vmatprep.subr.mxu0 0.0
        %995 = vmatpush1.msra.mxu0 0.0
        %996 = vmatprep.subr.mxu0 0.0
        %997 = vmatpush1.msra.mxu0 0.0
        %998 = vmatprep.subr.mxu0 0.0
        %999 = vmatpush1.msra.mxu0 0.0
        %1000 = vmatprep.subr.mxu0 0.0
        %1001 = vmatpush1.msra.mxu0 0.0
        %1002 = vmatprep.subr.mxu0 0.0
        %1003 = vmatpush1.msra.mxu0 0.0
        %1004 = vmatprep.subr.mxu0 0.0
        %1005 = vmatpush1.msra.mxu0 0.0
        %1006 = vmatprep.subr.mxu0 0.0
        %1007 = vmatpush1.msra.mxu0 0.0
        %1008 = vmatprep.subr.mxu0 0.0
        %1009 = vmatpush1.msra.mxu0 0.0
        %1010 = vmatprep.mubr.f32.mxu0 0.0
        %1011 = vmatmul.mubr.f32.gmra.mrb[0].mxu0 %v311
        %v1012 = vpop.f32.mrb[0].mxu0
        %v1013 = vadd.f32 0.0, %v1012
        %v1014 = vpop.f32.mrb[0].mxu0
        %v1015 = vadd.f32 0.0, %v1014
        %1016 = vdwg.mxu0
        %1017 = vmatprep.subr.mxu0 %v942
        %1018 = vmatpush1.msra.mxu0 %v940
        %1019 = vmatprep.subr.mxu0 0.0
        %1020 = vmatpush1.msra.mxu0 0.0
        %1021 = vmatprep.subr.mxu0 0.0
        %1022 = vmatpush1.msra.mxu0 0.0
        %1023 = vmatprep.subr.mxu0 0.0
        %1024 = vmatpush1.msra.mxu0 0.0
        %1025 = vmatprep.subr.mxu0 0.0
        %1026 = vmatpush1.msra.mxu0 0.0
        %1027 = vmatprep.subr.mxu0 0.0
        %1028 = vmatpush1.msra.mxu0 0.0
        %1029 = vmatprep.subr.mxu0 0.0
        %1030 = vmatpush1.msra.mxu0 0.0
        %1031 = vmatprep.subr.mxu0 0.0
        %1032 = vmatpush1.msra.mxu0 0.0
        %1033 = vmatprep.subr.mxu0 0.0
        %1034 = vmatpush1.msra.mxu0 0.0
        %1035 = vmatprep.subr.mxu0 0.0
        %1036 = vmatpush1.msra.mxu0 0.0
        %1037 = vmatprep.subr.mxu0 0.0
        %1038 = vmatpush1.msra.mxu0 0.0
        %1039 = vmatprep.subr.mxu0 0.0
        %1040 = vmatpush1.msra.mxu0 0.0
        %1041 = vmatprep.subr.mxu0 0.0
        %1042 = vmatpush1.msra.mxu0 0.0
        %1043 = vmatprep.subr.mxu0 0.0
        %1044 = vmatpush1.msra.mxu0 0.0
        %1045 = vmatprep.subr.mxu0 0.0
        %1046 = vmatpush1.msra.mxu0 0.0
        %1047 = vmatprep.subr.mxu0 0.0
        %1048 = vmatpush1.msra.mxu0 0.0
        %1049 = vmatprep.subr.mxu0 0.0
        %1050 = vmatpush1.msra.mxu0 0.0
        %1051 = vmatprep.subr.mxu0 0.0
        %1052 = vmatpush1.msra.mxu0 0.0
        %1053 = vmatprep.subr.mxu0 0.0
        %1054 = vmatpush1.msra.mxu0 0.0
        %1055 = vmatprep.subr.mxu0 0.0
        %1056 = vmatpush1.msra.mxu0 0.0
        %1057 = vmatprep.subr.mxu0 0.0
        %1058 = vmatpush1.msra.mxu0 0.0
        %1059 = vmatprep.subr.mxu0 0.0
        %1060 = vmatpush1.msra.mxu0 0.0
        %1061 = vmatprep.subr.mxu0 0.0
        %1062 = vmatpush1.msra.mxu0 0.0
        %1063 = vmatprep.subr.mxu0 0.0
        %1064 = vmatpush1.msra.mxu0 0.0
        %1065 = vmatprep.subr.mxu0 0.0
        %1066 = vmatpush1.msra.mxu0 0.0
        %1067 = vmatprep.subr.mxu0 0.0
        %1068 = vmatpush1.msra.mxu0 0.0
        %1069 = vmatprep.subr.mxu0 0.0
        %1070 = vmatpush1.msra.mxu0 0.0
        %1071 = vmatprep.subr.mxu0 0.0
        %1072 = vmatpush1.msra.mxu0 0.0
        %1073 = vmatprep.subr.mxu0 0.0
        %1074 = vmatpush1.msra.mxu0 0.0
        %1075 = vmatprep.subr.mxu0 0.0
        %1076 = vmatpush1.msra.mxu0 0.0
        %1077 = vmatprep.subr.mxu0 0.0
        %1078 = vmatpush1.msra.mxu0 0.0
        %1079 = vmatprep.subr.mxu0 0.0
        %1080 = vmatpush1.msra.mxu0 0.0
        %1081 = vmatprep.mubr.f32.mxu0 0.0
        %1082 = vmatmul.mubr.f32.gmra.mrb[0].mxu0 %v311
        %v1083 = vpop.f32.mrb[0].mxu0
        %v1084 = vadd.f32 0.0, %v1083
        %v1085 = vpop.f32.mrb[0].mxu0
        %v1086 = vadd.f32 0.0, %v1085
        %1087 = vdwg.mxu0
        %1088 = vmatprep.subr.mxu0 0.0
        %1089 = vmatpush1.msra.mxu0 %v944
        %1090 = vmatprep.subr.mxu0 0.0
        %1091 = vmatpush1.msra.mxu0 0.0
        %1092 = vmatprep.subr.mxu0 0.0
        %1093 = vmatpush1.msra.mxu0 0.0
        %1094 = vmatprep.subr.mxu0 0.0
        %1095 = vmatpush1.msra.mxu0 0.0
        %1096 = vmatprep.subr.mxu0 0.0
        %1097 = vmatpush1.msra.mxu0 0.0
        %1098 = vmatprep.subr.mxu0 0.0
        %1099 = vmatpush1.msra.mxu0 0.0
        %1100 = vmatprep.subr.mxu0 0.0
        %1101 = vmatpush1.msra.mxu0 0.0
        %1102 = vmatprep.subr.mxu0 0.0
        %1103 = vmatpush1.msra.mxu0 0.0
        %1104 = vmatprep.subr.mxu0 0.0
        %1105 = vmatpush1.msra.mxu0 0.0
        %1106 = vmatprep.subr.mxu0 0.0
        %1107 = vmatpush1.msra.mxu0 0.0
        %1108 = vmatprep.subr.mxu0 0.0
        %1109 = vmatpush1.msra.mxu0 0.0
        %1110 = vmatprep.subr.mxu0 0.0
        %1111 = vmatpush1.msra.mxu0 0.0
        %1112 = vmatprep.subr.mxu0 0.0
        %1113 = vmatpush1.msra.mxu0 0.0
        %1114 = vmatprep.subr.mxu0 0.0
        %1115 = vmatpush1.msra.mxu0 0.0
        %1116 = vmatprep.subr.mxu0 0.0
        %1117 = vmatpush1.msra.mxu0 0.0
        %1118 = vmatprep.subr.mxu0 0.0
        %1119 = vmatpush1.msra.mxu0 0.0
        %1120 = vmatprep.subr.mxu0 0.0
        %1121 = vmatpush1.msra.mxu0 0.0
        %1122 = vmatprep.subr.mxu0 0.0
        %1123 = vmatpush1.msra.mxu0 0.0
        %1124 = vmatprep.subr.mxu0 0.0
        %1125 = vmatpush1.msra.mxu0 0.0
        %1126 = vmatprep.subr.mxu0 0.0
        %1127 = vmatpush1.msra.mxu0 0.0
        %1128 = vmatprep.subr.mxu0 0.0
        %1129 = vmatpush1.msra.mxu0 0.0
        %1130 = vmatprep.subr.mxu0 0.0
        %1131 = vmatpush1.msra.mxu0 0.0
        %1132 = vmatprep.subr.mxu0 0.0
        %1133 = vmatpush1.msra.mxu0 0.0
        %1134 = vmatprep.subr.mxu0 0.0
        %1135 = vmatpush1.msra.mxu0 0.0
        %1136 = vmatprep.subr.mxu0 0.0
        %1137 = vmatpush1.msra.mxu0 0.0
        %1138 = vmatprep.subr.mxu0 0.0
        %1139 = vmatpush1.msra.mxu0 0.0
        %1140 = vmatprep.subr.mxu0 0.0
        %1141 = vmatpush1.msra.mxu0 0.0
        %1142 = vmatprep.subr.mxu0 0.0
        %1143 = vmatpush1.msra.mxu0 0.0
        %1144 = vmatprep.subr.mxu0 0.0
        %1145 = vmatpush1.msra.mxu0 0.0
        %1146 = vmatprep.subr.mxu0 0.0
        %1147 = vmatpush1.msra.mxu0 0.0
        %1148 = vmatprep.subr.mxu0 0.0
        %1149 = vmatpush1.msra.mxu0 0.0
        %1150 = vmatprep.subr.mxu0 0.0
        %1151 = vmatpush1.msra.mxu0 0.0
        %1152 = vmatprep.mubr.f32.mxu0 0.0
        %1153 = vmatmul.mubr.f32.gmra.mrb[0].mxu0 %v311
        %v1154 = vpop.f32.mrb[0].mxu0
        %v1155 = vadd.f32 0.0, %v1154
        %v1156 = vpop.f32.mrb[0].mxu0
        %1157 = vdwg.mxu0
        %v1158 = vmul.f32 %v1013, %v539
        %v1159 = vmul.f32 %v1015, %v539
        %v1160 = vmul.f32 %v1084, %v539
        %v1161 = vmul.f32 %v1086, %v539
        %v1162 = vmul.f32 %v1155, %v539
        %v1163 = vadd.f32 %v1158, %v549
        %v1164 = vadd.f32 %v1159, %v549
        %v1165 = vadd.f32 %v1160, %v549
        %v1166 = vadd.f32 %v1161, %v549
        %v1167 = vadd.f32 %v1162, %v549
        %v1168 = vmul.f32 %v1163, 0.5
        %v1169 = vmul.f32 %v1164, 0.5
        %v1170 = vmul.f32 %v1165, 0.5
        %v1171 = vmul.f32 %v1166, 0.5
        %v1172 = vmul.f32 %v1167, 0.5
        %v1173 = vmul.f32 %v1163, 0.70710677
        %v1174 = vmul.f32 %v1164, 0.70710677
        %v1175 = vmul.f32 %v1165, 0.70710677
        %v1176 = vmul.f32 %v1166, 0.70710677
        %v1177 = vmul.f32 %v1167, 0.70710677
        %vm1178 = vcmp.ge.f32.partialorder %v1173, 0.0
        %vm1179 = vcmp.ge.f32.partialorder %v1174, 0.0
        %vm1180 = vcmp.ge.f32.partialorder %v1175, 0.0
        %vm1181 = vcmp.ge.f32.partialorder %v1176, 0.0
        %vm1182 = vcmp.ge.f32.partialorder %v1177, 0.0
        %v1183 = vsel %vm1178, 1.0, -1.0
        %v1184 = vsel %vm1179, 1.0, -1.0
        %v1185 = vsel %vm1180, 1.0, -1.0
        %v1186 = vsel %vm1181, 1.0, -1.0
        %v1187 = vsel %vm1182, 1.0, -1.0
        %v1188 = vand.u32 2147483647, %v1173
        %v1189 = vand.u32 2147483647, %v1174
        %v1190 = vand.u32 2147483647, %v1175
        %v1191 = vand.u32 2147483647, %v1176
        %v1192 = vand.u32 2147483647, %v1177
        %v1193 = vmul.f32 %v1188, 0.3275911
        %v1194 = vmul.f32 %v1189, 0.3275911
        %v1195 = vmul.f32 %v1190, 0.3275911
        %v1196 = vmul.f32 %v1191, 0.3275911
        %v1197 = vmul.f32 %v1192, 0.3275911
        %v1198 = vadd.f32 %v1193, 1.0
        %v1199 = vadd.f32 %v1194, 1.0
        %v1200 = vadd.f32 %v1195, 1.0
        %v1201 = vadd.f32 %v1196, 1.0
        %v1202 = vadd.f32 %v1197, 1.0
        %v1203 = vrcp.pop %v1198
        %v1204 = vrcp.pop %v1199
        %v1205 = vrcp.pop %v1200
        %v1206 = vrcp.pop %v1201
        %v1207 = vrcp.pop %v1202
        %v1208 = vmul.f32 %v1203, 1.0614054
        %v1209 = vmul.f32 %v1204, 1.0614054
        %v1210 = vmul.f32 %v1205, 1.0614054
        %v1211 = vmul.f32 %v1206, 1.0614054
        %v1212 = vmul.f32 %v1207, 1.0614054
        %v1213 = vadd.f32 %v1208, -1.4531521
        %v1214 = vadd.f32 %v1209, -1.4531521
        %v1215 = vadd.f32 %v1210, -1.4531521
        %v1216 = vadd.f32 %v1211, -1.4531521
        %v1217 = vadd.f32 %v1212, -1.4531521
        %v1218 = vmul.f32 %v1213, %v1203
        %v1219 = vmul.f32 %v1214, %v1204
        %v1220 = vmul.f32 %v1215, %v1205
        %v1221 = vmul.f32 %v1216, %v1206
        %v1222 = vmul.f32 %v1217, %v1207
        %v1223 = vadd.f32 %v1218, 1.4214138
        %v1224 = vadd.f32 %v1219, 1.4214138
        %v1225 = vadd.f32 %v1220, 1.4214138
        %v1226 = vadd.f32 %v1221, 1.4214138
        %v1227 = vadd.f32 %v1222, 1.4214138
        %v1228 = vmul.f32 %v1223, %v1203
        %v1229 = vmul.f32 %v1224, %v1204
        %v1230 = vmul.f32 %v1225, %v1205
        %v1231 = vmul.f32 %v1226, %v1206
        %v1232 = vmul.f32 %v1227, %v1207
        %v1233 = vadd.f32 %v1228, -0.28449672
        %v1234 = vadd.f32 %v1229, -0.28449672
        %v1235 = vadd.f32 %v1230, -0.28449672
        %v1236 = vadd.f32 %v1231, -0.28449672
        %v1237 = vadd.f32 %v1232, -0.28449672
        %v1238 = vmul.f32 %v1233, %v1203
        %v1239 = vmul.f32 %v1234, %v1204
        %v1240 = vmul.f32 %v1235, %v1205
        %v1241 = vmul.f32 %v1236, %v1206
        %v1242 = vmul.f32 %v1237, %v1207
        %v1243 = vadd.f32 %v1238, 0.2548296
        %v1244 = vadd.f32 %v1239, 0.2548296
        %v1245 = vadd.f32 %v1240, 0.2548296
        %v1246 = vadd.f32 %v1241, 0.2548296
        %v1247 = vadd.f32 %v1242, 0.2548296
        %v1248 = vmul.f32 %v1243, %v1203
        %v1249 = vmul.f32 %v1244, %v1204
        %v1250 = vmul.f32 %v1245, %v1205
        %v1251 = vmul.f32 %v1246, %v1206
        %v1252 = vmul.f32 %v1247, %v1207
        %v1253 = vsub.f32 0.0, %v1188
        %v1254 = vsub.f32 0.0, %v1189
        %v1255 = vsub.f32 0.0, %v1190
        %v1256 = vsub.f32 0.0, %v1191
        %v1257 = vsub.f32 0.0, %v1192
        %v1258 = vmul.f32 %v1253, %v1188
        %v1259 = vmul.f32 %v1254, %v1189
        %v1260 = vmul.f32 %v1255, %v1190
        %v1261 = vmul.f32 %v1256, %v1191
        %v1262 = vmul.f32 %v1257, %v1192
        %v1263 = vmul.f32 %v1258, 1.442695
        %v1264 = vpow.pop %v1263
        %v1265 = vmul.f32 %v1259, 1.442695
        %v1266 = vpow.pop %v1265
        %v1267 = vmul.f32 %v1260, 1.442695
        %v1268 = vpow.pop %v1267
        %v1269 = vmul.f32 %v1261, 1.442695
        %v1270 = vpow.pop %v1269
        %v1271 = vmul.f32 %v1262, 1.442695
        %v1272 = vpow.pop %v1271
        %v1273 = vmul.f32 %v1248, %v1264
        %v1274 = vmul.f32 %v1249, %v1266
        %v1275 = vmul.f32 %v1250, %v1268
        %v1276 = vmul.f32 %v1251, %v1270
        %v1277 = vmul.f32 %v1252, %v1272
        %v1278 = vsub.f32 1.0, %v1273
        %v1279 = vsub.f32 1.0, %v1274
        %v1280 = vsub.f32 1.0, %v1275
        %v1281 = vsub.f32 1.0, %v1276
        %v1282 = vsub.f32 1.0, %v1277
        %v1283 = vmul.f32 %v1183, %v1278
        %v1284 = vmul.f32 %v1184, %v1279
        %v1285 = vmul.f32 %v1185, %v1280
        %v1286 = vmul.f32 %v1186, %v1281
        %v1287 = vmul.f32 %v1187, %v1282
        %v1288 = vadd.f32 %v1283, 1.0
        %v1289 = vadd.f32 %v1284, 1.0
        %v1290 = vadd.f32 %v1285, 1.0
        %v1291 = vadd.f32 %v1286, 1.0
        %v1292 = vadd.f32 %v1287, 1.0
        %v1293 = vmul.f32 %v1168, %v1288
        %v1294 = vmul.f32 %v1169, %v1289
        %v1295 = vmul.f32 %v1170, %v1290
        %v1296 = vmul.f32 %v1171, %v1291
        %v1297 = vmul.f32 %v1172, %v1292
        %v1298 = vmul.f32 %v1293, %v1293
        %v1299 = vmul.f32 %v1294, %v1294
        %v1300 = vmul.f32 %v1295, %v1295
        %v1301 = vmul.f32 %v1296, %v1296
        %v1302 = vmul.f32 %v1297, %v1297
        %1303 = vmatprep.subr.mxu0 %v1299
        %1304 = vmatpush1.msra.mxu0 %v1298
        %1305 = vmatprep.subr.mxu0 0.0
        %1306 = vmatpush1.msra.mxu0 0.0
        %1307 = vmatprep.subr.mxu0 0.0
        %1308 = vmatpush1.msra.mxu0 0.0
        %1309 = vmatprep.subr.mxu0 0.0
        %1310 = vmatpush1.msra.mxu0 0.0
        %1311 = vmatprep.subr.mxu0 0.0
        %1312 = vmatpush1.msra.mxu0 0.0
        %1313 = vmatprep.subr.mxu0 0.0
        %1314 = vmatpush1.msra.mxu0 0.0
        %1315 = vmatprep.subr.mxu0 0.0
        %1316 = vmatpush1.msra.mxu0 0.0
        %1317 = vmatprep.subr.mxu0 0.0
        %1318 = vmatpush1.msra.mxu0 0.0
        %1319 = vmatprep.subr.mxu0 0.0
        %1320 = vmatpush1.msra.mxu0 0.0
        %1321 = vmatprep.subr.mxu0 0.0
        %1322 = vmatpush1.msra.mxu0 0.0
        %1323 = vmatprep.subr.mxu0 0.0
        %1324 = vmatpush1.msra.mxu0 0.0
        %1325 = vmatprep.subr.mxu0 0.0
        %1326 = vmatpush1.msra.mxu0 0.0
        %1327 = vmatprep.subr.mxu0 0.0
        %1328 = vmatpush1.msra.mxu0 0.0
        %1329 = vmatprep.subr.mxu0 0.0
        %1330 = vmatpush1.msra.mxu0 0.0
        %1331 = vmatprep.subr.mxu0 0.0
        %1332 = vmatpush1.msra.mxu0 0.0
        %1333 = vmatprep.subr.mxu0 0.0
        %1334 = vmatpush1.msra.mxu0 0.0
        %1335 = vmatprep.subr.mxu0 0.0
        %1336 = vmatpush1.msra.mxu0 0.0
        %1337 = vmatprep.subr.mxu0 0.0
        %1338 = vmatpush1.msra.mxu0 0.0
        %1339 = vmatprep.subr.mxu0 0.0
        %1340 = vmatpush1.msra.mxu0 0.0
        %1341 = vmatprep.subr.mxu0 0.0
        %1342 = vmatpush1.msra.mxu0 0.0
        %1343 = vmatprep.subr.mxu0 0.0
        %1344 = vmatpush1.msra.mxu0 0.0
        %1345 = vmatprep.subr.mxu0 0.0
        %1346 = vmatpush1.msra.mxu0 0.0
        %1347 = vmatprep.subr.mxu0 0.0
        %1348 = vmatpush1.msra.mxu0 0.0
        %1349 = vmatprep.subr.mxu0 0.0
        %1350 = vmatpush1.msra.mxu0 0.0
        %1351 = vmatprep.subr.mxu0 0.0
        %1352 = vmatpush1.msra.mxu0 0.0
        %1353 = vmatprep.subr.mxu0 0.0
        %1354 = vmatpush1.msra.mxu0 0.0
        %1355 = vmatprep.subr.mxu0 0.0
        %1356 = vmatpush1.msra.mxu0 0.0
        %1357 = vmatprep.subr.mxu0 0.0
        %1358 = vmatpush1.msra.mxu0 0.0
        %1359 = vmatprep.subr.mxu0 0.0
        %1360 = vmatpush1.msra.mxu0 0.0
        %1361 = vmatprep.subr.mxu0 0.0
        %1362 = vmatpush1.msra.mxu0 0.0
        %1363 = vmatprep.subr.mxu0 0.0
        %1364 = vmatpush1.msra.mxu0 0.0
        %1365 = vmatprep.subr.mxu0 0.0
        %1366 = vmatpush1.msra.mxu0 0.0
        %1367 = vmatprep.mubr.f32.mxu0 0.0
        %1368 = vmatmul.mubr.f32.gmra.mrb[0].mxu0 %v693
        %v1369 = vpop.f32.mrb[0].mxu0
        %v1370 = vadd.f32 2.0, %v1369
        %v1371 = vpop.f32.mrb[0].mxu0
        %v1372 = vadd.f32 2.0, %v1371
        %1373 = vdwg.mxu0
        %1374 = vmatprep.subr.mxu0 %v1301
        %1375 = vmatpush1.msra.mxu0 %v1300
        %1376 = vmatprep.subr.mxu0 0.0
        %1377 = vmatpush1.msra.mxu0 0.0
        %1378 = vmatprep.subr.mxu0 0.0
        %1379 = vmatpush1.msra.mxu0 0.0
        %1380 = vmatprep.subr.mxu0 0.0
        %1381 = vmatpush1.msra.mxu0 0.0
        %1382 = vmatprep.subr.mxu0 0.0
        %1383 = vmatpush1.msra.mxu0 0.0
        %1384 = vmatprep.subr.mxu0 0.0
        %1385 = vmatpush1.msra.mxu0 0.0
        %1386 = vmatprep.subr.mxu0 0.0
        %1387 = vmatpush1.msra.mxu0 0.0
        %1388 = vmatprep.subr.mxu0 0.0
        %1389 = vmatpush1.msra.mxu0 0.0
        %1390 = vmatprep.subr.mxu0 0.0
        %1391 = vmatpush1.msra.mxu0 0.0
        %1392 = vmatprep.subr.mxu0 0.0
        %1393 = vmatpush1.msra.mxu0 0.0
        %1394 = vmatprep.subr.mxu0 0.0
        %1395 = vmatpush1.msra.mxu0 0.0
        %1396 = vmatprep.subr.mxu0 0.0
        %1397 = vmatpush1.msra.mxu0 0.0
        %1398 = vmatprep.subr.mxu0 0.0
        %1399 = vmatpush1.msra.mxu0 0.0
        %1400 = vmatprep.subr.mxu0 0.0
        %1401 = vmatpush1.msra.mxu0 0.0
        %1402 = vmatprep.subr.mxu0 0.0
        %1403 = vmatpush1.msra.mxu0 0.0
        %1404 = vmatprep.subr.mxu0 0.0
        %1405 = vmatpush1.msra.mxu0 0.0
        %1406 = vmatprep.subr.mxu0 0.0
        %1407 = vmatpush1.msra.mxu0 0.0
        %1408 = vmatprep.subr.mxu0 0.0
        %1409 = vmatpush1.msra.mxu0 0.0
        %1410 = vmatprep.subr.mxu0 0.0
        %1411 = vmatpush1.msra.mxu0 0.0
        %1412 = vmatprep.subr.mxu0 0.0
        %1413 = vmatpush1.msra.mxu0 0.0
        %1414 = vmatprep.subr.mxu0 0.0
        %1415 = vmatpush1.msra.mxu0 0.0
        %1416 = vmatprep.subr.mxu0 0.0
        %1417 = vmatpush1.msra.mxu0 0.0
        %1418 = vmatprep.subr.mxu0 0.0
        %1419 = vmatpush1.msra.mxu0 0.0
        %1420 = vmatprep.subr.mxu0 0.0
        %1421 = vmatpush1.msra.mxu0 0.0
        %1422 = vmatprep.subr.mxu0 0.0
        %1423 = vmatpush1.msra.mxu0 0.0
        %1424 = vmatprep.subr.mxu0 0.0
        %1425 = vmatpush1.msra.mxu0 0.0
        %1426 = vmatprep.subr.mxu0 0.0
        %1427 = vmatpush1.msra.mxu0 0.0
        %1428 = vmatprep.subr.mxu0 0.0
        %1429 = vmatpush1.msra.mxu0 0.0
        %1430 = vmatprep.subr.mxu0 0.0
        %1431 = vmatpush1.msra.mxu0 0.0
        %1432 = vmatprep.subr.mxu0 0.0
        %1433 = vmatpush1.msra.mxu0 0.0
        %1434 = vmatprep.subr.mxu0 0.0
        %1435 = vmatpush1.msra.mxu0 0.0
        %1436 = vmatprep.subr.mxu0 0.0
        %1437 = vmatpush1.msra.mxu0 0.0
        %1438 = vmatprep.mubr.f32.mxu0 0.0
        %1439 = vmatmul.mubr.f32.gmra.mrb[0].mxu0 %v693
        %v1440 = vpop.f32.mrb[0].mxu0
        %v1441 = vadd.f32 2.0, %v1440
        %v1442 = vpop.f32.mrb[0].mxu0
        %v1443 = vadd.f32 2.0, %v1442
        %1444 = vdwg.mxu0
        %1445 = vmatprep.subr.mxu0 0.0
        %1446 = vmatpush1.msra.mxu0 %v1302
        %1447 = vmatprep.subr.mxu0 0.0
        %1448 = vmatpush1.msra.mxu0 0.0
        %1449 = vmatprep.subr.mxu0 0.0
        %1450 = vmatpush1.msra.mxu0 0.0
        %1451 = vmatprep.subr.mxu0 0.0
        %1452 = vmatpush1.msra.mxu0 0.0
        %1453 = vmatprep.subr.mxu0 0.0
        %1454 = vmatpush1.msra.mxu0 0.0
        %1455 = vmatprep.subr.mxu0 0.0
        %1456 = vmatpush1.msra.mxu0 0.0
        %1457 = vmatprep.subr.mxu0 0.0
        %1458 = vmatpush1.msra.mxu0 0.0
        %1459 = vmatprep.subr.mxu0 0.0
        %1460 = vmatpush1.msra.mxu0 0.0
        %1461 = vmatprep.subr.mxu0 0.0
        %1462 = vmatpush1.msra.mxu0 0.0
        %1463 = vmatprep.subr.mxu0 0.0
        %1464 = vmatpush1.msra.mxu0 0.0
        %1465 = vmatprep.subr.mxu0 0.0
        %1466 = vmatpush1.msra.mxu0 0.0
        %1467 = vmatprep.subr.mxu0 0.0
        %1468 = vmatpush1.msra.mxu0 0.0
        %1469 = vmatprep.subr.mxu0 0.0
        %1470 = vmatpush1.msra.mxu0 0.0
        %1471 = vmatprep.subr.mxu0 0.0
        %1472 = vmatpush1.msra.mxu0 0.0
        %1473 = vmatprep.subr.mxu0 0.0
        %1474 = vmatpush1.msra.mxu0 0.0
        %1475 = vmatprep.subr.mxu0 0.0
        %1476 = vmatpush1.msra.mxu0 0.0
        %1477 = vmatprep.subr.mxu0 0.0
        %1478 = vmatpush1.msra.mxu0 0.0
        %1479 = vmatprep.subr.mxu0 0.0
        %1480 = vmatpush1.msra.mxu0 0.0
        %1481 = vmatprep.subr.mxu0 0.0
        %1482 = vmatpush1.msra.mxu0 0.0
        %1483 = vmatprep.subr.mxu0 0.0
        %1484 = vmatpush1.msra.mxu0 0.0
        %1485 = vmatprep.subr.mxu0 0.0
        %1486 = vmatpush1.msra.mxu0 0.0
        %1487 = vmatprep.subr.mxu0 0.0
        %1488 = vmatpush1.msra.mxu0 0.0
        %1489 = vmatprep.subr.mxu0 0.0
        %1490 = vmatpush1.msra.mxu0 0.0
        %1491 = vmatprep.subr.mxu0 0.0
        %1492 = vmatpush1.msra.mxu0 0.0
        %1493 = vmatprep.subr.mxu0 0.0
        %1494 = vmatpush1.msra.mxu0 0.0
        %1495 = vmatprep.subr.mxu0 0.0
        %1496 = vmatpush1.msra.mxu0 0.0
        %1497 = vmatprep.subr.mxu0 0.0
        %1498 = vmatpush1.msra.mxu0 0.0
        %1499 = vmatprep.subr.mxu0 0.0
        %1500 = vmatpush1.msra.mxu0 0.0
        %1501 = vmatprep.subr.mxu0 0.0
        %1502 = vmatpush1.msra.mxu0 0.0
        %1503 = vmatprep.subr.mxu0 0.0
        %1504 = vmatpush1.msra.mxu0 0.0
        %1505 = vmatprep.subr.mxu0 0.0
        %1506 = vmatpush1.msra.mxu0 0.0
        %1507 = vmatprep.subr.mxu0 0.0
        %1508 = vmatpush1.msra.mxu0 0.0
        %1509 = vmatprep.mubr.f32.mxu0 0.0
        %1510 = vmatmul.mubr.f32.gmra.mrb[0].mxu0 %v693
        %v1511 = vpop.f32.mrb[0].mxu0
        %v1512 = vadd.f32 2.0, %v1511
        %v1513 = vpop.f32.mrb[0].mxu0
        %1514 = vdwg.mxu0
        %v1515 = vrsqrt.pop %v1370
        %v1516 = vrsqrt.pop %v1372
        %v1517 = vrsqrt.pop %v1441
        %v1518 = vrsqrt.pop %v1443
        %v1519 = vrsqrt.pop %v1512
        %v1520 = vmul.f32 %v1293, %v1515
        %v1521 = vmul.f32 %v1294, %v1516
        %v1522 = vmul.f32 %v1295, %v1517
        %v1523 = vmul.f32 %v1296, %v1518
        %v1524 = vmul.f32 %v1297, %v1519
        %v1525 = vadd.f32 %v1520, %v285
        %v1526 = vadd.f32 %v1521, %v286
        %v1527 = vadd.f32 %v1522, %v287
        %v1528 = vadd.f32 %v1523, %v288
        %v1529 = vadd.f32 %v1524, %v289
        %s1530 = scalar_lea.vmem %s273, 40 [#allocation3]
        %1531 = vst [vmem:[%s1530] sm:$0xff] %v1525
        %1532 = vst [vmem:[%s1530 + $0x8] sm:$0xff] %v1526
        %1533 = vst [vmem:[%s1530 + $0x10] sm:$0xff] %v1527
        %1534 = vst [vmem:[%s1530 + $0x18] sm:$0xff] %v1528
        %1535 = vst [vmem:[%s1530 + $0x20] sm:$0xff] %v1529
        %s1536 = sand.u32 %s139, 1
        %s1537 = sand.u32 %s139, 1
        %s1538 = smul.addr %s1537, 80
        %s1539 = scalar_lea.vmem [#allocation3], %s1538
        // Predicated region
        $region67: #{dp_block_forward.3} parent=61 // pred_check
          %p1540 = pneg %p149
        $region68: #{dp_block_forward.3} parent=61 // pred_check_branch
          %1542 = sbr.rel (%p1540) target = $region70
        $region69: #{dp_block_forward.3} parent=61 // pred_region
          %s1543 = smul.u32 5, %s16
          %s1544 = smul.addr %s1543, 8
          %s1545 = scalar_lea.vmem %s5, %s1544
          // Predicated region
          $region71: #{dp_block_forward.3} parent=69 // pred_check
            _
          $region72: #{dp_block_forward.3} parent=69 // pred_check_branch
            %1547 = sbr.rel (0) target = $region74
          $region73: #{dp_block_forward.3} parent=69 // pred_region
            // Predicated region
            $region75: #{dp_block_forward.3} parent=73 // pred_check
              _
            $region76: #{dp_block_forward.3} parent=73 // pred_check_branch
              %1549 = sbr.rel (0) target = $region78
            $region77: #{dp_block_forward.3} parent=73 // pred_region
              loop: start=0, step=1, limit=1
              $region79: #{dp_block_forward.3} parent=77 // loop_pre_header
                _
              $region80: #{dp_block_forward.3} parent=77 // loop_header
                %s1551 = sphi 0, %s1555
                %p1552 = scmp.ge.s32.totalorder %s1551, 1
                %s1556 = sphi %s1539, %s1539
                %s1557 = sphi %s1545, %s1545
              $region81: #{dp_block_forward.3} parent=77 // loop_header_branch
                %1554 = sbr.rel (%p1552) target = $region85
              $region82: #{dp_block_forward.3} parent=77 // loop_body
                %v1558 = vld [vmem:[%s1556] sm:$0xff]
                %1559 = vst [vmem:[%s1557] sm:$0xff] %v1558
                %v1560 = vld [vmem:[%s1556 + $0x8] sm:$0xff]
                %1561 = vst [vmem:[%s1557 + $0x8] sm:$0xff] %v1560
                %v1562 = vld [vmem:[%s1556 + $0x10] sm:$0xff]
                %1563 = vst [vmem:[%s1557 + $0x10] sm:$0xff] %v1562
                %v1564 = vld [vmem:[%s1556 + $0x18] sm:$0xff]
                %1565 = vst [vmem:[%s1557 + $0x18] sm:$0xff] %v1564
                %v1566 = vld [vmem:[%s1556 + $0x20] sm:$0xff]
                %1567 = vst [vmem:[%s1557 + $0x20] sm:$0xff] %v1566
                %v1568 = vld [vmem:[%s1556 + $0x28] sm:$0xff]
                %1569 = vst [vmem:[%s1557 + $0xc8] sm:$0xff] %v1568
                %v1570 = vld [vmem:[%s1556 + $0x30] sm:$0xff]
                %1571 = vst [vmem:[%s1557 + $0xd0] sm:$0xff] %v1570
                %v1572 = vld [vmem:[%s1556 + $0x38] sm:$0xff]
                %1573 = vst [vmem:[%s1557 + $0xd8] sm:$0xff] %v1572
                %v1574 = vld [vmem:[%s1556 + $0x40] sm:$0xff]
                %1575 = vst [vmem:[%s1557 + $0xe0] sm:$0xff] %v1574
                %v1576 = vld [vmem:[%s1556 + $0x48] sm:$0xff]
                %1577 = vst [vmem:[%s1557 + $0xe8] sm:$0xff] %v1576
              $region83: #{dp_block_forward.3} parent=77 // loop_footer
                %s1555 = sadd.s32 1, %s1551
              $region84: #{dp_block_forward.3} parent=77 // loop_footer_branch
                %1550 = sbr.rel target = $region80
              $region85: #{dp_block_forward.3} parent=77 // loop_exit
                _
            $region78: #{dp_block_forward.3} parent=73 // pred_fallthru
              _
            // Predicated region
            $region86: #{dp_block_forward.3} parent=73 // pred_check
              _
            $region87: #{dp_block_forward.3} parent=73 // pred_check_branch
              %1579 = sbr.rel target = $region89
            $region88: #{dp_block_forward.3} parent=73 // pred_region
              _
            $region89: #{dp_block_forward.3} parent=73 // pred_fallthru
              _
          $region74: #{dp_block_forward.3} parent=69 // pred_fallthru
            _
          %1580 = vnop
        $region70: #{dp_block_forward.3} parent=61 // pred_fallthru
          _
      $region62: #{dp_block_forward.3} parent=5 // pred_fallthru
        _
      %p1581 = scmp.le.s32.totalorder 2, %s11
      // Predicated region
      $region90: #{dp_block_forward.3} parent=5 // pred_check
        %p1582 = pneg %p1581
      $region91: #{dp_block_forward.3} parent=5 // pred_check_branch
        %1584 = sbr.rel (%p1582) target = $region93
      $region92: #{dp_block_forward.3} parent=5 // pred_region
        %s1585 = ssub.s32 %s11, 2
        // Predicated region
        $region94: #{dp_block_forward.3} parent=92 // pred_check
          %p1586 = pneg %p155
        $region95: #{dp_block_forward.3} parent=92 // pred_check_branch
          %1588 = sbr.rel (%p1586) target = $region97
        $region96: #{dp_block_forward.3} parent=92 // pred_region
          %s1589 = sand.u32 %s140, 1
          %s1590 = sand.u32 %s140, 1
          %s1591 = smul.addr %s1590, 80
          %s1592 = scalar_lea.vmem [#allocation3], %s1591
        $region97: #{dp_block_forward.3} parent=92 // pred_fallthru
          _
      $region93: #{dp_block_forward.3} parent=5 // pred_fallthru
        _
    $region6: #{dp_block_forward.3} parent=1 // loop_footer
      %s15 = sadd.s32 1, %s11
    $region7: #{dp_block_forward.3} parent=1 // loop_footer_branch
      %10 = sbr.rel target = $region3
    $region8: #{dp_block_forward.3} parent=1 // loop_exit
      _

// kernel: dp_block_forward.2
$region0: #{dp_block_forward.2}
  #allocation0 [shape = 'u32[]', space=smem, size = 0x4, offset = 0x4, fixed_abs, tag = 'smem constant byte address 0x4 - core index']
  #allocation1 [shape = 'u32[144,128]{1,0:T(1,128)}', space=vmem, size = 0x12000, scoped, tag = 'internal scratch']
  %s0 = inlined_call_operand.vmem [shape: f32[2,4,3200], index: 0, kind: input, shape index: {}]
  %s1 = inlined_call_operand.vmem [shape: f32[8,4], index: 1, kind: input, shape index: {}]
  %s2 = inlined_call_operand.vmem [shape: f32[8,1], index: 2, kind: input, shape index: {}]
  %s3 = inlined_call_operand.vmem [shape: f32[8,1], index: 3, kind: input, shape index: {}]
  %s4 = inlined_call_operand.vmem [shape: f32[8,1], index: 4, kind: output, shape index: {0}]
  %s5 = inlined_call_operand.vmem [shape: f32[8,1], index: 5, kind: output, shape index: {1}]
  %6 = xla_tuple %s4, %s5
  %s7 = sld [smem:[#allocation0]]
  $region34: #{dp_block_forward.2} parent=0
    _
  %s9 = ssub.s32 1, %s7
  %s10 = scalar_select 0, %s9, %s7
  // Predicated region
  $region2: #{dp_block_forward.2} parent=0 // pred_check
    _
  $region3: #{dp_block_forward.2} parent=0 // pred_check_branch
    %12 = sbr.rel (0) target = $region5
  $region4: #{dp_block_forward.2} parent=0 // pred_region
    _
  $region5: #{dp_block_forward.2} parent=0 // pred_fallthru
    _
  // Predicated region
  $region6: #{dp_block_forward.2} parent=0 // pred_check
    _
  $region7: #{dp_block_forward.2} parent=0 // pred_check_branch
    %14 = sbr.rel (0) target = $region9
  $region8: #{dp_block_forward.2} parent=0 // pred_region
    _
  $region9: #{dp_block_forward.2} parent=0 // pred_fallthru
    _
  // Predicated region
  $region10: #{dp_block_forward.2} parent=0 // pred_check
    _
  $region11: #{dp_block_forward.2} parent=0 // pred_check_branch
    %16 = sbr.rel (0) target = $region13
  $region12: #{dp_block_forward.2} parent=0 // pred_region
    _
  $region13: #{dp_block_forward.2} parent=0 // pred_fallthru
    _
  // Predicated region
  $region14: #{dp_block_forward.2} parent=0 // pred_check
    _
  $region15: #{dp_block_forward.2} parent=0 // pred_check_branch
    %18 = sbr.rel (0) target = $region17
  $region16: #{dp_block_forward.2} parent=0 // pred_region
    _
  $region17: #{dp_block_forward.2} parent=0 // pred_fallthru
    _
  %v19 = vld [vmem:[%s1] sm:$0xff]
  %v20 = vld [vmem:[%s0] sm:$0xff]
  %v21 = vld [vmem:[%s0 + $0x8] sm:$0xff]
  %v22 = vld [vmem:[%s0 + $0x10] sm:$0xff]
  %v23 = vld [vmem:[%s0 + $0x18] sm:$0xff]
  %v24 = vld [vmem:[%s0 + $0x20] sm:$0xff]
  %v25 = vld [vmem:[%s0 + $0x28] sm:$0xff]
  %v26 = vld [vmem:[%s0 + $0x30] sm:$0xff]
  %v27 = vld [vmem:[%s0 + $0x38] sm:$0xff]
  %v28 = vld [vmem:[%s0 + $0x40] sm:$0xff]
  %v29 = vld [vmem:[%s0 + $0x48] sm:$0xff]
  %v30 = vld [vmem:[%s0 + $0x50] sm:$0xff]
  %v31 = vld [vmem:[%s0 + $0x58] sm:$0xff]
  %v32 = vld [vmem:[%s0 + $0x60] sm:$0xf]
  %v45 = vcombine.high %v20, %v20
  %v46 = vcombine.high %v21, %v21
  %v47 = vcombine.high %v22, %v22
  %v48 = vcombine.high %v23, %v23
  %v49 = vcombine.high %v24, %v24
  %v50 = vcombine.high %v25, %v25
  %v51 = vcombine.high %v26, %v26
  %v52 = vcombine.high %v27, %v27
  %v53 = vcombine.high %v28, %v28
  %v54 = vcombine.high %v29, %v29
  %v55 = vcombine.high %v30, %v30
  %v56 = vcombine.high %v31, %v31
  %vm69 = vcmask 1043456
  %v70 = vsel %vm69, %v20, 1.0
  %v71 = vsel %vm69, %v45, 1.0
  %v72 = vsel %vm69, %v21, 1.0
  %v73 = vsel %vm69, %v46, 1.0
  %v74 = vsel %vm69, %v22, 1.0
  %v75 = vsel %vm69, %v47, 1.0
  %v76 = vsel %vm69, %v23, 1.0
  %v77 = vsel %vm69, %v48, 1.0
  %v78 = vsel %vm69, %v24, 1.0
  %v79 = vsel %vm69, %v49, 1.0
  %v80 = vsel %vm69, %v25, 1.0
  %v81 = vsel %vm69, %v50, 1.0
  %v82 = vsel %vm69, %v26, 1.0
  %v83 = vsel %vm69, %v51, 1.0
  %v84 = vsel %vm69, %v27, 1.0
  %v85 = vsel %vm69, %v52, 1.0
  %v86 = vsel %vm69, %v28, 1.0
  %v87 = vsel %vm69, %v53, 1.0
  %v88 = vsel %vm69, %v29, 1.0
  %v89 = vsel %vm69, %v54, 1.0
  %v90 = vsel %vm69, %v30, 1.0
  %v91 = vsel %vm69, %v55, 1.0
  %v92 = vsel %vm69, %v31, 1.0
  %v93 = vsel %vm69, %v56, 1.0
  %v94 = vsel %vm69, %v32, 1.0
  %s95 = scalar_lea.vmem %s0, 100
  %v96 = vld [vmem:[%s95] sm:$0xff]
  %v97 = vld [vmem:[%s95 + $0x8] sm:$0xff]
  %v98 = vld [vmem:[%s95 + $0x10] sm:$0xff]
  %v99 = vld [vmem:[%s95 + $0x18] sm:$0xff]
  %v100 = vld [vmem:[%s95 + $0x20] sm:$0xff]
  %v101 = vld [vmem:[%s95 + $0x28] sm:$0xff]
  %v102 = vld [vmem:[%s95 + $0x30] sm:$0xff]
  %v103 = vld [vmem:[%s95 + $0x38] sm:$0xff]
  %v104 = vld [vmem:[%s95 + $0x40] sm:$0xff]
  %v105 = vld [vmem:[%s95 + $0x48] sm:$0xff]
  %v106 = vld [vmem:[%s95 + $0x50] sm:$0xff]
  %v107 = vld [vmem:[%s95 + $0x58] sm:$0xff]
  %v108 = vld [vmem:[%s95 + $0x60] sm:$0xf]
  %v121 = vcombine.high %v96, %v96
  %v122 = vcombine.high %v97, %v97
  %v123 = vcombine.high %v98, %v98
  %v124 = vcombine.high %v99, %v99
  %v125 = vcombine.high %v100, %v100
  %v126 = vcombine.high %v101, %v101
  %v127 = vcombine.high %v102, %v102
  %v128 = vcombine.high %v103, %v103
  %v129 = vcombine.high %v104, %v104
  %v130 = vcombine.high %v105, %v105
  %v131 = vcombine.high %v106, %v106
  %v132 = vcombine.high %v107, %v107
  %v145 = vsel %vm69, %v96, 1.0
  %v146 = vsel %vm69, %v121, 1.0
  %v147 = vsel %vm69, %v97, 1.0
  %v148 = vsel %vm69, %v122, 1.0
  %v149 = vsel %vm69, %v98, 1.0
  %v150 = vsel %vm69, %v123, 1.0
  %v151 = vsel %vm69, %v99, 1.0
  %v152 = vsel %vm69, %v124, 1.0
  %v153 = vsel %vm69, %v100, 1.0
  %v154 = vsel %vm69, %v125, 1.0
  %v155 = vsel %vm69, %v101, 1.0
  %v156 = vsel %vm69, %v126, 1.0
  %v157 = vsel %vm69, %v102, 1.0
  %v158 = vsel %vm69, %v127, 1.0
  %v159 = vsel %vm69, %v103, 1.0
  %v160 = vsel %vm69, %v128, 1.0
  %v161 = vsel %vm69, %v104, 1.0
  %v162 = vsel %vm69, %v129, 1.0
  %v163 = vsel %vm69, %v105, 1.0
  %v164 = vsel %vm69, %v130, 1.0
  %v165 = vsel %vm69, %v106, 1.0
  %v166 = vsel %vm69, %v131, 1.0
  %v167 = vsel %vm69, %v107, 1.0
  %v168 = vsel %vm69, %v132, 1.0
  %v169 = vsel %vm69, %v108, 1.0
  %170 = vmatprep.subr.mxu0 %v146
  %171 = vmatpush1.xpose.msra.mxu0 %v145
  %172 = vmatprep.subr.mxu0 0.0
  %173 = vmatpush1.xpose.msra.mxu0 0.0
  %174 = vmatprep.subr.mxu0 0.0
  %175 = vmatpush1.xpose.msra.mxu0 0.0
  %176 = vmatprep.subr.mxu0 0.0
  %177 = vmatpush1.xpose.msra.mxu0 0.0
  %178 = vmatprep.subr.mxu0 0.0
  %179 = vmatpush1.xpose.msra.mxu0 0.0
  %180 = vmatprep.subr.mxu0 0.0
  %181 = vmatpush1.xpose.msra.mxu0 0.0
  %182 = vmatprep.subr.mxu0 0.0
  %183 = vmatpush1.xpose.msra.mxu0 0.0
  %184 = vmatprep.subr.mxu0 0.0
  %185 = vmatpush1.xpose.msra.mxu0 0.0
  %186 = vmatprep.subr.mxu0 0.0
  %187 = vmatpush1.xpose.msra.mxu0 0.0
  %188 = vmatprep.subr.mxu0 0.0
  %189 = vmatpush1.xpose.msra.mxu0 0.0
  %190 = vmatprep.subr.mxu0 0.0
  %191 = vmatpush1.xpose.msra.mxu0 0.0
  %192 = vmatprep.subr.mxu0 0.0
  %193 = vmatpush1.xpose.msra.mxu0 0.0
  %194 = vmatprep.subr.mxu0 0.0
  %195 = vmatpush1.xpose.msra.mxu0 0.0
  %196 = vmatprep.subr.mxu0 0.0
  %197 = vmatpush1.xpose.msra.mxu0 0.0
  %198 = vmatprep.subr.mxu0 0.0
  %199 = vmatpush1.xpose.msra.mxu0 0.0
  %200 = vmatprep.subr.mxu0 0.0
  %201 = vmatpush1.xpose.msra.mxu0 0.0
  %202 = vmatprep.subr.mxu0 0.0
  %203 = vmatpush1.xpose.msra.mxu0 0.0
  %204 = vmatprep.subr.mxu0 0.0
  %205 = vmatpush1.xpose.msra.mxu0 0.0
  %206 = vmatprep.subr.mxu0 0.0
  %207 = vmatpush1.xpose.msra.mxu0 0.0
  %208 = vmatprep.subr.mxu0 0.0
  %209 = vmatpush1.xpose.msra.mxu0 0.0
  %210 = vmatprep.subr.mxu0 0.0
  %211 = vmatpush1.xpose.msra.mxu0 0.0
  %212 = vmatprep.subr.mxu0 0.0
  %213 = vmatpush1.xpose.msra.mxu0 0.0
  %214 = vmatprep.subr.mxu0 0.0
  %215 = vmatpush1.xpose.msra.mxu0 0.0
  %216 = vmatprep.subr.mxu0 0.0
  %217 = vmatpush1.xpose.msra.mxu0 0.0
  %218 = vmatprep.subr.mxu0 0.0
  %219 = vmatpush1.xpose.msra.mxu0 0.0
  %220 = vmatprep.subr.mxu0 0.0
  %221 = vmatpush1.xpose.msra.mxu0 0.0
  %222 = vmatprep.subr.mxu0 0.0
  %223 = vmatpush1.xpose.msra.mxu0 0.0
  %224 = vmatprep.subr.mxu0 0.0
  %225 = vmatpush1.xpose.msra.mxu0 0.0
  %226 = vmatprep.subr.mxu0 0.0
  %227 = vmatpush1.xpose.msra.mxu0 0.0
  %228 = vmatprep.subr.mxu0 0.0
  %229 = vmatpush1.xpose.msra.mxu0 0.0
  %230 = vmatprep.subr.mxu0 0.0
  %231 = vmatpush1.xpose.msra.mxu0 0.0
  %232 = vmatprep.subr.mxu0 0.0
  %233 = vmatpush1.xpose.msra.mxu0 0.0
  %234 = vmatprep.mubr.f32.mxu0 %v146
  %235 = vmatmul.mubr.f32.gmra.mrb[0].mxu0 %v145
  %v236 = vpop.f32.mrb[0].mxu0
  %v237 = vadd.f32 0.0, %v236
  %v238 = vpop.f32.mrb[0].mxu0
  %239 = vdwg.mxu0
  %240 = vmatprep.subr.mxu0 %v148
  %241 = vmatpush1.xpose.msra.mxu0 %v147
  %242 = vmatprep.subr.mxu0 0.0
  %243 = vmatpush1.xpose.msra.mxu0 0.0
  %244 = vmatprep.subr.mxu0 0.0
  %245 = vmatpush1.xpose.msra.mxu0 0.0
  %246 = vmatprep.subr.mxu0 0.0
  %247 = vmatpush1.xpose.msra.mxu0 0.0
  %248 = vmatprep.subr.mxu0 0.0
  %249 = vmatpush1.xpose.msra.mxu0 0.0
  %250 = vmatprep.subr.mxu0 0.0
  %251 = vmatpush1.xpose.msra.mxu0 0.0
  %252 = vmatprep.subr.mxu0 0.0
  %253 = vmatpush1.xpose.msra.mxu0 0.0
  %254 = vmatprep.subr.mxu0 0.0
  %255 = vmatpush1.xpose.msra.mxu0 0.0
  %256 = vmatprep.subr.mxu0 0.0
  %257 = vmatpush1.xpose.msra.mxu0 0.0
  %258 = vmatprep.subr.mxu0 0.0
  %259 = vmatpush1.xpose.msra.mxu0 0.0
  %260 = vmatprep.subr.mxu0 0.0
  %261 = vmatpush1.xpose.msra.mxu0 0.0
  %262 = vmatprep.subr.mxu0 0.0
  %263 = vmatpush1.xpose.msra.mxu0 0.0
  %264 = vmatprep.subr.mxu0 0.0
  %265 = vmatpush1.xpose.msra.mxu0 0.0
  %266 = vmatprep.subr.mxu0 0.0
  %267 = vmatpush1.xpose.msra.mxu0 0.0
  %268 = vmatprep.subr.mxu0 0.0
  %269 = vmatpush1.xpose.msra.mxu0 0.0
  %270 = vmatprep.subr.mxu0 0.0
  %271 = vmatpush1.xpose.msra.mxu0 0.0
  %272 = vmatprep.subr.mxu0 0.0
  %273 = vmatpush1.xpose.msra.mxu0 0.0
  %274 = vmatprep.subr.mxu0 0.0
  %275 = vmatpush1.xpose.msra.mxu0 0.0
  %276 = vmatprep.subr.mxu0 0.0
  %277 = vmatpush1.xpose.msra.mxu0 0.0
  %278 = vmatprep.subr.mxu0 0.0
  %279 = vmatpush1.xpose.msra.mxu0 0.0
  %280 = vmatprep.subr.mxu0 0.0
  %281 = vmatpush1.xpose.msra.mxu0 0.0
  %282 = vmatprep.subr.mxu0 0.0
  %283 = vmatpush1.xpose.msra.mxu0 0.0
  %284 = vmatprep.subr.mxu0 0.0
  %285 = vmatpush1.xpose.msra.mxu0 0.0
  %286 = vmatprep.subr.mxu0 0.0
  %287 = vmatpush1.xpose.msra.mxu0 0.0
  %288 = vmatprep.subr.mxu0 0.0
  %289 = vmatpush1.xpose.msra.mxu0 0.0
  %290 = vmatprep.subr.mxu0 0.0
  %291 = vmatpush1.xpose.msra.mxu0 0.0
  %292 = vmatprep.subr.mxu0 0.0
  %293 = vmatpush1.xpose.msra.mxu0 0.0
  %294 = vmatprep.subr.mxu0 0.0
  %295 = vmatpush1.xpose.msra.mxu0 0.0
  %296 = vmatprep.subr.mxu0 0.0
  %297 = vmatpush1.xpose.msra.mxu0 0.0
  %298 = vmatprep.subr.mxu0 0.0
  %299 = vmatpush1.xpose.msra.mxu0 0.0
  %300 = vmatprep.subr.mxu0 0.0
  %301 = vmatpush1.xpose.msra.mxu0 0.0
  %302 = vmatprep.subr.mxu0 0.0
  %303 = vmatpush1.xpose.msra.mxu0 0.0
  %304 = vmatprep.mubr.f32.mxu0 %v148
  %305 = vmatmul.mubr.f32.gmra.mrb[0].mxu0 %v147
  %v306 = vpop.f32.mrb[0].mxu0
  %v307 = vadd.f32 %v237, %v306
  %v308 = vpop.f32.mrb[0].mxu0
  %309 = vdwg.mxu0
  %310 = vmatprep.subr.mxu0 %v150
  %311 = vmatpush1.xpose.msra.mxu0 %v149
  %312 = vmatprep.subr.mxu0 0.0
  %313 = vmatpush1.xpose.msra.mxu0 0.0
  %314 = vmatprep.subr.mxu0 0.0
  %315 = vmatpush1.xpose.msra.mxu0 0.0
  %316 = vmatprep.subr.mxu0 0.0
  %317 = vmatpush1.xpose.msra.mxu0 0.0
  %318 = vmatprep.subr.mxu0 0.0
  %319 = vmatpush1.xpose.msra.mxu0 0.0
  %320 = vmatprep.subr.mxu0 0.0
  %321 = vmatpush1.xpose.msra.mxu0 0.0
  %322 = vmatprep.subr.mxu0 0.0
  %323 = vmatpush1.xpose.msra.mxu0 0.0
  %324 = vmatprep.subr.mxu0 0.0
  %325 = vmatpush1.xpose.msra.mxu0 0.0
  %326 = vmatprep.subr.mxu0 0.0
  %327 = vmatpush1.xpose.msra.mxu0 0.0
  %328 = vmatprep.subr.mxu0 0.0
  %329 = vmatpush1.xpose.msra.mxu0 0.0
  %330 = vmatprep.subr.mxu0 0.0
  %331 = vmatpush1.xpose.msra.mxu0 0.0
  %332 = vmatprep.subr.mxu0 0.0
  %333 = vmatpush1.xpose.msra.mxu0 0.0
  %334 = vmatprep.subr.mxu0 0.0
  %335 = vmatpush1.xpose.msra.mxu0 0.0
  %336 = vmatprep.subr.mxu0 0.0
  %337 = vmatpush1.xpose.msra.mxu0 0.0
  %338 = vmatprep.subr.mxu0 0.0
  %339 = vmatpush1.xpose.msra.mxu0 0.0
  %340 = vmatprep.subr.mxu0 0.0
  %341 = vmatpush1.xpose.msra.mxu0 0.0
  %342 = vmatprep.subr.mxu0 0.0
  %343 = vmatpush1.xpose.msra.mxu0 0.0
  %344 = vmatprep.subr.mxu0 0.0
  %345 = vmatpush1.xpose.msra.mxu0 0.0
  %346 = vmatprep.subr.mxu0 0.0
  %347 = vmatpush1.xpose.msra.mxu0 0.0
  %348 = vmatprep.subr.mxu0 0.0
  %349 = vmatpush1.xpose.msra.mxu0 0.0
  %350 = vmatprep.subr.mxu0 0.0
  %351 = vmatpush1.xpose.msra.mxu0 0.0
  %352 = vmatprep.subr.mxu0 0.0
  %353 = vmatpush1.xpose.msra.mxu0 0.0
  %354 = vmatprep.subr.mxu0 0.0
  %355 = vmatpush1.xpose.msra.mxu0 0.0
  %356 = vmatprep.subr.mxu0 0.0
  %357 = vmatpush1.xpose.msra.mxu0 0.0
  %358 = vmatprep.subr.mxu0 0.0
  %359 = vmatpush1.xpose.msra.mxu0 0.0
  %360 = vmatprep.subr.mxu0 0.0
  %361 = vmatpush1.xpose.msra.mxu0 0.0
  %362 = vmatprep.subr.mxu0 0.0
  %363 = vmatpush1.xpose.msra.mxu0 0.0
  %364 = vmatprep.subr.mxu0 0.0
  %365 = vmatpush1.xpose.msra.mxu0 0.0
  %366 = vmatprep.subr.mxu0 0.0
  %367 = vmatpush1.xpose.msra.mxu0 0.0
  %368 = vmatprep.subr.mxu0 0.0
  %369 = vmatpush1.xpose.msra.mxu0 0.0
  %370 = vmatprep.subr.mxu0 0.0
  %371 = vmatpush1.xpose.msra.mxu0 0.0
  %372 = vmatprep.subr.mxu0 0.0
  %373 = vmatpush1.xpose.msra.mxu0 0.0
  %374 = vmatprep.mubr.f32.mxu0 %v150
  %375 = vmatmul.mubr.f32.gmra.mrb[0].mxu0 %v149
  %v376 = vpop.f32.mrb[0].mxu0
  %v377 = vadd.f32 %v307, %v376
  %v378 = vpop.f32.mrb[0].mxu0
  %379 = vdwg.mxu0
  %380 = vmatprep.subr.mxu0 %v152
  %381 = vmatpush1.xpose.msra.mxu0 %v151
  %382 = vmatprep.subr.mxu0 0.0
  %383 = vmatpush1.xpose.msra.mxu0 0.0
  %384 = vmatprep.subr.mxu0 0.0
  %385 = vmatpush1.xpose.msra.mxu0 0.0
  %386 = vmatprep.subr.mxu0 0.0
  %387 = vmatpush1.xpose.msra.mxu0 0.0
  %388 = vmatprep.subr.mxu0 0.0
  %389 = vmatpush1.xpose.msra.mxu0 0.0
  %390 = vmatprep.subr.mxu0 0.0
  %391 = vmatpush1.xpose.msra.mxu0 0.0
  %392 = vmatprep.subr.mxu0 0.0
  %393 = vmatpush1.xpose.msra.mxu0 0.0
  %394 = vmatprep.subr.mxu0 0.0
  %395 = vmatpush1.xpose.msra.mxu0 0.0
  %396 = vmatprep.subr.mxu0 0.0
  %397 = vmatpush1.xpose.msra.mxu0 0.0
  %398 = vmatprep.subr.mxu0 0.0
  %399 = vmatpush1.xpose.msra.mxu0 0.0
  %400 = vmatprep.subr.mxu0 0.0
  %401 = vmatpush1.xpose.msra.mxu0 0.0
  %402 = vmatprep.subr.mxu0 0.0
  %403 = vmatpush1.xpose.msra.mxu0 0.0
  %404 = vmatprep.subr.mxu0 0.0
  %405 = vmatpush1.xpose.msra.mxu0 0.0
  %406 = vmatprep.subr.mxu0 0.0
  %407 = vmatpush1.xpose.msra.mxu0 0.0
  %408 = vmatprep.subr.mxu0 0.0
  %409 = vmatpush1.xpose.msra.mxu0 0.0
  %410 = vmatprep.subr.mxu0 0.0
  %411 = vmatpush1.xpose.msra.mxu0 0.0
  %412 = vmatprep.subr.mxu0 0.0
  %413 = vmatpush1.xpose.msra.mxu0 0.0
  %414 = vmatprep.subr.mxu0 0.0
  %415 = vmatpush1.xpose.msra.mxu0 0.0
  %416 = vmatprep.subr.mxu0 0.0
  %417 = vmatpush1.xpose.msra.mxu0 0.0
  %418 = vmatprep.subr.mxu0 0.0
  %419 = vmatpush1.xpose.msra.mxu0 0.0
  %420 = vmatprep.subr.mxu0 0.0
  %421 = vmatpush1.xpose.msra.mxu0 0.0
  %422 = vmatprep.subr.mxu0 0.0
  %423 = vmatpush1.xpose.msra.mxu0 0.0
  %424 = vmatprep.subr.mxu0 0.0
  %425 = vmatpush1.xpose.msra.mxu0 0.0
  %426 = vmatprep.subr.mxu0 0.0
  %427 = vmatpush1.xpose.msra.mxu0 0.0
  %428 = vmatprep.subr.mxu0 0.0
  %429 = vmatpush1.xpose.msra.mxu0 0.0
  %430 = vmatprep.subr.mxu0 0.0
  %431 = vmatpush1.xpose.msra.mxu0 0.0
  %432 = vmatprep.subr.mxu0 0.0
  %433 = vmatpush1.xpose.msra.mxu0 0.0
  %434 = vmatprep.subr.mxu0 0.0
  %435 = vmatpush1.xpose.msra.mxu0 0.0
  %436 = vmatprep.subr.mxu0 0.0
  %437 = vmatpush1.xpose.msra.mxu0 0.0
  %438 = vmatprep.subr.mxu0 0.0
  %439 = vmatpush1.xpose.msra.mxu0 0.0
  %440 = vmatprep.subr.mxu0 0.0
  %441 = vmatpush1.xpose.msra.mxu0 0.0
  %442 = vmatprep.subr.mxu0 0.0
  %443 = vmatpush1.xpose.msra.mxu0 0.0
  %444 = vmatprep.mubr.f32.mxu0 %v152
  %445 = vmatmul.mubr.f32.gmra.mrb[0].mxu0 %v151
  %v446 = vpop.f32.mrb[0].mxu0
  %v447 = vadd.f32 %v377, %v446
  %v448 = vpop.f32.mrb[0].mxu0
  %449 = vdwg.mxu0
  %450 = vmatprep.subr.mxu0 %v154
  %451 = vmatpush1.xpose.msra.mxu0 %v153
  %452 = vmatprep.subr.mxu0 0.0
  %453 = vmatpush1.xpose.msra.mxu0 0.0
  %454 = vmatprep.subr.mxu0 0.0
  %455 = vmatpush1.xpose.msra.mxu0 0.0
  %456 = vmatprep.subr.mxu0 0.0
  %457 = vmatpush1.xpose.msra.mxu0 0.0
  %458 = vmatprep.subr.mxu0 0.0
  %459 = vmatpush1.xpose.msra.mxu0 0.0
  %460 = vmatprep.subr.mxu0 0.0
  %461 = vmatpush1.xpose.msra.mxu0 0.0
  %462 = vmatprep.subr.mxu0 0.0
  %463 = vmatpush1.xpose.msra.mxu0 0.0
  %464 = vmatprep.subr.mxu0 0.0
  %465 = vmatpush1.xpose.msra.mxu0 0.0
  %466 = vmatprep.subr.mxu0 0.0
  %467 = vmatpush1.xpose.msra.mxu0 0.0
  %468 = vmatprep.subr.mxu0 0.0
  %469 = vmatpush1.xpose.msra.mxu0 0.0
  %470 = vmatprep.subr.mxu0 0.0
  %471 = vmatpush1.xpose.msra.mxu0 0.0
  %472 = vmatprep.subr.mxu0 0.0
  %473 = vmatpush1.xpose.msra.mxu0 0.0
  %474 = vmatprep.subr.mxu0 0.0
  %475 = vmatpush1.xpose.msra.mxu0 0.0
  %476 = vmatprep.subr.mxu0 0.0
  %477 = vmatpush1.xpose.msra.mxu0 0.0
  %478 = vmatprep.subr.mxu0 0.0
  %479 = vmatpush1.xpose.msra.mxu0 0.0
  %480 = vmatprep.subr.mxu0 0.0
  %481 = vmatpush1.xpose.msra.mxu0 0.0
  %482 = vmatprep.subr.mxu0 0.0
  %483 = vmatpush1.xpose.msra.mxu0 0.0
  %484 = vmatprep.subr.mxu0 0.0
  %485 = vmatpush1.xpose.msra.mxu0 0.0
  %486 = vmatprep.subr.mxu0 0.0
  %487 = vmatpush1.xpose.msra.mxu0 0.0
  %488 = vmatprep.subr.mxu0 0.0
  %489 = vmatpush1.xpose.msra.mxu0 0.0
  %490 = vmatprep.subr.mxu0 0.0
  %491 = vmatpush1.xpose.msra.mxu0 0.0
  %492 = vmatprep.subr.mxu0 0.0
  %493 = vmatpush1.xpose.msra.mxu0 0.0
  %494 = vmatprep.subr.mxu0 0.0
  %495 = vmatpush1.xpose.msra.mxu0 0.0
  %496 = vmatprep.subr.mxu0 0.0
  %497 = vmatpush1.xpose.msra.mxu0 0.0
  %498 = vmatprep.subr.mxu0 0.0
  %499 = vmatpush1.xpose.msra.mxu0 0.0
  %500 = vmatprep.subr.mxu0 0.0
  %501 = vmatpush1.xpose.msra.mxu0 0.0
  %502 = vmatprep.subr.mxu0 0.0
  %503 = vmatpush1.xpose.msra.mxu0 0.0
  %504 = vmatprep.subr.mxu0 0.0
  %505 = vmatpush1.xpose.msra.mxu0 0.0
  %506 = vmatprep.subr.mxu0 0.0
  %507 = vmatpush1.xpose.msra.mxu0 0.0
  %508 = vmatprep.subr.mxu0 0.0
  %509 = vmatpush1.xpose.msra.mxu0 0.0
  %510 = vmatprep.subr.mxu0 0.0
  %511 = vmatpush1.xpose.msra.mxu0 0.0
  %512 = vmatprep.subr.mxu0 0.0
  %513 = vmatpush1.xpose.msra.mxu0 0.0
  %514 = vmatprep.mubr.f32.mxu0 %v154
  %515 = vmatmul.mubr.f32.gmra.mrb[0].mxu0 %v153
  %v516 = vpop.f32.mrb[0].mxu0
  %v517 = vadd.f32 %v447, %v516
  %v518 = vpop.f32.mrb[0].mxu0
  %519 = vdwg.mxu0
  %520 = vmatprep.subr.mxu0 %v156
  %521 = vmatpush1.xpose.msra.mxu0 %v155
  %522 = vmatprep.subr.mxu0 0.0
  %523 = vmatpush1.xpose.msra.mxu0 0.0
  %524 = vmatprep.subr.mxu0 0.0
  %525 = vmatpush1.xpose.msra.mxu0 0.0
  %526 = vmatprep.subr.mxu0 0.0
  %527 = vmatpush1.xpose.msra.mxu0 0.0
  %528 = vmatprep.subr.mxu0 0.0
  %529 = vmatpush1.xpose.msra.mxu0 0.0
  %530 = vmatprep.subr.mxu0 0.0
  %531 = vmatpush1.xpose.msra.mxu0 0.0
  %532 = vmatprep.subr.mxu0 0.0
  %533 = vmatpush1.xpose.msra.mxu0 0.0
  %534 = vmatprep.subr.mxu0 0.0
  %535 = vmatpush1.xpose.msra.mxu0 0.0
  %536 = vmatprep.subr.mxu0 0.0
  %537 = vmatpush1.xpose.msra.mxu0 0.0
  %538 = vmatprep.subr.mxu0 0.0
  %539 = vmatpush1.xpose.msra.mxu0 0.0
  %540 = vmatprep.subr.mxu0 0.0
  %541 = vmatpush1.xpose.msra.mxu0 0.0
  %542 = vmatprep.subr.mxu0 0.0
  %543 = vmatpush1.xpose.msra.mxu0 0.0
  %544 = vmatprep.subr.mxu0 0.0
  %545 = vmatpush1.xpose.msra.mxu0 0.0
  %546 = vmatprep.subr.mxu0 0.0
  %547 = vmatpush1.xpose.msra.mxu0 0.0
  %548 = vmatprep.subr.mxu0 0.0
  %549 = vmatpush1.xpose.msra.mxu0 0.0
  %550 = vmatprep.subr.mxu0 0.0
  %551 = vmatpush1.xpose.msra.mxu0 0.0
  %552 = vmatprep.subr.mxu0 0.0
  %553 = vmatpush1.xpose.msra.mxu0 0.0
  %554 = vmatprep.subr.mxu0 0.0
  %555 = vmatpush1.xpose.msra.mxu0 0.0
  %556 = vmatprep.subr.mxu0 0.0
  %557 = vmatpush1.xpose.msra.mxu0 0.0
  %558 = vmatprep.subr.mxu0 0.0
  %559 = vmatpush1.xpose.msra.mxu0 0.0
  %560 = vmatprep.subr.mxu0 0.0
  %561 = vmatpush1.xpose.msra.mxu0 0.0
  %562 = vmatprep.subr.mxu0 0.0
  %563 = vmatpush1.xpose.msra.mxu0 0.0
  %564 = vmatprep.subr.mxu0 0.0
  %565 = vmatpush1.xpose.msra.mxu0 0.0
  %566 = vmatprep.subr.mxu0 0.0
  %567 = vmatpush1.xpose.msra.mxu0 0.0
  %568 = vmatprep.subr.mxu0 0.0
  %569 = vmatpush1.xpose.msra.mxu0 0.0
  %570 = vmatprep.subr.mxu0 0.0
  %571 = vmatpush1.xpose.msra.mxu0 0.0
  %572 = vmatprep.subr.mxu0 0.0
  %573 = vmatpush1.xpose.msra.mxu0 0.0
  %574 = vmatprep.subr.mxu0 0.0
  %575 = vmatpush1.xpose.msra.mxu0 0.0
  %576 = vmatprep.subr.mxu0 0.0
  %577 = vmatpush1.xpose.msra.mxu0 0.0
  %578 = vmatprep.subr.mxu0 0.0
  %579 = vmatpush1.xpose.msra.mxu0 0.0
  %580 = vmatprep.subr.mxu0 0.0
  %581 = vmatpush1.xpose.msra.mxu0 0.0
  %582 = vmatprep.subr.mxu0 0.0
  %583 = vmatpush1.xpose.msra.mxu0 0.0
  %584 = vmatprep.mubr.f32.mxu0 %v156
  %585 = vmatmul.mubr.f32.gmra.mrb[0].mxu0 %v155
  %v586 = vpop.f32.mrb[0].mxu0
  %v587 = vadd.f32 %v517, %v586
  %v588 = vpop.f32.mrb[0].mxu0
  %589 = vdwg.mxu0
  %590 = vmatprep.subr.mxu0 %v158
  %591 = vmatpush1.xpose.msra.mxu0 %v157
  %592 = vmatprep.subr.mxu0 0.0
  %593 = vmatpush1.xpose.msra.mxu0 0.0
  %594 = vmatprep.subr.mxu0 0.0
  %595 = vmatpush1.xpose.msra.mxu0 0.0
  %596 = vmatprep.subr.mxu0 0.0
  %597 = vmatpush1.xpose.msra.mxu0 0.0
  %598 = vmatprep.subr.mxu0 0.0
  %599 = vmatpush1.xpose.msra.mxu0 0.0
  %600 = vmatprep.subr.mxu0 0.0
  %601 = vmatpush1.xpose.msra.mxu0 0.0
  %602 = vmatprep.subr.mxu0 0.0
  %603 = vmatpush1.xpose.msra.mxu0 0.0
  %604 = vmatprep.subr.mxu0 0.0
  %605 = vmatpush1.xpose.msra.mxu0 0.0
  %606 = vmatprep.subr.mxu0 0.0
  %607 = vmatpush1.xpose.msra.mxu0 0.0
  %608 = vmatprep.subr.mxu0 0.0
  %609 = vmatpush1.xpose.msra.mxu0 0.0
  %610 = vmatprep.subr.mxu0 0.0
  %611 = vmatpush1.xpose.msra.mxu0 0.0
  %612 = vmatprep.subr.mxu0 0.0
  %613 = vmatpush1.xpose.msra.mxu0 0.0
  %614 = vmatprep.subr.mxu0 0.0
  %615 = vmatpush1.xpose.msra.mxu0 0.0
  %616 = vmatprep.subr.mxu0 0.0
  %617 = vmatpush1.xpose.msra.mxu0 0.0
  %618 = vmatprep.subr.mxu0 0.0
  %619 = vmatpush1.xpose.msra.mxu0 0.0
  %620 = vmatprep.subr.mxu0 0.0
  %621 = vmatpush1.xpose.msra.mxu0 0.0
  %622 = vmatprep.subr.mxu0 0.0
  %623 = vmatpush1.xpose.msra.mxu0 0.0
  %624 = vmatprep.subr.mxu0 0.0
  %625 = vmatpush1.xpose.msra.mxu0 0.0
  %626 = vmatprep.subr.mxu0 0.0
  %627 = vmatpush1.xpose.msra.mxu0 0.0
  %628 = vmatprep.subr.mxu0 0.0
  %629 = vmatpush1.xpose.msra.mxu0 0.0
  %630 = vmatprep.subr.mxu0 0.0
  %631 = vmatpush1.xpose.msra.mxu0 0.0
  %632 = vmatprep.subr.mxu0 0.0
  %633 = vmatpush1.xpose.msra.mxu0 0.0
  %634 = vmatprep.subr.mxu0 0.0
  %635 = vmatpush1.xpose.msra.mxu0 0.0
  %636 = vmatprep.subr.mxu0 0.0
  %637 = vmatpush1.xpose.msra.mxu0 0.0
  %638 = vmatprep.subr.mxu0 0.0
  %639 = vmatpush1.xpose.msra.mxu0 0.0
  %640 = vmatprep.subr.mxu0 0.0
  %641 = vmatpush1.xpose.msra.mxu0 0.0
  %642 = vmatprep.subr.mxu0 0.0
  %643 = vmatpush1.xpose.msra.mxu0 0.0
  %644 = vmatprep.subr.mxu0 0.0
  %645 = vmatpush1.xpose.msra.mxu0 0.0
  %646 = vmatprep.subr.mxu0 0.0
  %647 = vmatpush1.xpose.msra.mxu0 0.0
  %648 = vmatprep.subr.mxu0 0.0
  %649 = vmatpush1.xpose.msra.mxu0 0.0
  %650 = vmatprep.subr.mxu0 0.0
  %651 = vmatpush1.xpose.msra.mxu0 0.0
  %652 = vmatprep.subr.mxu0 0.0
  %653 = vmatpush1.xpose.msra.mxu0 0.0
  %654 = vmatprep.mubr.f32.mxu0 %v158
  %655 = vmatmul.mubr.f32.gmra.mrb[0].mxu0 %v157
  %v656 = vpop.f32.mrb[0].mxu0
  %v657 = vadd.f32 %v587, %v656
  %v658 = vpop.f32.mrb[0].mxu0
  %659 = vdwg.mxu0
  %660 = vmatprep.subr.mxu0 %v160
  %661 = vmatpush1.xpose.msra.mxu0 %v159
  %662 = vmatprep.subr.mxu0 0.0
  %663 = vmatpush1.xpose.msra.mxu0 0.0
  %664 = vmatprep.subr.mxu0 0.0
  %665 = vmatpush1.xpose.msra.mxu0 0.0
  %666 = vmatprep.subr.mxu0 0.0
  %667 = vmatpush1.xpose.msra.mxu0 0.0
  %668 = vmatprep.subr.mxu0 0.0
  %669 = vmatpush1.xpose.msra.mxu0 0.0
  %670 = vmatprep.subr.mxu0 0.0
  %671 = vmatpush1.xpose.msra.mxu0 0.0
  %672 = vmatprep.subr.mxu0 0.0
  %673 = vmatpush1.xpose.msra.mxu0 0.0
  %674 = vmatprep.subr.mxu0 0.0
  %675 = vmatpush1.xpose.msra.mxu0 0.0
  %676 = vmatprep.subr.mxu0 0.0
  %677 = vmatpush1.xpose.msra.mxu0 0.0
  %678 = vmatprep.subr.mxu0 0.0
  %679 = vmatpush1.xpose.msra.mxu0 0.0
  %680 = vmatprep.subr.mxu0 0.0
  %681 = vmatpush1.xpose.msra.mxu0 0.0
  %682 = vmatprep.subr.mxu0 0.0
  %683 = vmatpush1.xpose.msra.mxu0 0.0
  %684 = vmatprep.subr.mxu0 0.0
  %685 = vmatpush1.xpose.msra.mxu0 0.0
  %686 = vmatprep.subr.mxu0 0.0
  %687 = vmatpush1.xpose.msra.mxu0 0.0
  %688 = vmatprep.subr.mxu0 0.0
  %689 = vmatpush1.xpose.msra.mxu0 0.0
  %690 = vmatprep.subr.mxu0 0.0
  %691 = vmatpush1.xpose.msra.mxu0 0.0
  %692 = vmatprep.subr.mxu0 0.0
  %693 = vmatpush1.xpose.msra.mxu0 0.0
  %694 = vmatprep.subr.mxu0 0.0
  %695 = vmatpush1.xpose.msra.mxu0 0.0
  %696 = vmatprep.subr.mxu0 0.0
  %697 = vmatpush1.xpose.msra.mxu0 0.0
  %698 = vmatprep.subr.mxu0 0.0
  %699 = vmatpush1.xpose.msra.mxu0 0.0
  %700 = vmatprep.subr.mxu0 0.0
  %701 = vmatpush1.xpose.msra.mxu0 0.0
  %702 = vmatprep.subr.mxu0 0.0
  %703 = vmatpush1.xpose.msra.mxu0 0.0
  %704 = vmatprep.subr.mxu0 0.0
  %705 = vmatpush1.xpose.msra.mxu0 0.0
  %706 = vmatprep.subr.mxu0 0.0
  %707 = vmatpush1.xpose.msra.mxu0 0.0
  %708 = vmatprep.subr.mxu0 0.0
  %709 = vmatpush1.xpose.msra.mxu0 0.0
  %710 = vmatprep.subr.mxu0 0.0
  %711 = vmatpush1.xpose.msra.mxu0 0.0
  %712 = vmatprep.subr.mxu0 0.0
  %713 = vmatpush1.xpose.msra.mxu0 0.0
  %714 = vmatprep.subr.mxu0 0.0
  %715 = vmatpush1.xpose.msra.mxu0 0.0
  %716 = vmatprep.subr.mxu0 0.0
  %717 = vmatpush1.xpose.msra.mxu0 0.0
  %718 = vmatprep.subr.mxu0 0.0
  %719 = vmatpush1.xpose.msra.mxu0 0.0
  %720 = vmatprep.subr.mxu0 0.0
  %721 = vmatpush1.xpose.msra.mxu0 0.0
  %722 = vmatprep.subr.mxu0 0.0
  %723 = vmatpush1.xpose.msra.mxu0 0.0
  %724 = vmatprep.mubr.f32.mxu0 %v160
  %725 = vmatmul.mubr.f32.gmra.mrb[0].mxu0 %v159
  %v726 = vpop.f32.mrb[0].mxu0
  %v727 = vadd.f32 %v657, %v726
  %v728 = vpop.f32.mrb[0].mxu0
  %729 = vdwg.mxu0
  %730 = vmatprep.subr.mxu0 %v162
  %731 = vmatpush1.xpose.msra.mxu0 %v161
  %732 = vmatprep.subr.mxu0 0.0
  %733 = vmatpush1.xpose.msra.mxu0 0.0
  %734 = vmatprep.subr.mxu0 0.0
  %735 = vmatpush1.xpose.msra.mxu0 0.0
  %736 = vmatprep.subr.mxu0 0.0
  %737 = vmatpush1.xpose.msra.mxu0 0.0
  %738 = vmatprep.subr.mxu0 0.0
  %739 = vmatpush1.xpose.msra.mxu0 0.0
  %740 = vmatprep.subr.mxu0 0.0
  %741 = vmatpush1.xpose.msra.mxu0 0.0
  %742 = vmatprep.subr.mxu0 0.0
  %743 = vmatpush1.xpose.msra.mxu0 0.0
  %744 = vmatprep.subr.mxu0 0.0
  %745 = vmatpush1.xpose.msra.mxu0 0.0
  %746 = vmatprep.subr.mxu0 0.0
  %747 = vmatpush1.xpose.msra.mxu0 0.0
  %748 = vmatprep.subr.mxu0 0.0
  %749 = vmatpush1.xpose.msra.mxu0 0.0
  %750 = vmatprep.subr.mxu0 0.0
  %751 = vmatpush1.xpose.msra.mxu0 0.0
  %752 = vmatprep.subr.mxu0 0.0
  %753 = vmatpush1.xpose.msra.mxu0 0.0
  %754 = vmatprep.subr.mxu0 0.0
  %755 = vmatpush1.xpose.msra.mxu0 0.0
  %756 = vmatprep.subr.mxu0 0.0
  %757 = vmatpush1.xpose.msra.mxu0 0.0
  %758 = vmatprep.subr.mxu0 0.0
  %759 = vmatpush1.xpose.msra.mxu0 0.0
  %760 = vmatprep.subr.mxu0 0.0
  %761 = vmatpush1.xpose.msra.mxu0 0.0
  %762 = vmatprep.subr.mxu0 0.0
  %763 = vmatpush1.xpose.msra.mxu0 0.0
  %764 = vmatprep.subr.mxu0 0.0
  %765 = vmatpush1.xpose.msra.mxu0 0.0
  %766 = vmatprep.subr.mxu0 0.0
  %767 = vmatpush1.xpose.msra.mxu0 0.0
  %768 = vmatprep.subr.mxu0 0.0
  %769 = vmatpush1.xpose.msra.mxu0 0.0
  %770 = vmatprep.subr.mxu0 0.0
  %771 = vmatpush1.xpose.msra.mxu0 0.0
  %772 = vmatprep.subr.mxu0 0.0
  %773 = vmatpush1.xpose.msra.mxu0 0.0
  %774 = vmatprep.subr.mxu0 0.0
  %775 = vmatpush1.xpose.msra.mxu0 0.0
  %776 = vmatprep.subr.mxu0 0.0
  %777 = vmatpush1.xpose.msra.mxu0 0.0
  %778 = vmatprep.subr.mxu0 0.0
  %779 = vmatpush1.xpose.msra.mxu0 0.0
  %780 = vmatprep.subr.mxu0 0.0
  %781 = vmatpush1.xpose.msra.mxu0 0.0
  %782 = vmatprep.subr.mxu0 0.0
  %783 = vmatpush1.xpose.msra.mxu0 0.0
  %784 = vmatprep.subr.mxu0 0.0
  %785 = vmatpush1.xpose.msra.mxu0 0.0
  %786 = vmatprep.subr.mxu0 0.0
  %787 = vmatpush1.xpose.msra.mxu0 0.0
  %788 = vmatprep.subr.mxu0 0.0
  %789 = vmatpush1.xpose.msra.mxu0 0.0
  %790 = vmatprep.subr.mxu0 0.0
  %791 = vmatpush1.xpose.msra.mxu0 0.0
  %792 = vmatprep.subr.mxu0 0.0
  %793 = vmatpush1.xpose.msra.mxu0 0.0
  %794 = vmatprep.mubr.f32.mxu0 %v162
  %795 = vmatmul.mubr.f32.gmra.mrb[0].mxu0 %v161
  %v796 = vpop.f32.mrb[0].mxu0
  %v797 = vadd.f32 %v727, %v796
  %v798 = vpop.f32.mrb[0].mxu0
  %799 = vdwg.mxu0
  %800 = vmatprep.subr.mxu0 %v164
  %801 = vmatpush1.xpose.msra.mxu0 %v163
  %802 = vmatprep.subr.mxu0 0.0
  %803 = vmatpush1.xpose.msra.mxu0 0.0
  %804 = vmatprep.subr.mxu0 0.0
  %805 = vmatpush1.xpose.msra.mxu0 0.0
  %806 = vmatprep.subr.mxu0 0.0
  %807 = vmatpush1.xpose.msra.mxu0 0.0
  %808 = vmatprep.subr.mxu0 0.0
  %809 = vmatpush1.xpose.msra.mxu0 0.0
  %810 = vmatprep.subr.mxu0 0.0
  %811 = vmatpush1.xpose.msra.mxu0 0.0
  %812 = vmatprep.subr.mxu0 0.0
  %813 = vmatpush1.xpose.msra.mxu0 0.0
  %814 = vmatprep.subr.mxu0 0.0
  %815 = vmatpush1.xpose.msra.mxu0 0.0
  %816 = vmatprep.subr.mxu0 0.0
  %817 = vmatpush1.xpose.msra.mxu0 0.0
  %818 = vmatprep.subr.mxu0 0.0
  %819 = vmatpush1.xpose.msra.mxu0 0.0
  %820 = vmatprep.subr.mxu0 0.0
  %821 = vmatpush1.xpose.msra.mxu0 0.0
  %822 = vmatprep.subr.mxu0 0.0
  %823 = vmatpush1.xpose.msra.mxu0 0.0
  %824 = vmatprep.subr.mxu0 0.0
  %825 = vmatpush1.xpose.msra.mxu0 0.0
  %826 = vmatprep.subr.mxu0 0.0
  %827 = vmatpush1.xpose.msra.mxu0 0.0
  %828 = vmatprep.subr.mxu0 0.0
  %829 = vmatpush1.xpose.msra.mxu0 0.0
  %830 = vmatprep.subr.mxu0 0.0
  %831 = vmatpush1.xpose.msra.mxu0 0.0
  %832 = vmatprep.subr.mxu0 0.0
  %833 = vmatpush1.xpose.msra.mxu0 0.0
  %834 = vmatprep.subr.mxu0 0.0
  %835 = vmatpush1.xpose.msra.mxu0 0.0
  %836 = vmatprep.subr.mxu0 0.0
  %837 = vmatpush1.xpose.msra.mxu0 0.0
  %838 = vmatprep.subr.mxu0 0.0
  %839 = vmatpush1.xpose.msra.mxu0 0.0
  %840 = vmatprep.subr.mxu0 0.0
  %841 = vmatpush1.xpose.msra.mxu0 0.0
  %842 = vmatprep.subr.mxu0 0.0
  %843 = vmatpush1.xpose.msra.mxu0 0.0
  %844 = vmatprep.subr.mxu0 0.0
  %845 = vmatpush1.xpose.msra.mxu0 0.0
  %846 = vmatprep.subr.mxu0 0.0
  %847 = vmatpush1.xpose.msra.mxu0 0.0
  %848 = vmatprep.subr.mxu0 0.0
  %849 = vmatpush1.xpose.msra.mxu0 0.0
  %850 = vmatprep.subr.mxu0 0.0
  %851 = vmatpush1.xpose.msra.mxu0 0.0
  %852 = vmatprep.subr.mxu0 0.0
  %853 = vmatpush1.xpose.msra.mxu0 0.0
  %854 = vmatprep.subr.mxu0 0.0
  %855 = vmatpush1.xpose.msra.mxu0 0.0
  %856 = vmatprep.subr.mxu0 0.0
  %857 = vmatpush1.xpose.msra.mxu0 0.0
  %858 = vmatprep.subr.mxu0 0.0
  %859 = vmatpush1.xpose.msra.mxu0 0.0
  %860 = vmatprep.subr.mxu0 0.0
  %861 = vmatpush1.xpose.msra.mxu0 0.0
  %862 = vmatprep.subr.mxu0 0.0
  %863 = vmatpush1.xpose.msra.mxu0 0.0
  %864 = vmatprep.mubr.f32.mxu0 %v164
  %865 = vmatmul.mubr.f32.gmra.mrb[0].mxu0 %v163
  %v866 = vpop.f32.mrb[0].mxu0
  %v867 = vadd.f32 %v797, %v866
  %v868 = vpop.f32.mrb[0].mxu0
  %869 = vdwg.mxu0
  %870 = vmatprep.subr.mxu0 %v166
  %871 = vmatpush1.xpose.msra.mxu0 %v165
  %872 = vmatprep.subr.mxu0 0.0
  %873 = vmatpush1.xpose.msra.mxu0 0.0
  %874 = vmatprep.subr.mxu0 0.0
  %875 = vmatpush1.xpose.msra.mxu0 0.0
  %876 = vmatprep.subr.mxu0 0.0
  %877 = vmatpush1.xpose.msra.mxu0 0.0
  %878 = vmatprep.subr.mxu0 0.0
  %879 = vmatpush1.xpose.msra.mxu0 0.0
  %880 = vmatprep.subr.mxu0 0.0
  %881 = vmatpush1.xpose.msra.mxu0 0.0
  %882 = vmatprep.subr.mxu0 0.0
  %883 = vmatpush1.xpose.msra.mxu0 0.0
  %884 = vmatprep.subr.mxu0 0.0
  %885 = vmatpush1.xpose.msra.mxu0 0.0
  %886 = vmatprep.subr.mxu0 0.0
  %887 = vmatpush1.xpose.msra.mxu0 0.0
  %888 = vmatprep.subr.mxu0 0.0
  %889 = vmatpush1.xpose.msra.mxu0 0.0
  %890 = vmatprep.subr.mxu0 0.0
  %891 = vmatpush1.xpose.msra.mxu0 0.0
  %892 = vmatprep.subr.mxu0 0.0
  %893 = vmatpush1.xpose.msra.mxu0 0.0
  %894 = vmatprep.subr.mxu0 0.0
  %895 = vmatpush1.xpose.msra.mxu0 0.0
  %896 = vmatprep.subr.mxu0 0.0
  %897 = vmatpush1.xpose.msra.mxu0 0.0
  %898 = vmatprep.subr.mxu0 0.0
  %899 = vmatpush1.xpose.msra.mxu0 0.0
  %900 = vmatprep.subr.mxu0 0.0
  %901 = vmatpush1.xpose.msra.mxu0 0.0
  %902 = vmatprep.subr.mxu0 0.0
  %903 = vmatpush1.xpose.msra.mxu0 0.0
  %904 = vmatprep.subr.mxu0 0.0
  %905 = vmatpush1.xpose.msra.mxu0 0.0
  %906 = vmatprep.subr.mxu0 0.0
  %907 = vmatpush1.xpose.msra.mxu0 0.0
  %908 = vmatprep.subr.mxu0 0.0
  %909 = vmatpush1.xpose.msra.mxu0 0.0
  %910 = vmatprep.subr.mxu0 0.0
  %911 = vmatpush1.xpose.msra.mxu0 0.0
  %912 = vmatprep.subr.mxu0 0.0
  %913 = vmatpush1.xpose.msra.mxu0 0.0
  %914 = vmatprep.subr.mxu0 0.0
  %915 = vmatpush1.xpose.msra.mxu0 0.0
  %916 = vmatprep.subr.mxu0 0.0
  %917 = vmatpush1.xpose.msra.mxu0 0.0
  %918 = vmatprep.subr.mxu0 0.0
  %919 = vmatpush1.xpose.msra.mxu0 0.0
  %920 = vmatprep.subr.mxu0 0.0
  %921 = vmatpush1.xpose.msra.mxu0 0.0
  %922 = vmatprep.subr.mxu0 0.0
  %923 = vmatpush1.xpose.msra.mxu0 0.0
  %924 = vmatprep.subr.mxu0 0.0
  %925 = vmatpush1.xpose.msra.mxu0 0.0
  %926 = vmatprep.subr.mxu0 0.0
  %927 = vmatpush1.xpose.msra.mxu0 0.0
  %928 = vmatprep.subr.mxu0 0.0
  %929 = vmatpush1.xpose.msra.mxu0 0.0
  %930 = vmatprep.subr.mxu0 0.0
  %931 = vmatpush1.xpose.msra.mxu0 0.0
  %932 = vmatprep.subr.mxu0 0.0
  %933 = vmatpush1.xpose.msra.mxu0 0.0
  %934 = vmatprep.mubr.f32.mxu0 %v166
  %935 = vmatmul.mubr.f32.gmra.mrb[0].mxu0 %v165
  %v936 = vpop.f32.mrb[0].mxu0
  %v937 = vadd.f32 %v867, %v936
  %v938 = vpop.f32.mrb[0].mxu0
  %939 = vdwg.mxu0
  %940 = vmatprep.subr.mxu0 %v168
  %941 = vmatpush1.xpose.msra.mxu0 %v167
  %942 = vmatprep.subr.mxu0 0.0
  %943 = vmatpush1.xpose.msra.mxu0 0.0
  %944 = vmatprep.subr.mxu0 0.0
  %945 = vmatpush1.xpose.msra.mxu0 0.0
  %946 = vmatprep.subr.mxu0 0.0
  %947 = vmatpush1.xpose.msra.mxu0 0.0
  %948 = vmatprep.subr.mxu0 0.0
  %949 = vmatpush1.xpose.msra.mxu0 0.0
  %950 = vmatprep.subr.mxu0 0.0
  %951 = vmatpush1.xpose.msra.mxu0 0.0
  %952 = vmatprep.subr.mxu0 0.0
  %953 = vmatpush1.xpose.msra.mxu0 0.0
  %954 = vmatprep.subr.mxu0 0.0
  %955 = vmatpush1.xpose.msra.mxu0 0.0
  %956 = vmatprep.subr.mxu0 0.0
  %957 = vmatpush1.xpose.msra.mxu0 0.0
  %958 = vmatprep.subr.mxu0 0.0
  %959 = vmatpush1.xpose.msra.mxu0 0.0
  %960 = vmatprep.subr.mxu0 0.0
  %961 = vmatpush1.xpose.msra.mxu0 0.0
  %962 = vmatprep.subr.mxu0 0.0
  %963 = vmatpush1.xpose.msra.mxu0 0.0
  %964 = vmatprep.subr.mxu0 0.0
  %965 = vmatpush1.xpose.msra.mxu0 0.0
  %966 = vmatprep.subr.mxu0 0.0
  %967 = vmatpush1.xpose.msra.mxu0 0.0
  %968 = vmatprep.subr.mxu0 0.0
  %969 = vmatpush1.xpose.msra.mxu0 0.0
  %970 = vmatprep.subr.mxu0 0.0
  %971 = vmatpush1.xpose.msra.mxu0 0.0
  %972 = vmatprep.subr.mxu0 0.0
  %973 = vmatpush1.xpose.msra.mxu0 0.0
  %974 = vmatprep.subr.mxu0 0.0
  %975 = vmatpush1.xpose.msra.mxu0 0.0
  %976 = vmatprep.subr.mxu0 0.0
  %977 = vmatpush1.xpose.msra.mxu0 0.0
  %978 = vmatprep.subr.mxu0 0.0
  %979 = vmatpush1.xpose.msra.mxu0 0.0
  %980 = vmatprep.subr.mxu0 0.0
  %981 = vmatpush1.xpose.msra.mxu0 0.0
  %982 = vmatprep.subr.mxu0 0.0
  %983 = vmatpush1.xpose.msra.mxu0 0.0
  %984 = vmatprep.subr.mxu0 0.0
  %985 = vmatpush1.xpose.msra.mxu0 0.0
  %986 = vmatprep.subr.mxu0 0.0
  %987 = vmatpush1.xpose.msra.mxu0 0.0
  %988 = vmatprep.subr.mxu0 0.0
  %989 = vmatpush1.xpose.msra.mxu0 0.0
  %990 = vmatprep.subr.mxu0 0.0
  %991 = vmatpush1.xpose.msra.mxu0 0.0
  %992 = vmatprep.subr.mxu0 0.0
  %993 = vmatpush1.xpose.msra.mxu0 0.0
  %994 = vmatprep.subr.mxu0 0.0
  %995 = vmatpush1.xpose.msra.mxu0 0.0
  %996 = vmatprep.subr.mxu0 0.0
  %997 = vmatpush1.xpose.msra.mxu0 0.0
  %998 = vmatprep.subr.mxu0 0.0
  %999 = vmatpush1.xpose.msra.mxu0 0.0
  %1000 = vmatprep.subr.mxu0 0.0
  %1001 = vmatpush1.xpose.msra.mxu0 0.0
  %1002 = vmatprep.subr.mxu0 0.0
  %1003 = vmatpush1.xpose.msra.mxu0 0.0
  %1004 = vmatprep.mubr.f32.mxu0 %v168
  %1005 = vmatmul.mubr.f32.gmra.mrb[0].mxu0 %v167
  %v1006 = vpop.f32.mrb[0].mxu0
  %v1007 = vadd.f32 %v937, %v1006
  %v1008 = vpop.f32.mrb[0].mxu0
  %1009 = vdwg.mxu0
  %1010 = vmatprep.subr.mxu0 0.0
  %1011 = vmatpush1.xpose.msra.mxu0 %v169
  %1012 = vmatprep.subr.mxu0 0.0
  %1013 = vmatpush1.xpose.msra.mxu0 0.0
  %1014 = vmatprep.subr.mxu0 0.0
  %1015 = vmatpush1.xpose.msra.mxu0 0.0
  %1016 = vmatprep.subr.mxu0 0.0
  %1017 = vmatpush1.xpose.msra.mxu0 0.0
  %1018 = vmatprep.subr.mxu0 0.0
  %1019 = vmatpush1.xpose.msra.mxu0 0.0
  %1020 = vmatprep.subr.mxu0 0.0
  %1021 = vmatpush1.xpose.msra.mxu0 0.0
  %1022 = vmatprep.subr.mxu0 0.0
  %1023 = vmatpush1.xpose.msra.mxu0 0.0
  %1024 = vmatprep.subr.mxu0 0.0
  %1025 = vmatpush1.xpose.msra.mxu0 0.0
  %1026 = vmatprep.subr.mxu0 0.0
  %1027 = vmatpush1.xpose.msra.mxu0 0.0
  %1028 = vmatprep.subr.mxu0 0.0
  %1029 = vmatpush1.xpose.msra.mxu0 0.0
  %1030 = vmatprep.subr.mxu0 0.0
  %1031 = vmatpush1.xpose.msra.mxu0 0.0
  %1032 = vmatprep.subr.mxu0 0.0
  %1033 = vmatpush1.xpose.msra.mxu0 0.0
  %1034 = vmatprep.subr.mxu0 0.0
  %1035 = vmatpush1.xpose.msra.mxu0 0.0
  %1036 = vmatprep.subr.mxu0 0.0
  %1037 = vmatpush1.xpose.msra.mxu0 0.0
  %1038 = vmatprep.subr.mxu0 0.0
  %1039 = vmatpush1.xpose.msra.mxu0 0.0
  %1040 = vmatprep.subr.mxu0 0.0
  %1041 = vmatpush1.xpose.msra.mxu0 0.0
  %1042 = vmatprep.subr.mxu0 0.0
  %1043 = vmatpush1.xpose.msra.mxu0 0.0
  %1044 = vmatprep.subr.mxu0 0.0
  %1045 = vmatpush1.xpose.msra.mxu0 0.0
  %1046 = vmatprep.subr.mxu0 0.0
  %1047 = vmatpush1.xpose.msra.mxu0 0.0
  %1048 = vmatprep.subr.mxu0 0.0
  %1049 = vmatpush1.xpose.msra.mxu0 0.0
  %1050 = vmatprep.subr.mxu0 0.0
  %1051 = vmatpush1.xpose.msra.mxu0 0.0
  %1052 = vmatprep.subr.mxu0 0.0
  %1053 = vmatpush1.xpose.msra.mxu0 0.0
  %1054 = vmatprep.subr.mxu0 0.0
  %1055 = vmatpush1.xpose.msra.mxu0 0.0
  %1056 = vmatprep.subr.mxu0 0.0
  %1057 = vmatpush1.xpose.msra.mxu0 0.0
  %1058 = vmatprep.subr.mxu0 0.0
  %1059 = vmatpush1.xpose.msra.mxu0 0.0
  %1060 = vmatprep.subr.mxu0 0.0
  %1061 = vmatpush1.xpose.msra.mxu0 0.0
  %1062 = vmatprep.subr.mxu0 0.0
  %1063 = vmatpush1.xpose.msra.mxu0 0.0
  %1064 = vmatprep.subr.mxu0 0.0
  %1065 = vmatpush1.xpose.msra.mxu0 0.0
  %1066 = vmatprep.subr.mxu0 0.0
  %1067 = vmatpush1.xpose.msra.mxu0 0.0
  %1068 = vmatprep.subr.mxu0 0.0
  %1069 = vmatpush1.xpose.msra.mxu0 0.0
  %1070 = vmatprep.subr.mxu0 0.0
  %1071 = vmatpush1.xpose.msra.mxu0 0.0
  %1072 = vmatprep.subr.mxu0 0.0
  %1073 = vmatpush1.xpose.msra.mxu0 0.0
  %1074 = vmatprep.mubr.f32.mxu0 0.0
  %1075 = vmatmul.mubr.f32.gmra.mrb[0].mxu0 %v169
  %v1076 = vpop.f32.mrb[0].mxu0
  %v1077 = vadd.f32 %v1007, %v1076
  %v1078 = vpop.f32.mrb[0].mxu0
  %1079 = vdwg.mxu0
  %1080 = vmatprep.subr.mxu0 %v71
  %1081 = vmatpush1.xpose.msra.mxu0 %v70
  %1082 = vmatprep.subr.mxu0 0.0
  %1083 = vmatpush1.xpose.msra.mxu0 0.0
  %1084 = vmatprep.subr.mxu0 0.0
  %1085 = vmatpush1.xpose.msra.mxu0 0.0
  %1086 = vmatprep.subr.mxu0 0.0
  %1087 = vmatpush1.xpose.msra.mxu0 0.0
  %1088 = vmatprep.subr.mxu0 0.0
  %1089 = vmatpush1.xpose.msra.mxu0 0.0
  %1090 = vmatprep.subr.mxu0 0.0
  %1091 = vmatpush1.xpose.msra.mxu0 0.0
  %1092 = vmatprep.subr.mxu0 0.0
  %1093 = vmatpush1.xpose.msra.mxu0 0.0
  %1094 = vmatprep.subr.mxu0 0.0
  %1095 = vmatpush1.xpose.msra.mxu0 0.0
  %1096 = vmatprep.subr.mxu0 0.0
  %1097 = vmatpush1.xpose.msra.mxu0 0.0
  %1098 = vmatprep.subr.mxu0 0.0
  %1099 = vmatpush1.xpose.msra.mxu0 0.0
  %1100 = vmatprep.subr.mxu0 0.0
  %1101 = vmatpush1.xpose.msra.mxu0 0.0
  %1102 = vmatprep.subr.mxu0 0.0
  %1103 = vmatpush1.xpose.msra.mxu0 0.0
  %1104 = vmatprep.subr.mxu0 0.0
  %1105 = vmatpush1.xpose.msra.mxu0 0.0
  %1106 = vmatprep.subr.mxu0 0.0
  %1107 = vmatpush1.xpose.msra.mxu0 0.0
  %1108 = vmatprep.subr.mxu0 0.0
  %1109 = vmatpush1.xpose.msra.mxu0 0.0
  %1110 = vmatprep.subr.mxu0 0.0
  %1111 = vmatpush1.xpose.msra.mxu0 0.0
  %1112 = vmatprep.subr.mxu0 0.0
  %1113 = vmatpush1.xpose.msra.mxu0 0.0
  %1114 = vmatprep.subr.mxu0 0.0
  %1115 = vmatpush1.xpose.msra.mxu0 0.0
  %1116 = vmatprep.subr.mxu0 0.0
  %1117 = vmatpush1.xpose.msra.mxu0 0.0
  %1118 = vmatprep.subr.mxu0 0.0
  %1119 = vmatpush1.xpose.msra.mxu0 0.0
  %1120 = vmatprep.subr.mxu0 0.0
  %1121 = vmatpush1.xpose.msra.mxu0 0.0
  %1122 = vmatprep.subr.mxu0 0.0
  %1123 = vmatpush1.xpose.msra.mxu0 0.0
  %1124 = vmatprep.subr.mxu0 0.0
  %1125 = vmatpush1.xpose.msra.mxu0 0.0
  %1126 = vmatprep.subr.mxu0 0.0
  %1127 = vmatpush1.xpose.msra.mxu0 0.0
  %1128 = vmatprep.subr.mxu0 0.0
  %1129 = vmatpush1.xpose.msra.mxu0 0.0
  %1130 = vmatprep.subr.mxu0 0.0
  %1131 = vmatpush1.xpose.msra.mxu0 0.0
  %1132 = vmatprep.subr.mxu0 0.0
  %1133 = vmatpush1.xpose.msra.mxu0 0.0
  %1134 = vmatprep.subr.mxu0 0.0
  %1135 = vmatpush1.xpose.msra.mxu0 0.0
  %1136 = vmatprep.subr.mxu0 0.0
  %1137 = vmatpush1.xpose.msra.mxu0 0.0
  %1138 = vmatprep.subr.mxu0 0.0
  %1139 = vmatpush1.xpose.msra.mxu0 0.0
  %1140 = vmatprep.subr.mxu0 0.0
  %1141 = vmatpush1.xpose.msra.mxu0 0.0
  %1142 = vmatprep.subr.mxu0 0.0
  %1143 = vmatpush1.xpose.msra.mxu0 0.0
  %1144 = vmatprep.mubr.f32.mxu0 %v71
  %1145 = vmatmul.mubr.f32.gmra.mrb[0].mxu0 %v70
  %v1146 = vpop.f32.mrb[0].mxu0
  %v1147 = vadd.f32 %v1077, %v1146
  %v1148 = vpop.f32.mrb[0].mxu0
  %1149 = vdwg.mxu0
  %1150 = vmatprep.subr.mxu0 %v73
  %1151 = vmatpush1.xpose.msra.mxu0 %v72
  %1152 = vmatprep.subr.mxu0 0.0
  %1153 = vmatpush1.xpose.msra.mxu0 0.0
  %1154 = vmatprep.subr.mxu0 0.0
  %1155 = vmatpush1.xpose.msra.mxu0 0.0
  %1156 = vmatprep.subr.mxu0 0.0
  %1157 = vmatpush1.xpose.msra.mxu0 0.0
  %1158 = vmatprep.subr.mxu0 0.0
  %1159 = vmatpush1.xpose.msra.mxu0 0.0
  %1160 = vmatprep.subr.mxu0 0.0
  %1161 = vmatpush1.xpose.msra.mxu0 0.0
  %1162 = vmatprep.subr.mxu0 0.0
  %1163 = vmatpush1.xpose.msra.mxu0 0.0
  %1164 = vmatprep.subr.mxu0 0.0
  %1165 = vmatpush1.xpose.msra.mxu0 0.0
  %1166 = vmatprep.subr.mxu0 0.0
  %1167 = vmatpush1.xpose.msra.mxu0 0.0
  %1168 = vmatprep.subr.mxu0 0.0
  %1169 = vmatpush1.xpose.msra.mxu0 0.0
  %1170 = vmatprep.subr.mxu0 0.0
  %1171 = vmatpush1.xpose.msra.mxu0 0.0
  %1172 = vmatprep.subr.mxu0 0.0
  %1173 = vmatpush1.xpose.msra.mxu0 0.0
  %1174 = vmatprep.subr.mxu0 0.0
  %1175 = vmatpush1.xpose.msra.mxu0 0.0
  %1176 = vmatprep.subr.mxu0 0.0
  %1177 = vmatpush1.xpose.msra.mxu0 0.0
  %1178 = vmatprep.subr.mxu0 0.0
  %1179 = vmatpush1.xpose.msra.mxu0 0.0
  %1180 = vmatprep.subr.mxu0 0.0
  %1181 = vmatpush1.xpose.msra.mxu0 0.0
  %1182 = vmatprep.subr.mxu0 0.0
  %1183 = vmatpush1.xpose.msra.mxu0 0.0
  %1184 = vmatprep.subr.mxu0 0.0
  %1185 = vmatpush1.xpose.msra.mxu0 0.0
  %1186 = vmatprep.subr.mxu0 0.0
  %1187 = vmatpush1.xpose.msra.mxu0 0.0
  %1188 = vmatprep.subr.mxu0 0.0
  %1189 = vmatpush1.xpose.msra.mxu0 0.0
  %1190 = vmatprep.subr.mxu0 0.0
  %1191 = vmatpush1.xpose.msra.mxu0 0.0
  %1192 = vmatprep.subr.mxu0 0.0
  %1193 = vmatpush1.xpose.msra.mxu0 0.0
  %1194 = vmatprep.subr.mxu0 0.0
  %1195 = vmatpush1.xpose.msra.mxu0 0.0
  %1196 = vmatprep.subr.mxu0 0.0
  %1197 = vmatpush1.xpose.msra.mxu0 0.0
  %1198 = vmatprep.subr.mxu0 0.0
  %1199 = vmatpush1.xpose.msra.mxu0 0.0
  %1200 = vmatprep.subr.mxu0 0.0
  %1201 = vmatpush1.xpose.msra.mxu0 0.0
  %1202 = vmatprep.subr.mxu0 0.0
  %1203 = vmatpush1.xpose.msra.mxu0 0.0
  %1204 = vmatprep.subr.mxu0 0.0
  %1205 = vmatpush1.xpose.msra.mxu0 0.0
  %1206 = vmatprep.subr.mxu0 0.0
  %1207 = vmatpush1.xpose.msra.mxu0 0.0
  %1208 = vmatprep.subr.mxu0 0.0
  %1209 = vmatpush1.xpose.msra.mxu0 0.0
  %1210 = vmatprep.subr.mxu0 0.0
  %1211 = vmatpush1.xpose.msra.mxu0 0.0
  %1212 = vmatprep.subr.mxu0 0.0
  %1213 = vmatpush1.xpose.msra.mxu0 0.0
  %1214 = vmatprep.mubr.f32.mxu0 %v73
  %1215 = vmatmul.mubr.f32.gmra.mrb[0].mxu0 %v72
  %v1216 = vpop.f32.mrb[0].mxu0
  %v1217 = vadd.f32 %v1147, %v1216
  %v1218 = vpop.f32.mrb[0].mxu0
  %1219 = vdwg.mxu0
  %1220 = vmatprep.subr.mxu0 %v75
  %1221 = vmatpush1.xpose.msra.mxu0 %v74
  %1222 = vmatprep.subr.mxu0 0.0
  %1223 = vmatpush1.xpose.msra.mxu0 0.0
  %1224 = vmatprep.subr.mxu0 0.0
  %1225 = vmatpush1.xpose.msra.mxu0 0.0
  %1226 = vmatprep.subr.mxu0 0.0
  %1227 = vmatpush1.xpose.msra.mxu0 0.0
  %1228 = vmatprep.subr.mxu0 0.0
  %1229 = vmatpush1.xpose.msra.mxu0 0.0
  %1230 = vmatprep.subr.mxu0 0.0
  %1231 = vmatpush1.xpose.msra.mxu0 0.0
  %1232 = vmatprep.subr.mxu0 0.0
  %1233 = vmatpush1.xpose.msra.mxu0 0.0
  %1234 = vmatprep.subr.mxu0 0.0
  %1235 = vmatpush1.xpose.msra.mxu0 0.0
  %1236 = vmatprep.subr.mxu0 0.0
  %1237 = vmatpush1.xpose.msra.mxu0 0.0
  %1238 = vmatprep.subr.mxu0 0.0
  %1239 = vmatpush1.xpose.msra.mxu0 0.0
  %1240 = vmatprep.subr.mxu0 0.0
  %1241 = vmatpush1.xpose.msra.mxu0 0.0
  %1242 = vmatprep.subr.mxu0 0.0
  %1243 = vmatpush1.xpose.msra.mxu0 0.0
  %1244 = vmatprep.subr.mxu0 0.0
  %1245 = vmatpush1.xpose.msra.mxu0 0.0
  %1246 = vmatprep.subr.mxu0 0.0
  %1247 = vmatpush1.xpose.msra.mxu0 0.0
  %1248 = vmatprep.subr.mxu0 0.0
  %1249 = vmatpush1.xpose.msra.mxu0 0.0
  %1250 = vmatprep.subr.mxu0 0.0
  %1251 = vmatpush1.xpose.msra.mxu0 0.0
  %1252 = vmatprep.subr.mxu0 0.0
  %1253 = vmatpush1.xpose.msra.mxu0 0.0
  %1254 = vmatprep.subr.mxu0 0.0
  %1255 = vmatpush1.xpose.msra.mxu0 0.0
  %1256 = vmatprep.subr.mxu0 0.0
  %1257 = vmatpush1.xpose.msra.mxu0 0.0
  %1258 = vmatprep.subr.mxu0 0.0
  %1259 = vmatpush1.xpose.msra.mxu0 0.0
  %1260 = vmatprep.subr.mxu0 0.0
  %1261 = vmatpush1.xpose.msra.mxu0 0.0
  %1262 = vmatprep.subr.mxu0 0.0
  %1263 = vmatpush1.xpose.msra.mxu0 0.0
  %1264 = vmatprep.subr.mxu0 0.0
  %1265 = vmatpush1.xpose.msra.mxu0 0.0
  %1266 = vmatprep.subr.mxu0 0.0
  %1267 = vmatpush1.xpose.msra.mxu0 0.0
  %1268 = vmatprep.subr.mxu0 0.0
  %1269 = vmatpush1.xpose.msra.mxu0 0.0
  %1270 = vmatprep.subr.mxu0 0.0
  %1271 = vmatpush1.xpose.msra.mxu0 0.0
  %1272 = vmatprep.subr.mxu0 0.0
  %1273 = vmatpush1.xpose.msra.mxu0 0.0
  %1274 = vmatprep.subr.mxu0 0.0
  %1275 = vmatpush1.xpose.msra.mxu0 0.0
  %1276 = vmatprep.subr.mxu0 0.0
  %1277 = vmatpush1.xpose.msra.mxu0 0.0
  %1278 = vmatprep.subr.mxu0 0.0
  %1279 = vmatpush1.xpose.msra.mxu0 0.0
  %1280 = vmatprep.subr.mxu0 0.0
  %1281 = vmatpush1.xpose.msra.mxu0 0.0
  %1282 = vmatprep.subr.mxu0 0.0
  %1283 = vmatpush1.xpose.msra.mxu0 0.0
  %1284 = vmatprep.mubr.f32.mxu0 %v75
  %1285 = vmatmul.mubr.f32.gmra.mrb[0].mxu0 %v74
  %v1286 = vpop.f32.mrb[0].mxu0
  %v1287 = vadd.f32 %v1217, %v1286
  %v1288 = vpop.f32.mrb[0].mxu0
  %1289 = vdwg.mxu0
  %1290 = vmatprep.subr.mxu0 %v77
  %1291 = vmatpush1.xpose.msra.mxu0 %v76
  %1292 = vmatprep.subr.mxu0 0.0
  %1293 = vmatpush1.xpose.msra.mxu0 0.0
  %1294 = vmatprep.subr.mxu0 0.0
  %1295 = vmatpush1.xpose.msra.mxu0 0.0
  %1296 = vmatprep.subr.mxu0 0.0
  %1297 = vmatpush1.xpose.msra.mxu0 0.0
  %1298 = vmatprep.subr.mxu0 0.0
  %1299 = vmatpush1.xpose.msra.mxu0 0.0
  %1300 = vmatprep.subr.mxu0 0.0
  %1301 = vmatpush1.xpose.msra.mxu0 0.0
  %1302 = vmatprep.subr.mxu0 0.0
  %1303 = vmatpush1.xpose.msra.mxu0 0.0
  %1304 = vmatprep.subr.mxu0 0.0
  %1305 = vmatpush1.xpose.msra.mxu0 0.0
  %1306 = vmatprep.subr.mxu0 0.0
  %1307 = vmatpush1.xpose.msra.mxu0 0.0
  %1308 = vmatprep.subr.mxu0 0.0
  %1309 = vmatpush1.xpose.msra.mxu0 0.0
  %1310 = vmatprep.subr.mxu0 0.0
  %1311 = vmatpush1.xpose.msra.mxu0 0.0
  %1312 = vmatprep.subr.mxu0 0.0
  %1313 = vmatpush1.xpose.msra.mxu0 0.0
  %1314 = vmatprep.subr.mxu0 0.0
  %1315 = vmatpush1.xpose.msra.mxu0 0.0
  %1316 = vmatprep.subr.mxu0 0.0
  %1317 = vmatpush1.xpose.msra.mxu0 0.0
  %1318 = vmatprep.subr.mxu0 0.0
  %1319 = vmatpush1.xpose.msra.mxu0 0.0
  %1320 = vmatprep.subr.mxu0 0.0
  %1321 = vmatpush1.xpose.msra.mxu0 0.0
  %1322 = vmatprep.subr.mxu0 0.0
  %1323 = vmatpush1.xpose.msra.mxu0 0.0
  %1324 = vmatprep.subr.mxu0 0.0
  %1325 = vmatpush1.xpose.msra.mxu0 0.0
  %1326 = vmatprep.subr.mxu0 0.0
  %1327 = vmatpush1.xpose.msra.mxu0 0.0
  %1328 = vmatprep.subr.mxu0 0.0
  %1329 = vmatpush1.xpose.msra.mxu0 0.0
  %1330 = vmatprep.subr.mxu0 0.0
  %1331 = vmatpush1.xpose.msra.mxu0 0.0
  %1332 = vmatprep.subr.mxu0 0.0
  %1333 = vmatpush1.xpose.msra.mxu0 0.0
  %1334 = vmatprep.subr.mxu0 0.0
  %1335 = vmatpush1.xpose.msra.mxu0 0.0
  %1336 = vmatprep.subr.mxu0 0.0
  %1337 = vmatpush1.xpose.msra.mxu0 0.0
  %1338 = vmatprep.subr.mxu0 0.0
  %1339 = vmatpush1.xpose.msra.mxu0 0.0
  %1340 = vmatprep.subr.mxu0 0.0
  %1341 = vmatpush1.xpose.msra.mxu0 0.0
  %1342 = vmatprep.subr.mxu0 0.0
  %1343 = vmatpush1.xpose.msra.mxu0 0.0
  %1344 = vmatprep.subr.mxu0 0.0
  %1345 = vmatpush1.xpose.msra.mxu0 0.0
  %1346 = vmatprep.subr.mxu0 0.0
  %1347 = vmatpush1.xpose.msra.mxu0 0.0
  %1348 = vmatprep.subr.mxu0 0.0
  %1349 = vmatpush1.xpose.msra.mxu0 0.0
  %1350 = vmatprep.subr.mxu0 0.0
  %1351 = vmatpush1.xpose.msra.mxu0 0.0
  %1352 = vmatprep.subr.mxu0 0.0
  %1353 = vmatpush1.xpose.msra.mxu0 0.0
  %1354 = vmatprep.mubr.f32.mxu0 %v77
  %1355 = vmatmul.mubr.f32.gmra.mrb[0].mxu0 %v76
  %v1356 = vpop.f32.mrb[0].mxu0
  %v1357 = vadd.f32 %v1287, %v1356
  %v1358 = vpop.f32.mrb[0].mxu0
  %1359 = vdwg.mxu0
  %1360 = vmatprep.subr.mxu0 %v79
  %1361 = vmatpush1.xpose.msra.mxu0 %v78
  %1362 = vmatprep.subr.mxu0 0.0
  %1363 = vmatpush1.xpose.msra.mxu0 0.0
  %1364 = vmatprep.subr.mxu0 0.0
  %1365 = vmatpush1.xpose.msra.mxu0 0.0
  %1366 = vmatprep.subr.mxu0 0.0
  %1367 = vmatpush1.xpose.msra.mxu0 0.0
  %1368 = vmatprep.subr.mxu0 0.0
  %1369 = vmatpush1.xpose.msra.mxu0 0.0
  %1370 = vmatprep.subr.mxu0 0.0
  %1371 = vmatpush1.xpose.msra.mxu0 0.0
  %1372 = vmatprep.subr.mxu0 0.0
  %1373 = vmatpush1.xpose.msra.mxu0 0.0
  %1374 = vmatprep.subr.mxu0 0.0
  %1375 = vmatpush1.xpose.msra.mxu0 0.0
  %1376 = vmatprep.subr.mxu0 0.0
  %1377 = vmatpush1.xpose.msra.mxu0 0.0
  %1378 = vmatprep.subr.mxu0 0.0
  %1379 = vmatpush1.xpose.msra.mxu0 0.0
  %1380 = vmatprep.subr.mxu0 0.0
  %1381 = vmatpush1.xpose.msra.mxu0 0.0
  %1382 = vmatprep.subr.mxu0 0.0
  %1383 = vmatpush1.xpose.msra.mxu0 0.0
  %1384 = vmatprep.subr.mxu0 0.0
  %1385 = vmatpush1.xpose.msra.mxu0 0.0
  %1386 = vmatprep.subr.mxu0 0.0
  %1387 = vmatpush1.xpose.msra.mxu0 0.0
  %1388 = vmatprep.subr.mxu0 0.0
  %1389 = vmatpush1.xpose.msra.mxu0 0.0
  %1390 = vmatprep.subr.mxu0 0.0
  %1391 = vmatpush1.xpose.msra.mxu0 0.0
  %1392 = vmatprep.subr.mxu0 0.0
  %1393 = vmatpush1.xpose.msra.mxu0 0.0
  %1394 = vmatprep.subr.mxu0 0.0
  %1395 = vmatpush1.xpose.msra.mxu0 0.0
  %1396 = vmatprep.subr.mxu0 0.0
  %1397 = vmatpush1.xpose.msra.mxu0 0.0
  %1398 = vmatprep.subr.mxu0 0.0
  %1399 = vmatpush1.xpose.msra.mxu0 0.0
  %1400 = vmatprep.subr.mxu0 0.0
  %1401 = vmatpush1.xpose.msra.mxu0 0.0
  %1402 = vmatprep.subr.mxu0 0.0
  %1403 = vmatpush1.xpose.msra.mxu0 0.0
  %1404 = vmatprep.subr.mxu0 0.0
  %1405 = vmatpush1.xpose.msra.mxu0 0.0
  %1406 = vmatprep.subr.mxu0 0.0
  %1407 = vmatpush1.xpose.msra.mxu0 0.0
  %1408 = vmatprep.subr.mxu0 0.0
  %1409 = vmatpush1.xpose.msra.mxu0 0.0
  %1410 = vmatprep.subr.mxu0 0.0
  %1411 = vmatpush1.xpose.msra.mxu0 0.0
  %1412 = vmatprep.subr.mxu0 0.0
  %1413 = vmatpush1.xpose.msra.mxu0 0.0
  %1414 = vmatprep.subr.mxu0 0.0
  %1415 = vmatpush1.xpose.msra.mxu0 0.0
  %1416 = vmatprep.subr.mxu0 0.0
  %1417 = vmatpush1.xpose.msra.mxu0 0.0
  %1418 = vmatprep.subr.mxu0 0.0
  %1419 = vmatpush1.xpose.msra.mxu0 0.0
  %1420 = vmatprep.subr.mxu0 0.0
  %1421 = vmatpush1.xpose.msra.mxu0 0.0
  %1422 = vmatprep.subr.mxu0 0.0
  %1423 = vmatpush1.xpose.msra.mxu0 0.0
  %1424 = vmatprep.mubr.f32.mxu0 %v79
  %1425 = vmatmul.mubr.f32.gmra.mrb[0].mxu0 %v78
  %v1426 = vpop.f32.mrb[0].mxu0
  %v1427 = vadd.f32 %v1357, %v1426
  %v1428 = vpop.f32.mrb[0].mxu0
  %1429 = vdwg.mxu0
  %1430 = vmatprep.subr.mxu0 %v81
  %1431 = vmatpush1.xpose.msra.mxu0 %v80
  %1432 = vmatprep.subr.mxu0 0.0
  %1433 = vmatpush1.xpose.msra.mxu0 0.0
  %1434 = vmatprep.subr.mxu0 0.0
  %1435 = vmatpush1.xpose.msra.mxu0 0.0
  %1436 = vmatprep.subr.mxu0 0.0
  %1437 = vmatpush1.xpose.msra.mxu0 0.0
  %1438 = vmatprep.subr.mxu0 0.0
  %1439 = vmatpush1.xpose.msra.mxu0 0.0
  %1440 = vmatprep.subr.mxu0 0.0
  %1441 = vmatpush1.xpose.msra.mxu0 0.0
  %1442 = vmatprep.subr.mxu0 0.0
  %1443 = vmatpush1.xpose.msra.mxu0 0.0
  %1444 = vmatprep.subr.mxu0 0.0
  %1445 = vmatpush1.xpose.msra.mxu0 0.0
  %1446 = vmatprep.subr.mxu0 0.0
  %1447 = vmatpush1.xpose.msra.mxu0 0.0
  %1448 = vmatprep.subr.mxu0 0.0
  %1449 = vmatpush1.xpose.msra.mxu0 0.0
  %1450 = vmatprep.subr.mxu0 0.0
  %1451 = vmatpush1.xpose.msra.mxu0 0.0
  %1452 = vmatprep.subr.mxu0 0.0
  %1453 = vmatpush1.xpose.msra.mxu0 0.0
  %1454 = vmatprep.subr.mxu0 0.0
  %1455 = vmatpush1.xpose.msra.mxu0 0.0
  %1456 = vmatprep.subr.mxu0 0.0
  %1457 = vmatpush1.xpose.msra.mxu0 0.0
  %1458 = vmatprep.subr.mxu0 0.0
  %1459 = vmatpush1.xpose.msra.mxu0 0.0
  %1460 = vmatprep.subr.mxu0 0.0
  %1461 = vmatpush1.xpose.msra.mxu0 0.0
  %1462 = vmatprep.subr.mxu0 0.0
  %1463 = vmatpush1.xpose.msra.mxu0 0.0
  %1464 = vmatprep.subr.mxu0 0.0
  %1465 = vmatpush1.xpose.msra.mxu0 0.0
  %1466 = vmatprep.subr.mxu0 0.0
  %1467 = vmatpush1.xpose.msra.mxu0 0.0
  %1468 = vmatprep.subr.mxu0 0.0
  %1469 = vmatpush1.xpose.msra.mxu0 0.0
  %1470 = vmatprep.subr.mxu0 0.0
  %1471 = vmatpush1.xpose.msra.mxu0 0.0
  %1472 = vmatprep.subr.mxu0 0.0
  %1473 = vmatpush1.xpose.msra.mxu0 0.0
  %1474 = vmatprep.subr.mxu0 0.0
  %1475 = vmatpush1.xpose.msra.mxu0 0.0
  %1476 = vmatprep.subr.mxu0 0.0
  %1477 = vmatpush1.xpose.msra.mxu0 0.0
  %1478 = vmatprep.subr.mxu0 0.0
  %1479 = vmatpush1.xpose.msra.mxu0 0.0
  %1480 = vmatprep.subr.mxu0 0.0
  %1481 = vmatpush1.xpose.msra.mxu0 0.0
  %1482 = vmatprep.subr.mxu0 0.0
  %1483 = vmatpush1.xpose.msra.mxu0 0.0
  %1484 = vmatprep.subr.mxu0 0.0
  %1485 = vmatpush1.xpose.msra.mxu0 0.0
  %1486 = vmatprep.subr.mxu0 0.0
  %1487 = vmatpush1.xpose.msra.mxu0 0.0
  %1488 = vmatprep.subr.mxu0 0.0
  %1489 = vmatpush1.xpose.msra.mxu0 0.0
  %1490 = vmatprep.subr.mxu0 0.0
  %1491 = vmatpush1.xpose.msra.mxu0 0.0
  %1492 = vmatprep.subr.mxu0 0.0
  %1493 = vmatpush1.xpose.msra.mxu0 0.0
  %1494 = vmatprep.mubr.f32.mxu0 %v81
  %1495 = vmatmul.mubr.f32.gmra.mrb[0].mxu0 %v80
  %v1496 = vpop.f32.mrb[0].mxu0
  %v1497 = vadd.f32 %v1427, %v1496
  %v1498 = vpop.f32.mrb[0].mxu0
  %1499 = vdwg.mxu0
  %1500 = vmatprep.subr.mxu0 %v83
  %1501 = vmatpush1.xpose.msra.mxu0 %v82
  %1502 = vmatprep.subr.mxu0 0.0
  %1503 = vmatpush1.xpose.msra.mxu0 0.0
  %1504 = vmatprep.subr.mxu0 0.0
  %1505 = vmatpush1.xpose.msra.mxu0 0.0
  %1506 = vmatprep.subr.mxu0 0.0
  %1507 = vmatpush1.xpose.msra.mxu0 0.0
  %1508 = vmatprep.subr.mxu0 0.0
  %1509 = vmatpush1.xpose.msra.mxu0 0.0
  %1510 = vmatprep.subr.mxu0 0.0
  %1511 = vmatpush1.xpose.msra.mxu0 0.0
  %1512 = vmatprep.subr.mxu0 0.0
  %1513 = vmatpush1.xpose.msra.mxu0 0.0
  %1514 = vmatprep.subr.mxu0 0.0
  %1515 = vmatpush1.xpose.msra.mxu0 0.0
  %1516 = vmatprep.subr.mxu0 0.0
  %1517 = vmatpush1.xpose.msra.mxu0 0.0
  %1518 = vmatprep.subr.mxu0 0.0
  %1519 = vmatpush1.xpose.msra.mxu0 0.0
  %1520 = vmatprep.subr.mxu0 0.0
  %1521 = vmatpush1.xpose.msra.mxu0 0.0
  %1522 = vmatprep.subr.mxu0 0.0
  %1523 = vmatpush1.xpose.msra.mxu0 0.0
  %1524 = vmatprep.subr.mxu0 0.0
  %1525 = vmatpush1.xpose.msra.mxu0 0.0
  %1526 = vmatprep.subr.mxu0 0.0
  %1527 = vmatpush1.xpose.msra.mxu0 0.0
  %1528 = vmatprep.subr.mxu0 0.0
  %1529 = vmatpush1.xpose.msra.mxu0 0.0
  %1530 = vmatprep.subr.mxu0 0.0
  %1531 = vmatpush1.xpose.msra.mxu0 0.0
  %1532 = vmatprep.subr.mxu0 0.0
  %1533 = vmatpush1.xpose.msra.mxu0 0.0
  %1534 = vmatprep.subr.mxu0 0.0
  %1535 = vmatpush1.xpose.msra.mxu0 0.0
  %1536 = vmatprep.subr.mxu0 0.0
  %1537 = vmatpush1.xpose.msra.mxu0 0.0
  %1538 = vmatprep.subr.mxu0 0.0
  %1539 = vmatpush1.xpose.msra.mxu0 0.0
  %1540 = vmatprep.subr.mxu0 0.0
  %1541 = vmatpush1.xpose.msra.mxu0 0.0
  %1542 = vmatprep.subr.mxu0 0.0
  %1543 = vmatpush1.xpose.msra.mxu0 0.0
  %1544 = vmatprep.subr.mxu0 0.0
  %1545 = vmatpush1.xpose.msra.mxu0 0.0
  %1546 = vmatprep.subr.mxu0 0.0
  %1547 = vmatpush1.xpose.msra.mxu0 0.0
  %1548 = vmatprep.subr.mxu0 0.0
  %1549 = vmatpush1.xpose.msra.mxu0 0.0
  %1550 = vmatprep.subr.mxu0 0.0
  %1551 = vmatpush1.xpose.msra.mxu0 0.0
  %1552 = vmatprep.subr.mxu0 0.0
  %1553 = vmatpush1.xpose.msra.mxu0 0.0
  %1554 = vmatprep.subr.mxu0 0.0
  %1555 = vmatpush1.xpose.msra.mxu0 0.0
  %1556 = vmatprep.subr.mxu0 0.0
  %1557 = vmatpush1.xpose.msra.mxu0 0.0
  %1558 = vmatprep.subr.mxu0 0.0
  %1559 = vmatpush1.xpose.msra.mxu0 0.0
  %1560 = vmatprep.subr.mxu0 0.0
  %1561 = vmatpush1.xpose.msra.mxu0 0.0
  %1562 = vmatprep.subr.mxu0 0.0
  %1563 = vmatpush1.xpose.msra.mxu0 0.0
  %1564 = vmatprep.mubr.f32.mxu0 %v83
  %1565 = vmatmul.mubr.f32.gmra.mrb[0].mxu0 %v82
  %v1566 = vpop.f32.mrb[0].mxu0
  %v1567 = vadd.f32 %v1497, %v1566
  %v1568 = vpop.f32.mrb[0].mxu0
  %1569 = vdwg.mxu0
  %1570 = vmatprep.subr.mxu0 %v85
  %1571 = vmatpush1.xpose.msra.mxu0 %v84
  %1572 = vmatprep.subr.mxu0 0.0
  %1573 = vmatpush1.xpose.msra.mxu0 0.0
  %1574 = vmatprep.subr.mxu0 0.0
  %1575 = vmatpush1.xpose.msra.mxu0 0.0
  %1576 = vmatprep.subr.mxu0 0.0
  %1577 = vmatpush1.xpose.msra.mxu0 0.0
  %1578 = vmatprep.subr.mxu0 0.0
  %1579 = vmatpush1.xpose.msra.mxu0 0.0
  %1580 = vmatprep.subr.mxu0 0.0
  %1581 = vmatpush1.xpose.msra.mxu0 0.0
  %1582 = vmatprep.subr.mxu0 0.0
  %1583 = vmatpush1.xpose.msra.mxu0 0.0
  %1584 = vmatprep.subr.mxu0 0.0
  %1585 = vmatpush1.xpose.msra.mxu0 0.0
  %1586 = vmatprep.subr.mxu0 0.0
  %1587 = vmatpush1.xpose.msra.mxu0 0.0
  %1588 = vmatprep.subr.mxu0 0.0
  %1589 = vmatpush1.xpose.msra.mxu0 0.0
  %1590 = vmatprep.subr.mxu0 0.0
  %1591 = vmatpush1.xpose.msra.mxu0 0.0
  %1592 = vmatprep.subr.mxu0 0.0
  %1593 = vmatpush1.xpose.msra.mxu0 0.0
  %1594 = vmatprep.subr.mxu0 0.0
  %1595 = vmatpush1.xpose.msra.mxu0 0.0
  %1596 = vmatprep.subr.mxu0 0.0
  %1597 = vmatpush1.xpose.msra.mxu0 0.0
  %1598 = vmatprep.subr.mxu0 0.0
  %1599 = vmatpush1.xpose.msra.mxu0 0.0
  %1600 = vmatprep.subr.mxu0 0.0
  %1601 = vmatpush1.xpose.msra.mxu0 0.0
  %1602 = vmatprep.subr.mxu0 0.0
  %1603 = vmatpush1.xpose.msra.mxu0 0.0
  %1604 = vmatprep.subr.mxu0 0.0
  %1605 = vmatpush1.xpose.msra.mxu0 0.0
  %1606 = vmatprep.subr.mxu0 0.0
  %1607 = vmatpush1.xpose.msra.mxu0 0.0
  %1608 = vmatprep.subr.mxu0 0.0
  %1609 = vmatpush1.xpose.msra.mxu0 0.0
  %1610 = vmatprep.subr.mxu0 0.0
  %1611 = vmatpush1.xpose.msra.mxu0 0.0
  %1612 = vmatprep.subr.mxu0 0.0
  %1613 = vmatpush1.xpose.msra.mxu0 0.0
  %1614 = vmatprep.subr.mxu0 0.0
  %1615 = vmatpush1.xpose.msra.mxu0 0.0
  %1616 = vmatprep.subr.mxu0 0.0
  %1617 = vmatpush1.xpose.msra.mxu0 0.0
  %1618 = vmatprep.subr.mxu0 0.0
  %1619 = vmatpush1.xpose.msra.mxu0 0.0
  %1620 = vmatprep.subr.mxu0 0.0
  %1621 = vmatpush1.xpose.msra.mxu0 0.0
  %1622 = vmatprep.subr.mxu0 0.0
  %1623 = vmatpush1.xpose.msra.mxu0 0.0
  %1624 = vmatprep.subr.mxu0 0.0
  %1625 = vmatpush1.xpose.msra.mxu0 0.0
  %1626 = vmatprep.subr.mxu0 0.0
  %1627 = vmatpush1.xpose.msra.mxu0 0.0
  %1628 = vmatprep.subr.mxu0 0.0
  %1629 = vmatpush1.xpose.msra.mxu0 0.0
  %1630 = vmatprep.subr.mxu0 0.0
  %1631 = vmatpush1.xpose.msra.mxu0 0.0
  %1632 = vmatprep.subr.mxu0 0.0
  %1633 = vmatpush1.xpose.msra.mxu0 0.0
  %1634 = vmatprep.mubr.f32.mxu0 %v85
  %1635 = vmatmul.mubr.f32.gmra.mrb[0].mxu0 %v84
  %v1636 = vpop.f32.mrb[0].mxu0
  %v1637 = vadd.f32 %v1567, %v1636
  %v1638 = vpop.f32.mrb[0].mxu0
  %1639 = vdwg.mxu0
  %1640 = vmatprep.subr.mxu0 %v87
  %1641 = vmatpush1.xpose.msra.mxu0 %v86
  %1642 = vmatprep.subr.mxu0 0.0
  %1643 = vmatpush1.xpose.msra.mxu0 0.0
  %1644 = vmatprep.subr.mxu0 0.0
  %1645 = vmatpush1.xpose.msra.mxu0 0.0
  %1646 = vmatprep.subr.mxu0 0.0
  %1647 = vmatpush1.xpose.msra.mxu0 0.0
  %1648 = vmatprep.subr.mxu0 0.0
  %1649 = vmatpush1.xpose.msra.mxu0 0.0
  %1650 = vmatprep.subr.mxu0 0.0
  %1651 = vmatpush1.xpose.msra.mxu0 0.0
  %1652 = vmatprep.subr.mxu0 0.0
  %1653 = vmatpush1.xpose.msra.mxu0 0.0
  %1654 = vmatprep.subr.mxu0 0.0
  %1655 = vmatpush1.xpose.msra.mxu0 0.0
  %1656 = vmatprep.subr.mxu0 0.0
  %1657 = vmatpush1.xpose.msra.mxu0 0.0
  %1658 = vmatprep.subr.mxu0 0.0
  %1659 = vmatpush1.xpose.msra.mxu0 0.0
  %1660 = vmatprep.subr.mxu0 0.0
  %1661 = vmatpush1.xpose.msra.mxu0 0.0
  %1662 = vmatprep.subr.mxu0 0.0
  %1663 = vmatpush1.xpose.msra.mxu0 0.0
  %1664 = vmatprep.subr.mxu0 0.0
  %1665 = vmatpush1.xpose.msra.mxu0 0.0
  %1666 = vmatprep.subr.mxu0 0.0
  %1667 = vmatpush1.xpose.msra.mxu0 0.0
  %1668 = vmatprep.subr.mxu0 0.0
  %1669 = vmatpush1.xpose.msra.mxu0 0.0
  %1670 = vmatprep.subr.mxu0 0.0
  %1671 = vmatpush1.xpose.msra.mxu0 0.0
  %1672 = vmatprep.subr.mxu0 0.0
  %1673 = vmatpush1.xpose.msra.mxu0 0.0
  %1674 = vmatprep.subr.mxu0 0.0
  %1675 = vmatpush1.xpose.msra.mxu0 0.0
  %1676 = vmatprep.subr.mxu0 0.0
  %1677 = vmatpush1.xpose.msra.mxu0 0.0
  %1678 = vmatprep.subr.mxu0 0.0
  %1679 = vmatpush1.xpose.msra.mxu0 0.0
  %1680 = vmatprep.subr.mxu0 0.0
  %1681 = vmatpush1.xpose.msra.mxu0 0.0
  %1682 = vmatprep.subr.mxu0 0.0
  %1683 = vmatpush1.xpose.msra.mxu0 0.0
  %1684 = vmatprep.subr.mxu0 0.0
  %1685 = vmatpush1.xpose.msra.mxu0 0.0
  %1686 = vmatprep.subr.mxu0 0.0
  %1687 = vmatpush1.xpose.msra.mxu0 0.0
  %1688 = vmatprep.subr.mxu0 0.0
  %1689 = vmatpush1.xpose.msra.mxu0 0.0
  %1690 = vmatprep.subr.mxu0 0.0
  %1691 = vmatpush1.xpose.msra.mxu0 0.0
  %1692 = vmatprep.subr.mxu0 0.0
  %1693 = vmatpush1.xpose.msra.mxu0 0.0
  %1694 = vmatprep.subr.mxu0 0.0
  %1695 = vmatpush1.xpose.msra.mxu0 0.0
  %1696 = vmatprep.subr.mxu0 0.0
  %1697 = vmatpush1.xpose.msra.mxu0 0.0
  %1698 = vmatprep.subr.mxu0 0.0
  %1699 = vmatpush1.xpose.msra.mxu0 0.0
  %1700 = vmatprep.subr.mxu0 0.0
  %1701 = vmatpush1.xpose.msra.mxu0 0.0
  %1702 = vmatprep.subr.mxu0 0.0
  %1703 = vmatpush1.xpose.msra.mxu0 0.0
  %1704 = vmatprep.mubr.f32.mxu0 %v87
  %1705 = vmatmul.mubr.f32.gmra.mrb[0].mxu0 %v86
  %v1706 = vpop.f32.mrb[0].mxu0
  %v1707 = vadd.f32 %v1637, %v1706
  %v1708 = vpop.f32.mrb[0].mxu0
  %1709 = vdwg.mxu0
  %1710 = vmatprep.subr.mxu0 %v89
  %1711 = vmatpush1.xpose.msra.mxu0 %v88
  %1712 = vmatprep.subr.mxu0 0.0
  %1713 = vmatpush1.xpose.msra.mxu0 0.0
  %1714 = vmatprep.subr.mxu0 0.0
  %1715 = vmatpush1.xpose.msra.mxu0 0.0
  %1716 = vmatprep.subr.mxu0 0.0
  %1717 = vmatpush1.xpose.msra.mxu0 0.0
  %1718 = vmatprep.subr.mxu0 0.0
  %1719 = vmatpush1.xpose.msra.mxu0 0.0
  %1720 = vmatprep.subr.mxu0 0.0
  %1721 = vmatpush1.xpose.msra.mxu0 0.0
  %1722 = vmatprep.subr.mxu0 0.0
  %1723 = vmatpush1.xpose.msra.mxu0 0.0
  %1724 = vmatprep.subr.mxu0 0.0
  %1725 = vmatpush1.xpose.msra.mxu0 0.0
  %1726 = vmatprep.subr.mxu0 0.0
  %1727 = vmatpush1.xpose.msra.mxu0 0.0
  %1728 = vmatprep.subr.mxu0 0.0
  %1729 = vmatpush1.xpose.msra.mxu0 0.0
  %1730 = vmatprep.subr.mxu0 0.0
  %1731 = vmatpush1.xpose.msra.mxu0 0.0
  %1732 = vmatprep.subr.mxu0 0.0
  %1733 = vmatpush1.xpose.msra.mxu0 0.0
  %1734 = vmatprep.subr.mxu0 0.0
  %1735 = vmatpush1.xpose.msra.mxu0 0.0
  %1736 = vmatprep.subr.mxu0 0.0
  %1737 = vmatpush1.xpose.msra.mxu0 0.0
  %1738 = vmatprep.subr.mxu0 0.0
  %1739 = vmatpush1.xpose.msra.mxu0 0.0
  %1740 = vmatprep.subr.mxu0 0.0
  %1741 = vmatpush1.xpose.msra.mxu0 0.0
  %1742 = vmatprep.subr.mxu0 0.0
  %1743 = vmatpush1.xpose.msra.mxu0 0.0
  %1744 = vmatprep.subr.mxu0 0.0
  %1745 = vmatpush1.xpose.msra.mxu0 0.0
  %1746 = vmatprep.subr.mxu0 0.0
  %1747 = vmatpush1.xpose.msra.mxu0 0.0
  %1748 = vmatprep.subr.mxu0 0.0
  %1749 = vmatpush1.xpose.msra.mxu0 0.0
  %1750 = vmatprep.subr.mxu0 0.0
  %1751 = vmatpush1.xpose.msra.mxu0 0.0
  %1752 = vmatprep.subr.mxu0 0.0
  %1753 = vmatpush1.xpose.msra.mxu0 0.0
  %1754 = vmatprep.subr.mxu0 0.0
  %1755 = vmatpush1.xpose.msra.mxu0 0.0
  %1756 = vmatprep.subr.mxu0 0.0
  %1757 = vmatpush1.xpose.msra.mxu0 0.0
  %1758 = vmatprep.subr.mxu0 0.0
  %1759 = vmatpush1.xpose.msra.mxu0 0.0
  %1760 = vmatprep.subr.mxu0 0.0
  %1761 = vmatpush1.xpose.msra.mxu0 0.0
  %1762 = vmatprep.subr.mxu0 0.0
  %1763 = vmatpush1.xpose.msra.mxu0 0.0
  %1764 = vmatprep.subr.mxu0 0.0
  %1765 = vmatpush1.xpose.msra.mxu0 0.0
  %1766 = vmatprep.subr.mxu0 0.0
  %1767 = vmatpush1.xpose.msra.mxu0 0.0
  %1768 = vmatprep.subr.mxu0 0.0
  %1769 = vmatpush1.xpose.msra.mxu0 0.0
  %1770 = vmatprep.subr.mxu0 0.0
  %1771 = vmatpush1.xpose.msra.mxu0 0.0
  %1772 = vmatprep.subr.mxu0 0.0
  %1773 = vmatpush1.xpose.msra.mxu0 0.0
  %1774 = vmatprep.mubr.f32.mxu0 %v89
  %1775 = vmatmul.mubr.f32.gmra.mrb[0].mxu0 %v88
  %v1776 = vpop.f32.mrb[0].mxu0
  %v1777 = vadd.f32 %v1707, %v1776
  %v1778 = vpop.f32.mrb[0].mxu0
  %1779 = vdwg.mxu0
  %1780 = vmatprep.subr.mxu0 %v91
  %1781 = vmatpush1.xpose.msra.mxu0 %v90
  %1782 = vmatprep.subr.mxu0 0.0
  %1783 = vmatpush1.xpose.msra.mxu0 0.0
  %1784 = vmatprep.subr.mxu0 0.0
  %1785 = vmatpush1.xpose.msra.mxu0 0.0
  %1786 = vmatprep.subr.mxu0 0.0
  %1787 = vmatpush1.xpose.msra.mxu0 0.0
  %1788 = vmatprep.subr.mxu0 0.0
  %1789 = vmatpush1.xpose.msra.mxu0 0.0
  %1790 = vmatprep.subr.mxu0 0.0
  %1791 = vmatpush1.xpose.msra.mxu0 0.0
  %1792 = vmatprep.subr.mxu0 0.0
  %1793 = vmatpush1.xpose.msra.mxu0 0.0
  %1794 = vmatprep.subr.mxu0 0.0
  %1795 = vmatpush1.xpose.msra.mxu0 0.0
  %1796 = vmatprep.subr.mxu0 0.0
  %1797 = vmatpush1.xpose.msra.mxu0 0.0
  %1798 = vmatprep.subr.mxu0 0.0
  %1799 = vmatpush1.xpose.msra.mxu0 0.0
  %1800 = vmatprep.subr.mxu0 0.0
  %1801 = vmatpush1.xpose.msra.mxu0 0.0
  %1802 = vmatprep.subr.mxu0 0.0
  %1803 = vmatpush1.xpose.msra.mxu0 0.0
  %1804 = vmatprep.subr.mxu0 0.0
  %1805 = vmatpush1.xpose.msra.mxu0 0.0
  %1806 = vmatprep.subr.mxu0 0.0
  %1807 = vmatpush1.xpose.msra.mxu0 0.0
  %1808 = vmatprep.subr.mxu0 0.0
  %1809 = vmatpush1.xpose.msra.mxu0 0.0
  %1810 = vmatprep.subr.mxu0 0.0
  %1811 = vmatpush1.xpose.msra.mxu0 0.0
  %1812 = vmatprep.subr.mxu0 0.0
  %1813 = vmatpush1.xpose.msra.mxu0 0.0
  %1814 = vmatprep.subr.mxu0 0.0
  %1815 = vmatpush1.xpose.msra.mxu0 0.0
  %1816 = vmatprep.subr.mxu0 0.0
  %1817 = vmatpush1.xpose.msra.mxu0 0.0
  %1818 = vmatprep.subr.mxu0 0.0
  %1819 = vmatpush1.xpose.msra.mxu0 0.0
  %1820 = vmatprep.subr.mxu0 0.0
  %1821 = vmatpush1.xpose.msra.mxu0 0.0
  %1822 = vmatprep.subr.mxu0 0.0
  %1823 = vmatpush1.xpose.msra.mxu0 0.0
  %1824 = vmatprep.subr.mxu0 0.0
  %1825 = vmatpush1.xpose.msra.mxu0 0.0
  %1826 = vmatprep.subr.mxu0 0.0
  %1827 = vmatpush1.xpose.msra.mxu0 0.0
  %1828 = vmatprep.subr.mxu0 0.0
  %1829 = vmatpush1.xpose.msra.mxu0 0.0
  %1830 = vmatprep.subr.mxu0 0.0
  %1831 = vmatpush1.xpose.msra.mxu0 0.0
  %1832 = vmatprep.subr.mxu0 0.0
  %1833 = vmatpush1.xpose.msra.mxu0 0.0
  %1834 = vmatprep.subr.mxu0 0.0
  %1835 = vmatpush1.xpose.msra.mxu0 0.0
  %1836 = vmatprep.subr.mxu0 0.0
  %1837 = vmatpush1.xpose.msra.mxu0 0.0
  %1838 = vmatprep.subr.mxu0 0.0
  %1839 = vmatpush1.xpose.msra.mxu0 0.0
  %1840 = vmatprep.subr.mxu0 0.0
  %1841 = vmatpush1.xpose.msra.mxu0 0.0
  %1842 = vmatprep.subr.mxu0 0.0
  %1843 = vmatpush1.xpose.msra.mxu0 0.0
  %1844 = vmatprep.mubr.f32.mxu0 %v91
  %1845 = vmatmul.mubr.f32.gmra.mrb[0].mxu0 %v90
  %v1846 = vpop.f32.mrb[0].mxu0
  %v1847 = vadd.f32 %v1777, %v1846
  %v1848 = vpop.f32.mrb[0].mxu0
  %1849 = vdwg.mxu0
  %1850 = vmatprep.subr.mxu0 %v93
  %1851 = vmatpush1.xpose.msra.mxu0 %v92
  %1852 = vmatprep.subr.mxu0 0.0
  %1853 = vmatpush1.xpose.msra.mxu0 0.0
  %1854 = vmatprep.subr.mxu0 0.0
  %1855 = vmatpush1.xpose.msra.mxu0 0.0
  %1856 = vmatprep.subr.mxu0 0.0
  %1857 = vmatpush1.xpose.msra.mxu0 0.0
  %1858 = vmatprep.subr.mxu0 0.0
  %1859 = vmatpush1.xpose.msra.mxu0 0.0
  %1860 = vmatprep.subr.mxu0 0.0
  %1861 = vmatpush1.xpose.msra.mxu0 0.0
  %1862 = vmatprep.subr.mxu0 0.0
  %1863 = vmatpush1.xpose.msra.mxu0 0.0
  %1864 = vmatprep.subr.mxu0 0.0
  %1865 = vmatpush1.xpose.msra.mxu0 0.0
  %1866 = vmatprep.subr.mxu0 0.0
  %1867 = vmatpush1.xpose.msra.mxu0 0.0
  %1868 = vmatprep.subr.mxu0 0.0
  %1869 = vmatpush1.xpose.msra.mxu0 0.0
  %1870 = vmatprep.subr.mxu0 0.0
  %1871 = vmatpush1.xpose.msra.mxu0 0.0
  %1872 = vmatprep.subr.mxu0 0.0
  %1873 = vmatpush1.xpose.msra.mxu0 0.0
  %1874 = vmatprep.subr.mxu0 0.0
  %1875 = vmatpush1.xpose.msra.mxu0 0.0
  %1876 = vmatprep.subr.mxu0 0.0
  %1877 = vmatpush1.xpose.msra.mxu0 0.0
  %1878 = vmatprep.subr.mxu0 0.0
  %1879 = vmatpush1.xpose.msra.mxu0 0.0
  %1880 = vmatprep.subr.mxu0 0.0
  %1881 = vmatpush1.xpose.msra.mxu0 0.0
  %1882 = vmatprep.subr.mxu0 0.0
  %1883 = vmatpush1.xpose.msra.mxu0 0.0
  %1884 = vmatprep.subr.mxu0 0.0
  %1885 = vmatpush1.xpose.msra.mxu0 0.0
  %1886 = vmatprep.subr.mxu0 0.0
  %1887 = vmatpush1.xpose.msra.mxu0 0.0
  %1888 = vmatprep.subr.mxu0 0.0
  %1889 = vmatpush1.xpose.msra.mxu0 0.0
  %1890 = vmatprep.subr.mxu0 0.0
  %1891 = vmatpush1.xpose.msra.mxu0 0.0
  %1892 = vmatprep.subr.mxu0 0.0
  %1893 = vmatpush1.xpose.msra.mxu0 0.0
  %1894 = vmatprep.subr.mxu0 0.0
  %1895 = vmatpush1.xpose.msra.mxu0 0.0
  %1896 = vmatprep.subr.mxu0 0.0
  %1897 = vmatpush1.xpose.msra.mxu0 0.0
  %1898 = vmatprep.subr.mxu0 0.0
  %1899 = vmatpush1.xpose.msra.mxu0 0.0
  %1900 = vmatprep.subr.mxu0 0.0
  %1901 = vmatpush1.xpose.msra.mxu0 0.0
  %1902 = vmatprep.subr.mxu0 0.0
  %1903 = vmatpush1.xpose.msra.mxu0 0.0
  %1904 = vmatprep.subr.mxu0 0.0
  %1905 = vmatpush1.xpose.msra.mxu0 0.0
  %1906 = vmatprep.subr.mxu0 0.0
  %1907 = vmatpush1.xpose.msra.mxu0 0.0
  %1908 = vmatprep.subr.mxu0 0.0
  %1909 = vmatpush1.xpose.msra.mxu0 0.0
  %1910 = vmatprep.subr.mxu0 0.0
  %1911 = vmatpush1.xpose.msra.mxu0 0.0
  %1912 = vmatprep.subr.mxu0 0.0
  %1913 = vmatpush1.xpose.msra.mxu0 0.0
  %1914 = vmatprep.mubr.f32.mxu0 %v93
  %1915 = vmatmul.mubr.f32.gmra.mrb[0].mxu0 %v92
  %v1916 = vpop.f32.mrb[0].mxu0
  %v1917 = vadd.f32 %v1847, %v1916
  %v1918 = vpop.f32.mrb[0].mxu0
  %1919 = vdwg.mxu0
  %1920 = vmatprep.subr.mxu0 0.0
  %1921 = vmatpush1.xpose.msra.mxu0 %v94
  %1922 = vmatprep.subr.mxu0 0.0
  %1923 = vmatpush1.xpose.msra.mxu0 0.0
  %1924 = vmatprep.subr.mxu0 0.0
  %1925 = vmatpush1.xpose.msra.mxu0 0.0
  %1926 = vmatprep.subr.mxu0 0.0
  %1927 = vmatpush1.xpose.msra.mxu0 0.0
  %1928 = vmatprep.subr.mxu0 0.0
  %1929 = vmatpush1.xpose.msra.mxu0 0.0
  %1930 = vmatprep.subr.mxu0 0.0
  %1931 = vmatpush1.xpose.msra.mxu0 0.0
  %1932 = vmatprep.subr.mxu0 0.0
  %1933 = vmatpush1.xpose.msra.mxu0 0.0
  %1934 = vmatprep.subr.mxu0 0.0
  %1935 = vmatpush1.xpose.msra.mxu0 0.0
  %1936 = vmatprep.subr.mxu0 0.0
  %1937 = vmatpush1.xpose.msra.mxu0 0.0
  %1938 = vmatprep.subr.mxu0 0.0
  %1939 = vmatpush1.xpose.msra.mxu0 0.0
  %1940 = vmatprep.subr.mxu0 0.0
  %1941 = vmatpush1.xpose.msra.mxu0 0.0
  %1942 = vmatprep.subr.mxu0 0.0
  %1943 = vmatpush1.xpose.msra.mxu0 0.0
  %1944 = vmatprep.subr.mxu0 0.0
  %1945 = vmatpush1.xpose.msra.mxu0 0.0
  %1946 = vmatprep.subr.mxu0 0.0
  %1947 = vmatpush1.xpose.msra.mxu0 0.0
  %1948 = vmatprep.subr.mxu0 0.0
  %1949 = vmatpush1.xpose.msra.mxu0 0.0
  %1950 = vmatprep.subr.mxu0 0.0
  %1951 = vmatpush1.xpose.msra.mxu0 0.0
  %1952 = vmatprep.subr.mxu0 0.0
  %1953 = vmatpush1.xpose.msra.mxu0 0.0
  %1954 = vmatprep.subr.mxu0 0.0
  %1955 = vmatpush1.xpose.msra.mxu0 0.0
  %1956 = vmatprep.subr.mxu0 0.0
  %1957 = vmatpush1.xpose.msra.mxu0 0.0
  %1958 = vmatprep.subr.mxu0 0.0
  %1959 = vmatpush1.xpose.msra.mxu0 0.0
  %1960 = vmatprep.subr.mxu0 0.0
  %1961 = vmatpush1.xpose.msra.mxu0 0.0
  %1962 = vmatprep.subr.mxu0 0.0
  %1963 = vmatpush1.xpose.msra.mxu0 0.0
  %1964 = vmatprep.subr.mxu0 0.0
  %1965 = vmatpush1.xpose.msra.mxu0 0.0
  %1966 = vmatprep.subr.mxu0 0.0
  %1967 = vmatpush1.xpose.msra.mxu0 0.0
  %1968 = vmatprep.subr.mxu0 0.0
  %1969 = vmatpush1.xpose.msra.mxu0 0.0
  %1970 = vmatprep.subr.mxu0 0.0
  %1971 = vmatpush1.xpose.msra.mxu0 0.0
  %1972 = vmatprep.subr.mxu0 0.0
  %1973 = vmatpush1.xpose.msra.mxu0 0.0
  %1974 = vmatprep.subr.mxu0 0.0
  %1975 = vmatpush1.xpose.msra.mxu0 0.0
  %1976 = vmatprep.subr.mxu0 0.0
  %1977 = vmatpush1.xpose.msra.mxu0 0.0
  %1978 = vmatprep.subr.mxu0 0.0
  %1979 = vmatpush1.xpose.msra.mxu0 0.0
  %1980 = vmatprep.subr.mxu0 0.0
  %1981 = vmatpush1.xpose.msra.mxu0 0.0
  %1982 = vmatprep.subr.mxu0 0.0
  %1983 = vmatpush1.xpose.msra.mxu0 0.0
  %1984 = vmatprep.mubr.f32.mxu0 0.0
  %1985 = vmatmul.mubr.f32.gmra.mrb[0].mxu0 %v94
  %v1986 = vpop.f32.mrb[0].mxu0
  %v1987 = vadd.f32 %v1917, %v1986
  %v1988 = vpop.f32.mrb[0].mxu0
  %1989 = vdwg.mxu0
  %v1990 = vlaneseq
  %v1991 = vshrl.u32 %v1990, 7
  %v1992 = vsub.s32 4, %v1991
  %v1993 = vrot.slane %v1987, %v1992
  %v1994 = vmul.f32 %v19, %v1993
  %vm1995 = vcmask 31744
  %v1996 = vsel %vm1995, %v1994, 0.0
  %1997 = vadd.xlane.f32.xlu0 %v1996
  %v1998 = vpop.xlane.xlu0 %1997
  %v2000 = vsel %vm1995, %v19, 0
  %v2003 = vsel %vm69, %v1987, 0
  %2005 = vmatprep.subr.mxu0 0.0
  %2006 = vmatpush1.msra.mxu0 %v2003
  %2007 = vmatprep.subr.mxu0 0.0
  %2008 = vmatpush1.msra.mxu0 0.0
  %2009 = vmatprep.subr.mxu0 0.0
  %2010 = vmatpush1.msra.mxu0 0.0
  %2011 = vmatprep.subr.mxu0 0.0
  %2012 = vmatpush1.msra.mxu0 0.0
  %2013 = vmatprep.subr.mxu0 0.0
  %2014 = vmatpush1.msra.mxu0 0.0
  %2015 = vmatprep.subr.mxu0 0.0
  %2016 = vmatpush1.msra.mxu0 0.0
  %2017 = vmatprep.subr.mxu0 0.0
  %2018 = vmatpush1.msra.mxu0 0.0
  %2019 = vmatprep.subr.mxu0 0.0
  %2020 = vmatpush1.msra.mxu0 0.0
  %2021 = vmatprep.subr.mxu0 0.0
  %2022 = vmatpush1.msra.mxu0 0.0
  %2023 = vmatprep.subr.mxu0 0.0
  %2024 = vmatpush1.msra.mxu0 0.0
  %2025 = vmatprep.subr.mxu0 0.0
  %2026 = vmatpush1.msra.mxu0 0.0
  %2027 = vmatprep.subr.mxu0 0.0
  %2028 = vmatpush1.msra.mxu0 0.0
  %2029 = vmatprep.subr.mxu0 0.0
  %2030 = vmatpush1.msra.mxu0 0.0
  %2031 = vmatprep.subr.mxu0 0.0
  %2032 = vmatpush1.msra.mxu0 0.0
  %2033 = vmatprep.subr.mxu0 0.0
  %2034 = vmatpush1.msra.mxu0 0.0
  %2035 = vmatprep.subr.mxu0 0.0
  %2036 = vmatpush1.msra.mxu0 0.0
  %2037 = vmatprep.subr.mxu0 0.0
  %2038 = vmatpush1.msra.mxu0 0.0
  %2039 = vmatprep.subr.mxu0 0.0
  %2040 = vmatpush1.msra.mxu0 0.0
  %2041 = vmatprep.subr.mxu0 0.0
  %2042 = vmatpush1.msra.mxu0 0.0
  %2043 = vmatprep.subr.mxu0 0.0
  %2044 = vmatpush1.msra.mxu0 0.0
  %2045 = vmatprep.subr.mxu0 0.0
  %2046 = vmatpush1.msra.mxu0 0.0
  %2047 = vmatprep.subr.mxu0 0.0
  %2048 = vmatpush1.msra.mxu0 0.0
  %2049 = vmatprep.subr.mxu0 0.0
  %2050 = vmatpush1.msra.mxu0 0.0
  %2051 = vmatprep.subr.mxu0 0.0
  %2052 = vmatpush1.msra.mxu0 0.0
  %2053 = vmatprep.subr.mxu0 0.0
  %2054 = vmatpush1.msra.mxu0 0.0
  %2055 = vmatprep.subr.mxu0 0.0
  %2056 = vmatpush1.msra.mxu0 0.0
  %2057 = vmatprep.subr.mxu0 0.0
  %2058 = vmatpush1.msra.mxu0 0.0
  %2059 = vmatprep.subr.mxu0 0.0
  %2060 = vmatpush1.msra.mxu0 0.0
  %2061 = vmatprep.subr.mxu0 0.0
  %2062 = vmatpush1.msra.mxu0 0.0
  %2063 = vmatprep.subr.mxu0 0.0
  %2064 = vmatpush1.msra.mxu0 0.0
  %2065 = vmatprep.subr.mxu0 0.0
  %2066 = vmatpush1.msra.mxu0 0.0
  %2067 = vmatprep.subr.mxu0 0.0
  %2068 = vmatpush1.msra.mxu0 0.0
  %2069 = vmatprep.mubr.f32.mxu0 0.0
  %2070 = vmatmul.mubr.f32.gmra.mrb[0].mxu0 %v2000
  %v2071 = vpop.f32.mrb[0].mxu0
  %v2072 = vadd.f32 0.0, %v2071
  %v2073 = vpop.f32.mrb[0].mxu0
  %2074 = vdwg.mxu0
  %v2075 = vmul.f32 %v2072, %v19
  %v2076 = vsel %vm1995, %v2075, 0.0
  %2077 = vadd.xlane.f32.xlu0 %v2076
  %v2078 = vpop.xlane.xlu0 %2077
  %v2079 = vmul.f32 %v1998, 0.00015943877
  %v2080 = vmul.f32 %v2078, 0.00015943877
  %v2081 = vmul.f32 %v2079, %v2079
  %v2082 = vsub.f32 %v2080, %v2081
  %v2083 = vmax.f32 %v2082, 0.0
  %v2084 = vld [vmem:[%s2] sm:$0xff]
  %v2085 = vadd.f32 %v2083, 1e-05
  %v2086 = vrsqrt.pop %v2085
  %v2087 = vmul.f32 %v2084, %v2086
  %v2088 = vld [vmem:[%s3] sm:$0xff]
  %v2089 = vmul.f32 %v2079, %v2087
  %v2090 = vsub.f32 %v2088, %v2089
  %vm2091 = vcmask 7168
  %2092 = vst.msk [vmem:[%s4] sm:$0xff] %vm2091, %v2087
  %2093 = vst.msk [vmem:[%s5] sm:$0xff] %vm2091, %v2090
  // Predicated region
  $region18: #{dp_block_forward.2} parent=0 // pred_check
    _
  $region19: #{dp_block_forward.2} parent=0 // pred_check_branch
    %2095 = sbr.rel (0) target = $region21
  $region20: #{dp_block_forward.2} parent=0 // pred_region
    _
  $region21: #{dp_block_forward.2} parent=0 // pred_fallthru
    _
  // Predicated region
  $region22: #{dp_block_forward.2} parent=0 // pred_check
    _
  $region23: #{dp_block_forward.2} parent=0 // pred_check_branch
    %2097 = sbr.rel (0) target = $region25
  $region24: #{dp_block_forward.2} parent=0 // pred_region
    _
  $region25: #{dp_block_forward.2} parent=0 // pred_fallthru
    _
  // Predicated region
  $region26: #{dp_block_forward.2} parent=0 // pred_check
    _
  $region27: #{dp_block_forward.2} parent=0 // pred_check_branch
    %2099 = sbr.rel (0) target = $region29
  $region28: #{dp_block_forward.2} parent=0 // pred_region
    _
  $region29: #{dp_block_forward.2} parent=0 // pred_fallthru
    _
  // Predicated region
  $region30: #{dp_block_forward.2} parent=0 // pred_check
    _
  $region31: #{dp_block_forward.2} parent=0 // pred_check_branch
    %2101 = sbr.rel (0) target = $region33
  $region32: #{dp_block_forward.2} parent=0 // pred_region
    _
  $region33: #{dp_block_forward.2} parent=0 // pred_fallthru
    _

</llo_original>
